<compile_context>
chip_gen: v5e
topology: v5e:2x2
jax: 0.10.0
libtpu: 0.0.40
codegen_flags: <defaults>
</compile_context>

<pallas_src>
import jax
import jax.numpy as jnp
from jax import lax
from jax.experimental import pallas as pl
from jax.experimental.pallas import tpu as pltpu


# ----------------------------- Pallas kernels ------------------------------


def _conv_pool_kernel(cols_ref, w_ref, b_ref, o_ref):
    """Fused conv (im2col matmul) + bias + ReLU + 2x2 maxpool.

    cols_ref: (4, tm, K) bf16 -- the 4 pool-window candidates of each pooled row
              (rows ordered (n, pooled_i, pooled_j); cols ordered (kh, kw, cin)).
    w_ref:    (K, 128)  bf16  -- (kh,kw,cin)->cout weights, cout zero-padded.
    b_ref:    (1, 128)  f32
    o_ref:    (tm, 128) bf16  -- pooled, ReLU'd activations (lane-dense).
    """
    w = w_ref[...]
    m = jnp.dot(cols_ref[0], w, preferred_element_type=jnp.float32)
    m = jnp.maximum(m, jnp.dot(cols_ref[1], w, preferred_element_type=jnp.float32))
    m = jnp.maximum(m, jnp.dot(cols_ref[2], w, preferred_element_type=jnp.float32))
    m = jnp.maximum(m, jnp.dot(cols_ref[3], w, preferred_element_type=jnp.float32))
    o_ref[...] = jnp.maximum(m + b_ref[...], 0.0).astype(o_ref.dtype)


def conv_pool(cols, w, b):
    _, mp, k = cols.shape
    c = w.shape[1]
    grid_m = 2 if mp % 16 == 0 else 1      # lets v7x shard rows across both TCs
    tm = mp // grid_m
    return pl.pallas_call(
        _conv_pool_kernel,
        out_shape=jax.ShapeDtypeStruct((mp, c), jnp.bfloat16),
        grid=(grid_m,),
        in_specs=[
            pl.BlockSpec((4, tm, k), lambda i: (0, i, 0)),
            pl.BlockSpec((k, c), lambda i: (0, 0)),   # constant index -> fetched once
            pl.BlockSpec((1, c), lambda i: (0, 0)),
        ],
        out_specs=pl.BlockSpec((tm, c), lambda i: (i, 0)),
        compiler_params=pltpu.CompilerParams(dimension_semantics=("parallel",)),
    )(cols, w, b)


def _mlp_kernel(x_ref, w1_ref, b1_ref, w2_ref, b2_ref, o_ref):
    """fc1 + bias + ReLU + fc2 + bias; the hidden activation never leaves VMEM."""
    h = jnp.dot(x_ref[...], w1_ref[...], preferred_element_type=jnp.float32)
    h = jnp.maximum(h + b1_ref[...], 0.0)
    o = jnp.dot(h.astype(w2_ref.dtype), w2_ref[...],
                preferred_element_type=jnp.float32)
    o_ref[...] = (o + b2_ref[...]).astype(o_ref.dtype)


def mlp(x, w1, b1, w2, b2):
    m, k = x.shape
    hdim = w1.shape[1]
    c = w2.shape[1]
    return pl.pallas_call(
        _mlp_kernel,
        out_shape=jax.ShapeDtypeStruct((m, c), jnp.float32),
        grid=(1,),
        in_specs=[
            pl.BlockSpec((m, k), lambda i: (0, 0)),
            pl.BlockSpec((k, hdim), lambda i: (0, 0)),
            pl.BlockSpec((1, hdim), lambda i: (0, 0)),
            pl.BlockSpec((hdim, c), lambda i: (0, 0)),
            pl.BlockSpec((1, c), lambda i: (0, 0)),
        ],
        out_specs=pl.BlockSpec((m, c), lambda i: (0, 0)),
        compiler_params=pltpu.CompilerParams(dimension_semantics=("arbitrary",)),
    )(x, w1, b1, w2, b2)


# ------------------------------- JAX glue ----------------------------------


def pool_im2col(x, k):
    """(N,H,W,Cin) -> (4, N*(oH//2)*(oW//2), k*k*Cin).

    Leading axis = 2x2 pool-window offset (di*2+dj); rows within each candidate
    are ordered (n, pooled_i, pooled_j); columns ordered (kh, kw, cin).  This is
    a pure row permutation of the standard im2col matrix (no data blow-up).
    """
    n, h, w_, cin = x.shape
    oh, ow = h - k + 1, w_ - k + 1
    patches = [x[:, i:i + oh, j:j + ow, :] for i in range(k) for j in range(k)]
    col = jnp.stack(patches, axis=3)                     # (N, oH, oW, k*k, Cin)
    col = col.reshape(n, oh // 2, 2, ow // 2, 2, k * k * cin)
    col = jnp.transpose(col, (2, 4, 0, 1, 3, 5))         # (di, dj, N, i, j, K)
    return col.reshape(4, n * (oh // 2) * (ow // 2), k * k * cin)


def prepare_params(p):
    """One-time weight prep (outside jit): transpose to matmul layout, permute
    fc1's input dim to NHWC flatten order, zero-pad to 128-lane multiples and
    cast to bf16.  Removes every in-jit weight transpose and halves the
    dominant fc1 weight HBM stream."""
    def conv_mat(w_oihw, cout_pad):
        cout, cin, kh, kw = w_oihw.shape
        m = jnp.transpose(w_oihw, (2, 3, 1, 0)).reshape(kh * kw * cin, cout)
        return jnp.pad(m, ((0, 0), (0, cout_pad - cout))).astype(jnp.bfloat16)

    w1 = conv_mat(p["conv1_w"], 128)                                 # (25, 128)
    b1 = jnp.pad(p["conv1_b"], (0, 96)).reshape(1, 128).astype(jnp.float32)
    w2 = conv_mat(p["conv2_w"], 128)                                 # (800, 128)
    b2 = jnp.pad(p["conv2_b"], (0, 64)).reshape(1, 128).astype(jnp.float32)

    # fc1: PyTorch flattens NCHW (c,i,j); our conv output flattens NHWC (i,j,c).
    # Permute fc1's input dim here so the forward pass needs no transpose.
    fw1 = p["fc1_w"].reshape(1000, 64, 4, 4)                         # (o,c,i,j)
    fw1 = jnp.transpose(fw1, (2, 3, 1, 0)).reshape(1024, 1000)       # rows (i,j,c)
    fw1 = jnp.pad(fw1, ((0, 0), (0, 24))).astype(jnp.bfloat16)       # (1024, 1024)
    fb1 = jnp.pad(p["fc1_b"], (0, 24)).reshape(1, 1024).astype(jnp.float32)
    fw2 = jnp.pad(p["fc2_w"].T, ((0, 24), (0, 118))).astype(jnp.bfloat16)  # (1024,128)
    fb2 = jnp.pad(p["fc2_b"], (0, 118)).reshape(1, 128).astype(jnp.float32)
    return {"w1": w1, "b1": b1, "w2": w2, "b2": b2,
            "fw1": fw1, "fb1": fb1, "fw2": fw2, "fb2": fb2}


def net_forward(x_nchw, pp):
    n = x_nchw.shape[0]
    # Cin == 1, so NCHW -> NHWC is a pure reshape (no transpose op at runtime).
    x = x_nchw.reshape(n, 28, 28, 1).astype(jnp.bfloat16)

    # conv1 + bias + ReLU + 2x2 pool  ->  (N*12*12, 128) lane-dense, bf16
    p1 = conv_pool(pool_im2col(x, 5), pp["w1"], pp["b1"])
    p1 = p1[:, :32].reshape(n, 12, 12, 32)

    # conv2 + bias + ReLU + 2x2 pool  ->  (N*4*4, 128)
    p2 = conv_pool(pool_im2col(p1, 5), pp["w2"], pp["b2"])

    # flatten; the NCHW-vs-NHWC channel order was folded into fc1's weights.
    flat = p2[:, :64].reshape(n, 64 * 4 * 4)

    # fc1 + ReLU + fc2 in one kernel, then strip the 10->128 output padding.
    out = mlp(flat, pp["fw1"], pp["fb1"], pp["fw2"], pp["fb2"])
    return out[:, :10]


# ------------------------- reference + parameters --------------------------


def net_reference(x, p):
    hp = lax.Precision.HIGHEST
    dn = ("NCHW", "OIHW", "NCHW")
    y = lax.conv_general_dilated(x, p["conv1_w"], (1, 1), "VALID",
                                 dimension_numbers=dn, precision=hp)
    y = jnp.maximum(y + p["conv1_b"][None, :, None, None], 0.0)
    y = lax.reduce_window(y, -jnp.inf, lax.max, (1, 1, 2, 2), (1, 1, 2, 2), "VALID")
    y = lax.conv_general_dilated(y, p["conv2_w"], (1, 1), "VALID",
                                 dimension_numbers=dn, precision=hp)
    y = jnp.maximum(y + p["conv2_b"][None, :, None, None], 0.0)
    y = lax.reduce_window(y, -jnp.inf, lax.max, (1, 1, 2, 2), (1, 1, 2, 2), "VALID")
    y = y.reshape(y.shape[0], -1)
    y = jnp.maximum(jnp.matmul(y, p["fc1_w"].T, precision=hp) + p["fc1_b"], 0.0)
    return jnp.matmul(y, p["fc2_w"].T, precision=hp) + p["fc2_b"]


def init_params(key):
    ks = jax.random.split(key, 8)

    def u(k, shape, fan_in):
        bound = float(fan_in) ** -0.5
        return jax.random.uniform(k, shape, jnp.float32, -bound, bound)

    return {
        "conv1_w": u(ks[0], (32, 1, 5, 5), 1 * 5 * 5),
        "conv1_b": u(ks[1], (32,), 1 * 5 * 5),
        "conv2_w": u(ks[2], (64, 32, 5, 5), 32 * 5 * 5),
        "conv2_b": u(ks[3], (64,), 32 * 5 * 5),
        "fc1_w": u(ks[4], (1000, 64 * 4 * 4), 64 * 4 * 4),
        "fc1_b": u(ks[5], (1000,), 64 * 4 * 4),
        "fc2_w": u(ks[6], (10, 1000), 1000),
        "fc2_b": u(ks[7], (10,), 1000),
    }


if __name__ == "__main__":
    key = jax.random.PRNGKey(0)
    pkey, xkey = jax.random.split(key)
    params = init_params(pkey)
    pp = prepare_params(params)       # one-time weight prep, outside the jit
    # Network geometry forces 28x28 single-channel input (64*4*4 flatten).
    x = jax.random.normal(xkey, (2, 1, 28, 28), jnp.float32)

    out = jax.block_until_ready(jax.jit(net_forward)(x, pp))
    assert out.shape == (2, 10) and out.dtype == jnp.float32

    ref = jax.block_until_ready(jax.jit(net_reference)(x, params))
    # Loose tolerance: bf16 weight/activation streams + MXU f32 accumulation.
    assert jnp.allclose(out, ref, rtol=2e-2, atol=2e-2)

    print("KERNEL_OK")
</pallas_src>

<mosaic_0001>
module attributes {stable_mosaic.version = 11 : i64} {
  func.func @_conv_pool_kernel(%arg0: i32, %arg1: memref<4x144x25xbf16, #tpu.memory_space<vmem>>, %arg2: memref<25x128xbf16, #tpu.memory_space<vmem>>, %arg3: memref<1x128xf32, #tpu.memory_space<vmem>>, %arg4: memref<144x128xbf16, #tpu.memory_space<vmem>>) attributes {dimension_semantics = [#tpu.dimension_semantics<parallel>], iteration_bounds = array<i64: 2>, scalar_prefetch = 0 : i64, scratch_operands = 0 : i64, tpu.core_type = #tpu.core_type<tc>, window_params = [{transform_indices = @transform_0, window_bounds = array<i64: 4, 144, 25>}, {pipeline_mode = #tpu.pipeline_mode<synchronous>, transform_indices = @transform_1, window_bounds = array<i64: 25, 128>}, {pipeline_mode = #tpu.pipeline_mode<synchronous>, transform_indices = @transform_2, window_bounds = array<i64: 1, 128>}, {transform_indices = @transform_3, window_bounds = array<i64: 144, 128>}]} {
    %c0 = arith.constant 0 : index
    %c0_0 = arith.constant 0 : index
    %0 = vector.load %arg2[%c0, %c0_0] : memref<25x128xbf16, #tpu.memory_space<vmem>>, vector<25x128xbf16>
    %c0_1 = arith.constant 0 : index
    %c0_2 = arith.constant 0 : index
    %c0_3 = arith.constant 0 : index
    %1 = vector.load %arg1[%c0_1, %c0_2, %c0_3] : memref<4x144x25xbf16, #tpu.memory_space<vmem>>, vector<1x144x25xbf16>
    %2 = vector.shape_cast %1 : vector<1x144x25xbf16> to vector<144x25xbf16>
    %cst = arith.constant dense<0.000000e+00> : vector<144x128xf32>
    %3 = tpu.matmul %2, %0, %cst {dimension_numbers = #tpu.dot_dimension_numbers<[1], [0], [0], [1], [0, 0, 1, 1], [], []>} : vector<144x25xbf16>, vector<25x128xbf16>, vector<144x128xf32> -> vector<144x128xf32>
    %c1 = arith.constant 1 : index
    %c0_4 = arith.constant 0 : index
    %c0_5 = arith.constant 0 : index
    %4 = vector.load %arg1[%c1, %c0_4, %c0_5] : memref<4x144x25xbf16, #tpu.memory_space<vmem>>, vector<1x144x25xbf16>
    %5 = vector.shape_cast %4 : vector<1x144x25xbf16> to vector<144x25xbf16>
    %cst_6 = arith.constant dense<0.000000e+00> : vector<144x128xf32>
    %6 = tpu.matmul %5, %0, %cst_6 {dimension_numbers = #tpu.dot_dimension_numbers<[1], [0], [0], [1], [0, 0, 1, 1], [], []>} : vector<144x25xbf16>, vector<25x128xbf16>, vector<144x128xf32> -> vector<144x128xf32>
    %7 = arith.maximumf %3, %6 : vector<144x128xf32>
    %c2 = arith.constant 2 : index
    %c0_7 = arith.constant 0 : index
    %c0_8 = arith.constant 0 : index
    %8 = vector.load %arg1[%c2, %c0_7, %c0_8] : memref<4x144x25xbf16, #tpu.memory_space<vmem>>, vector<1x144x25xbf16>
    %9 = vector.shape_cast %8 : vector<1x144x25xbf16> to vector<144x25xbf16>
    %cst_9 = arith.constant dense<0.000000e+00> : vector<144x128xf32>
    %10 = tpu.matmul %9, %0, %cst_9 {dimension_numbers = #tpu.dot_dimension_numbers<[1], [0], [0], [1], [0, 0, 1, 1], [], []>} : vector<144x25xbf16>, vector<25x128xbf16>, vector<144x128xf32> -> vector<144x128xf32>
    %11 = arith.maximumf %7, %10 : vector<144x128xf32>
    %c3 = arith.constant 3 : index
    %c0_10 = arith.constant 0 : index
    %c0_11 = arith.constant 0 : index
    %12 = vector.load %arg1[%c3, %c0_10, %c0_11] : memref<4x144x25xbf16, #tpu.memory_space<vmem>>, vector<1x144x25xbf16>
    %13 = vector.shape_cast %12 : vector<1x144x25xbf16> to vector<144x25xbf16>
    %cst_12 = arith.constant dense<0.000000e+00> : vector<144x128xf32>
    %14 = tpu.matmul %13, %0, %cst_12 {dimension_numbers = #tpu.dot_dimension_numbers<[1], [0], [0], [1], [0, 0, 1, 1], [], []>} : vector<144x25xbf16>, vector<25x128xbf16>, vector<144x128xf32> -> vector<144x128xf32>
    %15 = arith.maximumf %11, %14 : vector<144x128xf32>
    %c0_13 = arith.constant 0 : index
    %c0_14 = arith.constant 0 : index
    %16 = vector.load %arg3[%c0_13, %c0_14] : memref<1x128xf32, #tpu.memory_space<vmem>>, vector<1x128xf32>
    %17 = vector.broadcast %16 : vector<1x128xf32> to vector<144x128xf32>
    %18 = arith.addf %15, %17 : vector<144x128xf32>
    %cst_15 = arith.constant 0.000000e+00 : f32
    %19 = vector.broadcast %cst_15 : f32 to vector<144x128xf32>
    %20 = arith.maximumf %18, %19 : vector<144x128xf32>
    %21 = arith.truncf %20 : vector<144x128xf32> to vector<144x128xbf16>
    %c0_16 = arith.constant 0 : index
    %c0_17 = arith.constant 0 : index
    %22 = vector.load %arg4[%c0_16, %c0_17] : memref<144x128xbf16, #tpu.memory_space<vmem>>, vector<144x128xbf16>
    tpu.vector_store %arg4[%c0_16, %c0_17], %21 {strides = array<i32>} : memref<144x128xbf16, #tpu.memory_space<vmem>>, vector<144x128xbf16>,
    return
  }
  func.func @transform_0(%arg0: i32) -> (i32, i32, i32) {
    %c0_i32 = arith.constant 0 : i32
    %c0_i32_0 = arith.constant 0 : i32
    %c0_i32_1 = arith.constant 0 : i32
    return %c0_i32, %arg0, %c0_i32_0 : i32, i32, i32
  }
  func.func @transform_1(%arg0: i32) -> (i32, i32) {
    %c0_i32 = arith.constant 0 : i32
    %c0_i32_0 = arith.constant 0 : i32
    %c0_i32_1 = arith.constant 0 : i32
    return %c0_i32, %c0_i32_0 : i32, i32
  }
  func.func @transform_2(%arg0: i32) -> (i32, i32) {
    %c0_i32 = arith.constant 0 : i32
    %c0_i32_0 = arith.constant 0 : i32
    %c0_i32_1 = arith.constant 0 : i32
    return %c0_i32, %c0_i32_0 : i32, i32
  }
  func.func @transform_3(%arg0: i32) -> (i32, i32) {
    %c0_i32 = arith.constant 0 : i32
    %c0_i32_0 = arith.constant 0 : i32
    return %arg0, %c0_i32 : i32, i32
  }
}

module attributes {stable_mosaic.version = 11 : i64} {
  func.func @_conv_pool_kernel(%arg0: i32, %arg1: memref<4x16x800xbf16, #tpu.memory_space<vmem>>, %arg2: memref<800x128xbf16, #tpu.memory_space<vmem>>, %arg3: memref<1x128xf32, #tpu.memory_space<vmem>>, %arg4: memref<16x128xbf16, #tpu.memory_space<vmem>>) attributes {dimension_semantics = [#tpu.dimension_semantics<parallel>], iteration_bounds = array<i64: 2>, scalar_prefetch = 0 : i64, scratch_operands = 0 : i64, tpu.core_type = #tpu.core_type<tc>, window_params = [{transform_indices = @transform_0, window_bounds = array<i64: 4, 16, 800>}, {pipeline_mode = #tpu.pipeline_mode<synchronous>, transform_indices = @transform_1, window_bounds = array<i64: 800, 128>}, {pipeline_mode = #tpu.pipeline_mode<synchronous>, transform_indices = @transform_2, window_bounds = array<i64: 1, 128>}, {transform_indices = @transform_3, window_bounds = array<i64: 16, 128>}]} {
    %c0 = arith.constant 0 : index
    %c0_0 = arith.constant 0 : index
    %0 = vector.load %arg2[%c0, %c0_0] : memref<800x128xbf16, #tpu.memory_space<vmem>>, vector<800x128xbf16>
    %c0_1 = arith.constant 0 : index
    %c0_2 = arith.constant 0 : index
    %c0_3 = arith.constant 0 : index
    %1 = vector.load %arg1[%c0_1, %c0_2, %c0_3] : memref<4x16x800xbf16, #tpu.memory_space<vmem>>, vector<1x16x800xbf16>
    %2 = vector.shape_cast %1 : vector<1x16x800xbf16> to vector<16x800xbf16>
    %cst = arith.constant dense<0.000000e+00> : vector<16x128xf32>
    %3 = tpu.matmul %2, %0, %cst {dimension_numbers = #tpu.dot_dimension_numbers<[1], [0], [0], [1], [0, 0, 1, 1], [], []>} : vector<16x800xbf16>, vector<800x128xbf16>, vector<16x128xf32> -> vector<16x128xf32>
    %c1 = arith.constant 1 : index
    %c0_4 = arith.constant 0 : index
    %c0_5 = arith.constant 0 : index
    %4 = vector.load %arg1[%c1, %c0_4, %c0_5] : memref<4x16x800xbf16, #tpu.memory_space<vmem>>, vector<1x16x800xbf16>
    %5 = vector.shape_cast %4 : vector<1x16x800xbf16> to vector<16x800xbf16>
    %cst_6 = arith.constant dense<0.000000e+00> : vector<16x128xf32>
    %6 = tpu.matmul %5, %0, %cst_6 {dimension_numbers = #tpu.dot_dimension_numbers<[1], [0], [0], [1], [0, 0, 1, 1], [], []>} : vector<16x800xbf16>, vector<800x128xbf16>, vector<16x128xf32> -> vector<16x128xf32>
    %7 = arith.maximumf %3, %6 : vector<16x128xf32>
    %c2 = arith.constant 2 : index
    %c0_7 = arith.constant 0 : index
    %c0_8 = arith.constant 0 : index
    %8 = vector.load %arg1[%c2, %c0_7, %c0_8] : memref<4x16x800xbf16, #tpu.memory_space<vmem>>, vector<1x16x800xbf16>
    %9 = vector.shape_cast %8 : vector<1x16x800xbf16> to vector<16x800xbf16>
    %cst_9 = arith.constant dense<0.000000e+00> : vector<16x128xf32>
    %10 = tpu.matmul %9, %0, %cst_9 {dimension_numbers = #tpu.dot_dimension_numbers<[1], [0], [0], [1], [0, 0, 1, 1], [], []>} : vector<16x800xbf16>, vector<800x128xbf16>, vector<16x128xf32> -> vector<16x128xf32>
    %11 = arith.maximumf %7, %10 : vector<16x128xf32>
    %c3 = arith.constant 3 : index
    %c0_10 = arith.constant 0 : index
    %c0_11 = arith.constant 0 : index
    %12 = vector.load %arg1[%c3, %c0_10, %c0_11] : memref<4x16x800xbf16, #tpu.memory_space<vmem>>, vector<1x16x800xbf16>
    %13 = vector.shape_cast %12 : vector<1x16x800xbf16> to vector<16x800xbf16>
    %cst_12 = arith.constant dense<0.000000e+00> : vector<16x128xf32>
    %14 = tpu.matmul %13, %0, %cst_12 {dimension_numbers = #tpu.dot_dimension_numbers<[1], [0], [0], [1], [0, 0, 1, 1], [], []>} : vector<16x800xbf16>, vector<800x128xbf16>, vector<16x128xf32> -> vector<16x128xf32>
    %15 = arith.maximumf %11, %14 : vector<16x128xf32>
    %c0_13 = arith.constant 0 : index
    %c0_14 = arith.constant 0 : index
    %16 = vector.load %arg3[%c0_13, %c0_14] : memref<1x128xf32, #tpu.memory_space<vmem>>, vector<1x128xf32>
    %17 = vector.broadcast %16 : vector<1x128xf32> to vector<16x128xf32>
    %18 = arith.addf %15, %17 : vector<16x128xf32>
    %cst_15 = arith.constant 0.000000e+00 : f32
    %19 = vector.broadcast %cst_15 : f32 to vector<16x128xf32>
    %20 = arith.maximumf %18, %19 : vector<16x128xf32>
    %21 = arith.truncf %20 : vector<16x128xf32> to vector<16x128xbf16>
    %c0_16 = arith.constant 0 : index
    %c0_17 = arith.constant 0 : index
    %22 = vector.load %arg4[%c0_16, %c0_17] : memref<16x128xbf16, #tpu.memory_space<vmem>>, vector<16x128xbf16>
    tpu.vector_store %arg4[%c0_16, %c0_17], %21 {strides = array<i32>} : memref<16x128xbf16, #tpu.memory_space<vmem>>, vector<16x128xbf16>,
    return
  }
  func.func @transform_0(%arg0: i32) -> (i32, i32, i32) {
    %c0_i32 = arith.constant 0 : i32
    %c0_i32_0 = arith.constant 0 : i32
    %c0_i32_1 = arith.constant 0 : i32
    return %c0_i32, %arg0, %c0_i32_0 : i32, i32, i32
  }
  func.func @transform_1(%arg0: i32) -> (i32, i32) {
    %c0_i32 = arith.constant 0 : i32
    %c0_i32_0 = arith.constant 0 : i32
    %c0_i32_1 = arith.constant 0 : i32
    return %c0_i32, %c0_i32_0 : i32, i32
  }
  func.func @transform_2(%arg0: i32) -> (i32, i32) {
    %c0_i32 = arith.constant 0 : i32
    %c0_i32_0 = arith.constant 0 : i32
    %c0_i32_1 = arith.constant 0 : i32
    return %c0_i32, %c0_i32_0 : i32, i32
  }
  func.func @transform_3(%arg0: i32) -> (i32, i32) {
    %c0_i32 = arith.constant 0 : i32
    %c0_i32_0 = arith.constant 0 : i32
    return %arg0, %c0_i32 : i32, i32
  }
}

module attributes {stable_mosaic.version = 11 : i64} {
  func.func @_mlp_kernel(%arg0: i32, %arg1: memref<2x1024xbf16, #tpu.memory_space<vmem>>, %arg2: memref<1024x1024xbf16, #tpu.memory_space<vmem>>, %arg3: memref<1x1024xf32, #tpu.memory_space<vmem>>, %arg4: memref<1024x128xbf16, #tpu.memory_space<vmem>>, %arg5: memref<1x128xf32, #tpu.memory_space<vmem>>, %arg6: memref<2x128xf32, #tpu.memory_space<vmem>>) attributes {dimension_semantics = [#tpu.dimension_semantics<arbitrary>], iteration_bounds = array<i64: 1>, scalar_prefetch = 0 : i64, scratch_operands = 0 : i64, tpu.core_type = #tpu.core_type<tc>, window_params = [{pipeline_mode = #tpu.pipeline_mode<synchronous>, transform_indices = @transform_0, window_bounds = array<i64: 2, 1024>}, {pipeline_mode = #tpu.pipeline_mode<synchronous>, transform_indices = @transform_1, window_bounds = array<i64: 1024, 1024>}, {pipeline_mode = #tpu.pipeline_mode<synchronous>, transform_indices = @transform_2, window_bounds = array<i64: 1, 1024>}, {pipeline_mode = #tpu.pipeline_mode<synchronous>, transform_indices = @transform_3, window_bounds = array<i64: 1024, 128>}, {pipeline_mode = #tpu.pipeline_mode<synchronous>, transform_indices = @transform_4, window_bounds = array<i64: 1, 128>}, {pipeline_mode = #tpu.pipeline_mode<synchronous>, transform_indices = @transform_5, window_bounds = array<i64: 2, 128>}]} {
    %c0 = arith.constant 0 : index
    %c0_0 = arith.constant 0 : index
    %0 = vector.load %arg1[%c0, %c0_0] : memref<2x1024xbf16, #tpu.memory_space<vmem>>, vector<2x1024xbf16>
    %c0_1 = arith.constant 0 : index
    %c0_2 = arith.constant 0 : index
    %1 = vector.load %arg2[%c0_1, %c0_2] : memref<1024x1024xbf16, #tpu.memory_space<vmem>>, vector<1024x1024xbf16>
    %cst = arith.constant dense<0.000000e+00> : vector<2x1024xf32>
    %2 = tpu.matmul %0, %1, %cst {dimension_numbers = #tpu.dot_dimension_numbers<[1], [0], [0], [1], [0, 0, 1, 1], [], []>} : vector<2x1024xbf16>, vector<1024x1024xbf16>, vector<2x1024xf32> -> vector<2x1024xf32>
    %c0_3 = arith.constant 0 : index
    %c0_4 = arith.constant 0 : index
    %3 = vector.load %arg3[%c0_3, %c0_4] : memref<1x1024xf32, #tpu.memory_space<vmem>>, vector<1x1024xf32>
    %4 = vector.broadcast %3 : vector<1x1024xf32> to vector<2x1024xf32>
    %5 = arith.addf %2, %4 : vector<2x1024xf32>
    %cst_5 = arith.constant 0.000000e+00 : f32
    %6 = vector.broadcast %cst_5 : f32 to vector<2x1024xf32>
    %7 = arith.maximumf %5, %6 : vector<2x1024xf32>
    %8 = arith.truncf %7 : vector<2x1024xf32> to vector<2x1024xbf16>
    %c0_6 = arith.constant 0 : index
    %c0_7 = arith.constant 0 : index
    %9 = vector.load %arg4[%c0_6, %c0_7] : memref<1024x128xbf16, #tpu.memory_space<vmem>>, vector<1024x128xbf16>
    %cst_8 = arith.constant dense<0.000000e+00> : vector<2x128xf32>
    %10 = tpu.matmul %8, %9, %cst_8 {dimension_numbers = #tpu.dot_dimension_numbers<[1], [0], [0], [1], [0, 0, 1, 1], [], []>} : vector<2x1024xbf16>, vector<1024x128xbf16>, vector<2x128xf32> -> vector<2x128xf32>
    %c0_9 = arith.constant 0 : index
    %c0_10 = arith.constant 0 : index
    %11 = vector.load %arg5[%c0_9, %c0_10] : memref<1x128xf32, #tpu.memory_space<vmem>>, vector<1x128xf32>
    %12 = vector.broadcast %11 : vector<1x128xf32> to vector<2x128xf32>
    %13 = arith.addf %10, %12 : vector<2x128xf32>
    %c0_11 = arith.constant 0 : index
    %c0_12 = arith.constant 0 : index
    %14 = vector.load %arg6[%c0_11, %c0_12] : memref<2x128xf32, #tpu.memory_space<vmem>>, vector<2x128xf32>
    tpu.vector_store %arg6[%c0_11, %c0_12], %13 {strides = array<i32>} : memref<2x128xf32, #tpu.memory_space<vmem>>, vector<2x128xf32>,
    return
  }
  func.func @transform_0(%arg0: i32) -> (i32, i32) {
    %c0_i32 = arith.constant 0 : i32
    %c0_i32_0 = arith.constant 0 : i32
    %c0_i32_1 = arith.constant 0 : i32
    return %c0_i32, %c0_i32_0 : i32, i32
  }
  func.func @transform_1(%arg0: i32) -> (i32, i32) {
    %c0_i32 = arith.constant 0 : i32
    %c0_i32_0 = arith.constant 0 : i32
    %c0_i32_1 = arith.constant 0 : i32
    return %c0_i32, %c0_i32_0 : i32, i32
  }
  func.func @transform_2(%arg0: i32) -> (i32, i32) {
    %c0_i32 = arith.constant 0 : i32
    %c0_i32_0 = arith.constant 0 : i32
    %c0_i32_1 = arith.constant 0 : i32
    return %c0_i32, %c0_i32_0 : i32, i32
  }
  func.func @transform_3(%arg0: i32) -> (i32, i32) {
    %c0_i32 = arith.constant 0 : i32
    %c0_i32_0 = arith.constant 0 : i32
    %c0_i32_1 = arith.constant 0 : i32
    return %c0_i32, %c0_i32_0 : i32, i32
  }
  func.func @transform_4(%arg0: i32) -> (i32, i32) {
    %c0_i32 = arith.constant 0 : i32
    %c0_i32_0 = arith.constant 0 : i32
    %c0_i32_1 = arith.constant 0 : i32
    return %c0_i32, %c0_i32_0 : i32, i32
  }
  func.func @transform_5(%arg0: i32) -> (i32, i32) {
    %c0_i32 = arith.constant 0 : i32
    %c0_i32_0 = arith.constant 0 : i32
    %c0_i32_1 = arith.constant 0 : i32
    return %c0_i32, %c0_i32_0 : i32, i32
  }
}

</mosaic_0001>

<llo_original>
// kernel: net_forward.3
$region0: #{net_forward.3}
  #allocation0 [shape = 'u32[]', space=smem, size = 0x4, offset = 0x4, fixed_abs, tag = 'smem constant byte address 0x4 - core index']
  #allocation1 [shape = 'u32[72,128]{1,0:T(1,128)}', space=vmem, size = 0x9000, scoped, tag = 'internal scratch']
  %s0 = inlined_call_operand.vmem [shape: bf16[4,288,25], index: 0, kind: input, shape index: {}]
  %s1 = inlined_call_operand.vmem [shape: bf16[25,128], index: 1, kind: input, shape index: {}]
  %s2 = inlined_call_operand.vmem [shape: f32[1,128], index: 2, kind: input, shape index: {}]
  %s3 = inlined_call_operand.vmem [shape: bf16[288,128], index: 3, kind: output, shape index: {}]
  %s4 = sld [smem:[#allocation0]]
  $region86: #{net_forward.3} parent=0
    _
  %s6 = ssub.s32 1, %s4
  %s7 = scalar_select 0, %s6, %s4
  $region1: #{net_forward.3} parent=0
    #allocation2 [shape = 'u8[294912]{0}', space=vmem, size = 0x48000, scoped, tag = 'input window, operand 0']
    loop: start=0, step=1, limit=4
    $region2: #{net_forward.3} parent=1 // loop_pre_header
      _
    $region3: #{net_forward.3} parent=1 // loop_header
      %s9 = sphi 0, %s13
      %p10 = scmp.ge.s32.totalorder %s9, 4
      %s19 = sphi 0, %s21
      %s22 = sphi 0, %s19
      %s23 = sphi 0, %s22
      %s39 = sphi 0, %s23
      %s43 = sphi 0, %s43
      %s45 = sphi 0, %s43
      %s46 = sphi 0, %s45
      %s60 = sphi 0, %s46
      %s64 = sphi 0, %s64
      %s66 = sphi 0, %s64
      %s67 = sphi 0, %s66
      %s81 = sphi 0, %s67
      %s87 = sphi 0, %s89
      %s90 = sphi 0, %s87
      %s91 = sphi 0, %s90
      %s107 = sphi 0, %s91
    $region4: #{net_forward.3} parent=1 // loop_header_branch
      %12 = sbr.rel (%p10) target = $region8
    $region5: #{net_forward.3} parent=1 // loop_body
      %s14 = ssub.s32 %s9, 1
      %s15 = ssub.s32 %s9, 2
      %s16 = sadd.s32 %s9, 1
      %s17 = ssub.s32 %s9, %s16
      %p18 = scmp.eq.s32.totalorder %s17, 0
      %s20 = sadd.s32 %s19, 1
      %s21 = scalar_select %p18, %s19, %s20
      %p24 = pneg %p18
      %p25 = scmp.eq.s32.totalorder %s9, 1
      %p26 = por %p24, %p25
      %p27 = scmp.ne.s32.totalorder %s19, %s22
      %p28 = scmp.eq.s32.totalorder %s9, 0
      %p29 = por %p27, %p28
      %p30 = scmp.ne.s32.totalorder %s19, %s22
      %p31 = scmp.eq.s32.totalorder %s14, 1
      %p32 = por %p30, %p31
      %p33 = scmp.ne.s32.totalorder %s22, %s23
      %p34 = scmp.eq.s32.totalorder %s14, 0
      %p35 = por %p33, %p34
      %p36 = scmp.ne.s32.totalorder %s22, %s23
      %p37 = scmp.eq.s32.totalorder %s15, 1
      %p38 = por %p36, %p37
      %p40 = scmp.ne.s32.totalorder %s23, %s39
      %p41 = scmp.eq.s32.totalorder %s15, 0
      %p42 = por %p40, %p41
      %s44 = sadd.s32 %s43, 1
      %p47 = scmp.eq.s32.totalorder %s9, 1
      %p48 = scmp.ne.s32.totalorder %s43, %s45
      %p49 = scmp.eq.s32.totalorder %s9, 0
      %p50 = por %p48, %p49
      %p51 = scmp.ne.s32.totalorder %s43, %s45
      %p52 = scmp.eq.s32.totalorder %s14, 1
      %p53 = por %p51, %p52
      %p54 = scmp.ne.s32.totalorder %s45, %s46
      %p55 = scmp.eq.s32.totalorder %s14, 0
      %p56 = por %p54, %p55
      %p57 = scmp.ne.s32.totalorder %s45, %s46
      %p58 = scmp.eq.s32.totalorder %s15, 1
      %p59 = por %p57, %p58
      %p61 = scmp.ne.s32.totalorder %s46, %s60
      %p62 = scmp.eq.s32.totalorder %s15, 0
      %p63 = por %p61, %p62
      %s65 = sadd.s32 %s64, 1
      %p68 = scmp.eq.s32.totalorder %s9, 1
      %p69 = scmp.ne.s32.totalorder %s64, %s66
      %p70 = scmp.eq.s32.totalorder %s9, 0
      %p71 = por %p69, %p70
      %p72 = scmp.ne.s32.totalorder %s64, %s66
      %p73 = scmp.eq.s32.totalorder %s14, 1
      %p74 = por %p72, %p73
      %p75 = scmp.ne.s32.totalorder %s66, %s67
      %p76 = scmp.eq.s32.totalorder %s14, 0
      %p77 = por %p75, %p76
      %p78 = scmp.ne.s32.totalorder %s66, %s67
      %p79 = scmp.eq.s32.totalorder %s15, 1
      %p80 = por %p78, %p79
      %p82 = scmp.ne.s32.totalorder %s67, %s81
      %p83 = scmp.eq.s32.totalorder %s15, 0
      %p84 = por %p82, %p83
      %s85 = ssub.s32 %s9, %s16
      %p86 = scmp.eq.s32.totalorder %s85, 0
      %s88 = sadd.s32 %s87, 1
      %s89 = scalar_select %p86, %s87, %s88
      %p92 = pneg %p86
      %p93 = scmp.eq.s32.totalorder %s9, 1
      %p94 = por %p92, %p93
      %p95 = scmp.ne.s32.totalorder %s87, %s90
      %p96 = scmp.eq.s32.totalorder %s9, 0
      %p97 = por %p95, %p96
      %p98 = scmp.ne.s32.totalorder %s87, %s90
      %p99 = scmp.eq.s32.totalorder %s14, 1
      %p100 = por %p98, %p99
      %p101 = scmp.ne.s32.totalorder %s90, %s91
      %p102 = scmp.eq.s32.totalorder %s14, 0
      %p103 = por %p101, %p102
      %p104 = scmp.ne.s32.totalorder %s90, %s91
      %p105 = scmp.eq.s32.totalorder %s15, 1
      %p106 = por %p104, %p105
      %p108 = scmp.ne.s32.totalorder %s91, %s107
      %p109 = scmp.eq.s32.totalorder %s15, 0
      %p110 = por %p108, %p109
      %p111 = scmp.le.s32.totalorder 1, %s9
      %p112 = scmp.lt.s32.totalorder %s9, 3
      %p113 = pnand %p111, %p112
      %p114 = pneg %p113
      // Predicated region
      $region9: #{net_forward.3} parent=5 // pred_check
        _
      $region10: #{net_forward.3} parent=5 // pred_check_branch
        %116 = sbr.rel (%p113) target = $region12
      $region11: #{net_forward.3} parent=5 // pred_region
        %s117 = ssub.s32 %s9, 1
        // Predicated region
        $region13: #{net_forward.3} parent=11 // pred_check
          %p118 = pneg %p56
        $region14: #{net_forward.3} parent=11 // pred_check_branch
          %120 = sbr.rel (%p118) target = $region16
        $region15: #{net_forward.3} parent=11 // pred_region
          _
        $region16: #{net_forward.3} parent=11 // pred_fallthru
          _
        // Predicated region
        $region17: #{net_forward.3} parent=11 // pred_check
          %p121 = pneg %p77
        $region18: #{net_forward.3} parent=11 // pred_check_branch
          %123 = sbr.rel (%p121) target = $region20
        $region19: #{net_forward.3} parent=11 // pred_region
          _
        $region20: #{net_forward.3} parent=11 // pred_fallthru
          _
      $region12: #{net_forward.3} parent=5 // pred_fallthru
        _
      %p124 = scmp.lt.s32.totalorder %s9, 2
      // Predicated region
      $region21: #{net_forward.3} parent=5 // pred_check
        %p125 = pneg %p124
      $region22: #{net_forward.3} parent=5 // pred_check_branch
        %127 = sbr.rel (%p125) target = $region24
      $region23: #{net_forward.3} parent=5 // pred_region
        // Predicated region
        $region25: #{net_forward.3} parent=23 // pred_check
          %p128 = pneg %p29
        $region26: #{net_forward.3} parent=23 // pred_check_branch
          %130 = sbr.rel (%p128) target = $region28
        $region27: #{net_forward.3} parent=23 // pred_region
          %s131 = sand.u32 %s19, 1
          %s132 = sand.u32 %s19, 1
          %s133 = smul.addr %s132, 288
          %s134 = scalar_lea.vmem [#allocation2], %s133
          %s135 = smul.u32 18, %s9
          %s136 = smul.addr %s135, 4
          %s137 = scalar_lea.vmem %s0, %s136
          // Predicated region
          $region29: #{net_forward.3} parent=27 // pred_check
            _
          $region30: #{net_forward.3} parent=27 // pred_check_branch
            %139 = sbr.rel (0) target = $region32
          $region31: #{net_forward.3} parent=27 // pred_region
            // Predicated region
            $region33: #{net_forward.3} parent=31 // pred_check
              _
            $region34: #{net_forward.3} parent=31 // pred_check_branch
              %141 = sbr.rel target = $region36
            $region35: #{net_forward.3} parent=31 // pred_region
              // Predicated region
              $region48: #{net_forward.3} parent=35 // pred_check
                _
              $region49: #{net_forward.3} parent=35 // pred_check_branch
                %299 = sbr.rel (0) target = $region51
              $region50: #{net_forward.3} parent=35 // pred_region
                loop: start=0, step=1, limit=1
                $region52: #{net_forward.3} parent=50 // loop_pre_header
                  _
                $region53: #{net_forward.3} parent=50 // loop_header
                  %s301 = sphi 0, %s305
                  %p302 = scmp.ge.s32.totalorder %s301, 1
                  %s306 = sphi %s137, %s137
                  %s307 = sphi %s134, %s134
                $region54: #{net_forward.3} parent=50 // loop_header_branch
                  %304 = sbr.rel (%p302) target = $region58
                $region55: #{net_forward.3} parent=50 // loop_body
                  _
                $region56: #{net_forward.3} parent=50 // loop_footer
                  %s305 = sadd.s32 1, %s301
                $region57: #{net_forward.3} parent=50 // loop_footer_branch
                  %300 = sbr.rel target = $region53
                $region58: #{net_forward.3} parent=50 // loop_exit
                  _
                %s309 = ssub.s32 16, 1
                loop: start=0, step=1, limit=1
                $region59: #{net_forward.3} parent=50 // loop_pre_header
                  _
                $region60: #{net_forward.3} parent=50 // loop_header
                  %s311 = sphi 0, %s315
                  %p312 = scmp.ge.s32.totalorder %s311, 1
                  %s316 = sphi %s137, %s137
                  %s317 = sphi %s134, %s134
                $region61: #{net_forward.3} parent=50 // loop_header_branch
                  %314 = sbr.rel (%p312) target = $region65
                $region62: #{net_forward.3} parent=50 // loop_body
                  %v318 = vld [vmem:[%s316] sm:%s309]
                  %319 = vst [vmem:[%s317] sm:%s309] %v318
                  %v320 = vld [vmem:[%s316 + $0x4] sm:%s309]
                  %321 = vst [vmem:[%s317 + $0x4] sm:%s309] %v320
                  %v322 = vld [vmem:[%s316 + $0x8] sm:%s309]
                  %323 = vst [vmem:[%s317 + $0x8] sm:%s309] %v322
                  %v324 = vld [vmem:[%s316 + $0xc] sm:%s309]
                  %325 = vst [vmem:[%s317 + $0xc] sm:%s309] %v324
                  %v326 = vld [vmem:[%s316 + $0x10] sm:%s309]
                  %327 = vst [vmem:[%s317 + $0x10] sm:%s309] %v326
                  %v328 = vld [vmem:[%s316 + $0x14] sm:%s309]
                  %329 = vst [vmem:[%s317 + $0x14] sm:%s309] %v328
                  %v330 = vld [vmem:[%s316 + $0x18] sm:%s309]
                  %331 = vst [vmem:[%s317 + $0x18] sm:%s309] %v330
                  %v332 = vld [vmem:[%s316 + $0x1c] sm:%s309]
                  %333 = vst [vmem:[%s317 + $0x1c] sm:%s309] %v332
                  %v334 = vld [vmem:[%s316 + $0x20] sm:%s309]
                  %335 = vst [vmem:[%s317 + $0x20] sm:%s309] %v334
                  %v336 = vld [vmem:[%s316 + $0x24] sm:%s309]
                  %337 = vst [vmem:[%s317 + $0x24] sm:%s309] %v336
                  %v338 = vld [vmem:[%s316 + $0x28] sm:%s309]
                  %339 = vst [vmem:[%s317 + $0x28] sm:%s309] %v338
                  %v340 = vld [vmem:[%s316 + $0x2c] sm:%s309]
                  %341 = vst [vmem:[%s317 + $0x2c] sm:%s309] %v340
                  %v342 = vld [vmem:[%s316 + $0x30] sm:%s309]
                  %343 = vst [vmem:[%s317 + $0x30] sm:%s309] %v342
                  %v344 = vld [vmem:[%s316 + $0x34] sm:%s309]
                  %345 = vst [vmem:[%s317 + $0x34] sm:%s309] %v344
                  %v346 = vld [vmem:[%s316 + $0x38] sm:%s309]
                  %347 = vst [vmem:[%s317 + $0x38] sm:%s309] %v346
                  %v348 = vld [vmem:[%s316 + $0x3c] sm:%s309]
                  %349 = vst [vmem:[%s317 + $0x3c] sm:%s309] %v348
                  %v350 = vld [vmem:[%s316 + $0x40] sm:%s309]
                  %351 = vst [vmem:[%s317 + $0x40] sm:%s309] %v350
                  %v352 = vld [vmem:[%s316 + $0x44] sm:%s309]
                  %353 = vst [vmem:[%s317 + $0x44] sm:%s309] %v352
                  %v354 = vld [vmem:[%s316 + $0x90] sm:%s309]
                  %355 = vst [vmem:[%s317 + $0x48] sm:%s309] %v354
                  %v356 = vld [vmem:[%s316 + $0x94] sm:%s309]
                  %357 = vst [vmem:[%s317 + $0x4c] sm:%s309] %v356
                  %v358 = vld [vmem:[%s316 + $0x98] sm:%s309]
                  %359 = vst [vmem:[%s317 + $0x50] sm:%s309] %v358
                  %v360 = vld [vmem:[%s316 + $0x9c] sm:%s309]
                  %361 = vst [vmem:[%s317 + $0x54] sm:%s309] %v360
                  %v362 = vld [vmem:[%s316 + $0xa0] sm:%s309]
                  %363 = vst [vmem:[%s317 + $0x58] sm:%s309] %v362
                  %v364 = vld [vmem:[%s316 + $0xa4] sm:%s309]
                  %365 = vst [vmem:[%s317 + $0x5c] sm:%s309] %v364
                  %v366 = vld [vmem:[%s316 + $0xa8] sm:%s309]
                  %367 = vst [vmem:[%s317 + $0x60] sm:%s309] %v366
                  %v368 = vld [vmem:[%s316 + $0xac] sm:%s309]
                  %369 = vst [vmem:[%s317 + $0x64] sm:%s309] %v368
                  %v370 = vld [vmem:[%s316 + $0xb0] sm:%s309]
                  %371 = vst [vmem:[%s317 + $0x68] sm:%s309] %v370
                  %v372 = vld [vmem:[%s316 + $0xb4] sm:%s309]
                  %373 = vst [vmem:[%s317 + $0x6c] sm:%s309] %v372
                  %v374 = vld [vmem:[%s316 + $0xb8] sm:%s309]
                  %375 = vst [vmem:[%s317 + $0x70] sm:%s309] %v374
                  %v376 = vld [vmem:[%s316 + $0xbc] sm:%s309]
                  %377 = vst [vmem:[%s317 + $0x74] sm:%s309] %v376
                  %v378 = vld [vmem:[%s316 + $0xc0] sm:%s309]
                  %379 = vst [vmem:[%s317 + $0x78] sm:%s309] %v378
                  %v380 = vld [vmem:[%s316 + $0xc4] sm:%s309]
                  %381 = vst [vmem:[%s317 + $0x7c] sm:%s309] %v380
                  %v382 = vld [vmem:[%s316 + $0xc8] sm:%s309]
                  %383 = vst [vmem:[%s317 + $0x80] sm:%s309] %v382
                  %v384 = vld [vmem:[%s316 + $0xcc] sm:%s309]
                  %385 = vst [vmem:[%s317 + $0x84] sm:%s309] %v384
                  %v386 = vld [vmem:[%s316 + $0xd0] sm:%s309]
                  %387 = vst [vmem:[%s317 + $0x88] sm:%s309] %v386
                  %v388 = vld [vmem:[%s316 + $0xd4] sm:%s309]
                  %389 = vst [vmem:[%s317 + $0x8c] sm:%s309] %v388
                  %v390 = vld [vmem:[%s316 + $0x120] sm:%s309]
                  %391 = vst [vmem:[%s317 + $0x90] sm:%s309] %v390
                  %v392 = vld [vmem:[%s316 + $0x124] sm:%s309]
                  %393 = vst [vmem:[%s317 + $0x94] sm:%s309] %v392
                  %v394 = vld [vmem:[%s316 + $0x128] sm:%s309]
                  %395 = vst [vmem:[%s317 + $0x98] sm:%s309] %v394
                  %v396 = vld [vmem:[%s316 + $0x12c] sm:%s309]
                  %397 = vst [vmem:[%s317 + $0x9c] sm:%s309] %v396
                  %v398 = vld [vmem:[%s316 + $0x130] sm:%s309]
                  %399 = vst [vmem:[%s317 + $0xa0] sm:%s309] %v398
                  %v400 = vld [vmem:[%s316 + $0x134] sm:%s309]
                  %401 = vst [vmem:[%s317 + $0xa4] sm:%s309] %v400
                  %v402 = vld [vmem:[%s316 + $0x138] sm:%s309]
                  %403 = vst [vmem:[%s317 + $0xa8] sm:%s309] %v402
                  %v404 = vld [vmem:[%s316 + $0x13c] sm:%s309]
                  %405 = vst [vmem:[%s317 + $0xac] sm:%s309] %v404
                  %v406 = vld [vmem:[%s316 + $0x140] sm:%s309]
                  %407 = vst [vmem:[%s317 + $0xb0] sm:%s309] %v406
                  %v408 = vld [vmem:[%s316 + $0x144] sm:%s309]
                  %409 = vst [vmem:[%s317 + $0xb4] sm:%s309] %v408
                  %v410 = vld [vmem:[%s316 + $0x148] sm:%s309]
                  %411 = vst [vmem:[%s317 + $0xb8] sm:%s309] %v410
                  %v412 = vld [vmem:[%s316 + $0x14c] sm:%s309]
                  %413 = vst [vmem:[%s317 + $0xbc] sm:%s309] %v412
                  %v414 = vld [vmem:[%s316 + $0x150] sm:%s309]
                  %415 = vst [vmem:[%s317 + $0xc0] sm:%s309] %v414
                  %v416 = vld [vmem:[%s316 + $0x154] sm:%s309]
                  %417 = vst [vmem:[%s317 + $0xc4] sm:%s309] %v416
                  %v418 = vld [vmem:[%s316 + $0x158] sm:%s309]
                  %419 = vst [vmem:[%s317 + $0xc8] sm:%s309] %v418
                  %v420 = vld [vmem:[%s316 + $0x15c] sm:%s309]
                  %421 = vst [vmem:[%s317 + $0xcc] sm:%s309] %v420
                  %v422 = vld [vmem:[%s316 + $0x160] sm:%s309]
                  %423 = vst [vmem:[%s317 + $0xd0] sm:%s309] %v422
                  %v424 = vld [vmem:[%s316 + $0x164] sm:%s309]
                  %425 = vst [vmem:[%s317 + $0xd4] sm:%s309] %v424
                  %v426 = vld [vmem:[%s316 + $0x1b0] sm:%s309]
                  %427 = vst [vmem:[%s317 + $0xd8] sm:%s309] %v426
                  %v428 = vld [vmem:[%s316 + $0x1b4] sm:%s309]
                  %429 = vst [vmem:[%s317 + $0xdc] sm:%s309] %v428
                  %v430 = vld [vmem:[%s316 + $0x1b8] sm:%s309]
                  %431 = vst [vmem:[%s317 + $0xe0] sm:%s309] %v430
                  %v432 = vld [vmem:[%s316 + $0x1bc] sm:%s309]
                  %433 = vst [vmem:[%s317 + $0xe4] sm:%s309] %v432
                  %v434 = vld [vmem:[%s316 + $0x1c0] sm:%s309]
                  %435 = vst [vmem:[%s317 + $0xe8] sm:%s309] %v434
                  %v436 = vld [vmem:[%s316 + $0x1c4] sm:%s309]
                  %437 = vst [vmem:[%s317 + $0xec] sm:%s309] %v436
                  %v438 = vld [vmem:[%s316 + $0x1c8] sm:%s309]
                  %439 = vst [vmem:[%s317 + $0xf0] sm:%s309] %v438
                  %v440 = vld [vmem:[%s316 + $0x1cc] sm:%s309]
                  %441 = vst [vmem:[%s317 + $0xf4] sm:%s309] %v440
                  %v442 = vld [vmem:[%s316 + $0x1d0] sm:%s309]
                  %443 = vst [vmem:[%s317 + $0xf8] sm:%s309] %v442
                  %v444 = vld [vmem:[%s316 + $0x1d4] sm:%s309]
                  %445 = vst [vmem:[%s317 + $0xfc] sm:%s309] %v444
                  %v446 = vld [vmem:[%s316 + $0x1d8] sm:%s309]
                  %447 = vst [vmem:[%s317 + $0x100] sm:%s309] %v446
                  %v448 = vld [vmem:[%s316 + $0x1dc] sm:%s309]
                  %449 = vst [vmem:[%s317 + $0x104] sm:%s309] %v448
                  %v450 = vld [vmem:[%s316 + $0x1e0] sm:%s309]
                  %451 = vst [vmem:[%s317 + $0x108] sm:%s309] %v450
                  %v452 = vld [vmem:[%s316 + $0x1e4] sm:%s309]
                  %453 = vst [vmem:[%s317 + $0x10c] sm:%s309] %v452
                  %v454 = vld [vmem:[%s316 + $0x1e8] sm:%s309]
                  %455 = vst [vmem:[%s317 + $0x110] sm:%s309] %v454
                  %v456 = vld [vmem:[%s316 + $0x1ec] sm:%s309]
                  %457 = vst [vmem:[%s317 + $0x114] sm:%s309] %v456
                  %v458 = vld [vmem:[%s316 + $0x1f0] sm:%s309]
                  %459 = vst [vmem:[%s317 + $0x118] sm:%s309] %v458
                  %v460 = vld [vmem:[%s316 + $0x1f4] sm:%s309]
                  %461 = vst [vmem:[%s317 + $0x11c] sm:%s309] %v460
                $region63: #{net_forward.3} parent=50 // loop_footer
                  %s315 = sadd.s32 1, %s311
                $region64: #{net_forward.3} parent=50 // loop_footer_branch
                  %310 = sbr.rel target = $region60
                $region65: #{net_forward.3} parent=50 // loop_exit
                  _
              $region51: #{net_forward.3} parent=35 // pred_fallthru
                _
            $region36: #{net_forward.3} parent=31 // pred_fallthru
              _
            // Predicated region
            $region37: #{net_forward.3} parent=31 // pred_check
              _
            $region38: #{net_forward.3} parent=31 // pred_check_branch
              %143 = sbr.rel (0) target = $region40
            $region39: #{net_forward.3} parent=31 // pred_region
              %s145 = ssub.s32 16, 1
              loop: start=0, step=1, limit=1
              $region41: #{net_forward.3} parent=39 // loop_pre_header
                _
              $region42: #{net_forward.3} parent=39 // loop_header
                %s147 = sphi 0, %s151
                %p148 = scmp.ge.s32.totalorder %s147, 1
                %s152 = sphi %s137, %s137
                %s153 = sphi %s134, %s134
              $region43: #{net_forward.3} parent=39 // loop_header_branch
                %150 = sbr.rel (%p148) target = $region47
              $region44: #{net_forward.3} parent=39 // loop_body
                %v154 = vld [vmem:[%s152] sm:%s145]
                %155 = vst [vmem:[%s153] sm:%s145] %v154
                %v156 = vld [vmem:[%s152 + $0x4] sm:%s145]
                %157 = vst [vmem:[%s153 + $0x4] sm:%s145] %v156
                %v158 = vld [vmem:[%s152 + $0x8] sm:%s145]
                %159 = vst [vmem:[%s153 + $0x8] sm:%s145] %v158
                %v160 = vld [vmem:[%s152 + $0xc] sm:%s145]
                %161 = vst [vmem:[%s153 + $0xc] sm:%s145] %v160
                %v162 = vld [vmem:[%s152 + $0x10] sm:%s145]
                %163 = vst [vmem:[%s153 + $0x10] sm:%s145] %v162
                %v164 = vld [vmem:[%s152 + $0x14] sm:%s145]
                %165 = vst [vmem:[%s153 + $0x14] sm:%s145] %v164
                %v166 = vld [vmem:[%s152 + $0x18] sm:%s145]
                %167 = vst [vmem:[%s153 + $0x18] sm:%s145] %v166
                %v168 = vld [vmem:[%s152 + $0x1c] sm:%s145]
                %169 = vst [vmem:[%s153 + $0x1c] sm:%s145] %v168
                %v170 = vld [vmem:[%s152 + $0x20] sm:%s145]
                %171 = vst [vmem:[%s153 + $0x20] sm:%s145] %v170
                %v172 = vld [vmem:[%s152 + $0x24] sm:%s145]
                %173 = vst [vmem:[%s153 + $0x24] sm:%s145] %v172
                %v174 = vld [vmem:[%s152 + $0x28] sm:%s145]
                %175 = vst [vmem:[%s153 + $0x28] sm:%s145] %v174
                %v176 = vld [vmem:[%s152 + $0x2c] sm:%s145]
                %177 = vst [vmem:[%s153 + $0x2c] sm:%s145] %v176
                %v178 = vld [vmem:[%s152 + $0x30] sm:%s145]
                %179 = vst [vmem:[%s153 + $0x30] sm:%s145] %v178
                %v180 = vld [vmem:[%s152 + $0x34] sm:%s145]
                %181 = vst [vmem:[%s153 + $0x34] sm:%s145] %v180
                %v182 = vld [vmem:[%s152 + $0x38] sm:%s145]
                %183 = vst [vmem:[%s153 + $0x38] sm:%s145] %v182
                %v184 = vld [vmem:[%s152 + $0x3c] sm:%s145]
                %185 = vst [vmem:[%s153 + $0x3c] sm:%s145] %v184
                %v186 = vld [vmem:[%s152 + $0x40] sm:%s145]
                %187 = vst [vmem:[%s153 + $0x40] sm:%s145] %v186
                %v188 = vld [vmem:[%s152 + $0x44] sm:%s145]
                %189 = vst [vmem:[%s153 + $0x44] sm:%s145] %v188
                %v190 = vld [vmem:[%s152 + $0x90] sm:%s145]
                %191 = vst [vmem:[%s153 + $0x48] sm:%s145] %v190
                %v192 = vld [vmem:[%s152 + $0x94] sm:%s145]
                %193 = vst [vmem:[%s153 + $0x4c] sm:%s145] %v192
                %v194 = vld [vmem:[%s152 + $0x98] sm:%s145]
                %195 = vst [vmem:[%s153 + $0x50] sm:%s145] %v194
                %v196 = vld [vmem:[%s152 + $0x9c] sm:%s145]
                %197 = vst [vmem:[%s153 + $0x54] sm:%s145] %v196
                %v198 = vld [vmem:[%s152 + $0xa0] sm:%s145]
                %199 = vst [vmem:[%s153 + $0x58] sm:%s145] %v198
                %v200 = vld [vmem:[%s152 + $0xa4] sm:%s145]
                %201 = vst [vmem:[%s153 + $0x5c] sm:%s145] %v200
                %v202 = vld [vmem:[%s152 + $0xa8] sm:%s145]
                %203 = vst [vmem:[%s153 + $0x60] sm:%s145] %v202
                %v204 = vld [vmem:[%s152 + $0xac] sm:%s145]
                %205 = vst [vmem:[%s153 + $0x64] sm:%s145] %v204
                %v206 = vld [vmem:[%s152 + $0xb0] sm:%s145]
                %207 = vst [vmem:[%s153 + $0x68] sm:%s145] %v206
                %v208 = vld [vmem:[%s152 + $0xb4] sm:%s145]
                %209 = vst [vmem:[%s153 + $0x6c] sm:%s145] %v208
                %v210 = vld [vmem:[%s152 + $0xb8] sm:%s145]
                %211 = vst [vmem:[%s153 + $0x70] sm:%s145] %v210
                %v212 = vld [vmem:[%s152 + $0xbc] sm:%s145]
                %213 = vst [vmem:[%s153 + $0x74] sm:%s145] %v212
                %v214 = vld [vmem:[%s152 + $0xc0] sm:%s145]
                %215 = vst [vmem:[%s153 + $0x78] sm:%s145] %v214
                %v216 = vld [vmem:[%s152 + $0xc4] sm:%s145]
                %217 = vst [vmem:[%s153 + $0x7c] sm:%s145] %v216
                %v218 = vld [vmem:[%s152 + $0xc8] sm:%s145]
                %219 = vst [vmem:[%s153 + $0x80] sm:%s145] %v218
                %v220 = vld [vmem:[%s152 + $0xcc] sm:%s145]
                %221 = vst [vmem:[%s153 + $0x84] sm:%s145] %v220
                %v222 = vld [vmem:[%s152 + $0xd0] sm:%s145]
                %223 = vst [vmem:[%s153 + $0x88] sm:%s145] %v222
                %v224 = vld [vmem:[%s152 + $0xd4] sm:%s145]
                %225 = vst [vmem:[%s153 + $0x8c] sm:%s145] %v224
                %v226 = vld [vmem:[%s152 + $0x120] sm:%s145]
                %227 = vst [vmem:[%s153 + $0x90] sm:%s145] %v226
                %v228 = vld [vmem:[%s152 + $0x124] sm:%s145]
                %229 = vst [vmem:[%s153 + $0x94] sm:%s145] %v228
                %v230 = vld [vmem:[%s152 + $0x128] sm:%s145]
                %231 = vst [vmem:[%s153 + $0x98] sm:%s145] %v230
                %v232 = vld [vmem:[%s152 + $0x12c] sm:%s145]
                %233 = vst [vmem:[%s153 + $0x9c] sm:%s145] %v232
                %v234 = vld [vmem:[%s152 + $0x130] sm:%s145]
                %235 = vst [vmem:[%s153 + $0xa0] sm:%s145] %v234
                %v236 = vld [vmem:[%s152 + $0x134] sm:%s145]
                %237 = vst [vmem:[%s153 + $0xa4] sm:%s145] %v236
                %v238 = vld [vmem:[%s152 + $0x138] sm:%s145]
                %239 = vst [vmem:[%s153 + $0xa8] sm:%s145] %v238
                %v240 = vld [vmem:[%s152 + $0x13c] sm:%s145]
                %241 = vst [vmem:[%s153 + $0xac] sm:%s145] %v240
                %v242 = vld [vmem:[%s152 + $0x140] sm:%s145]
                %243 = vst [vmem:[%s153 + $0xb0] sm:%s145] %v242
                %v244 = vld [vmem:[%s152 + $0x144] sm:%s145]
                %245 = vst [vmem:[%s153 + $0xb4] sm:%s145] %v244
                %v246 = vld [vmem:[%s152 + $0x148] sm:%s145]
                %247 = vst [vmem:[%s153 + $0xb8] sm:%s145] %v246
                %v248 = vld [vmem:[%s152 + $0x14c] sm:%s145]
                %249 = vst [vmem:[%s153 + $0xbc] sm:%s145] %v248
                %v250 = vld [vmem:[%s152 + $0x150] sm:%s145]
                %251 = vst [vmem:[%s153 + $0xc0] sm:%s145] %v250
                %v252 = vld [vmem:[%s152 + $0x154] sm:%s145]
                %253 = vst [vmem:[%s153 + $0xc4] sm:%s145] %v252
                %v254 = vld [vmem:[%s152 + $0x158] sm:%s145]
                %255 = vst [vmem:[%s153 + $0xc8] sm:%s145] %v254
                %v256 = vld [vmem:[%s152 + $0x15c] sm:%s145]
                %257 = vst [vmem:[%s153 + $0xcc] sm:%s145] %v256
                %v258 = vld [vmem:[%s152 + $0x160] sm:%s145]
                %259 = vst [vmem:[%s153 + $0xd0] sm:%s145] %v258
                %v260 = vld [vmem:[%s152 + $0x164] sm:%s145]
                %261 = vst [vmem:[%s153 + $0xd4] sm:%s145] %v260
                %v262 = vld [vmem:[%s152 + $0x1b0] sm:%s145]
                %263 = vst [vmem:[%s153 + $0xd8] sm:%s145] %v262
                %v264 = vld [vmem:[%s152 + $0x1b4] sm:%s145]
                %265 = vst [vmem:[%s153 + $0xdc] sm:%s145] %v264
                %v266 = vld [vmem:[%s152 + $0x1b8] sm:%s145]
                %267 = vst [vmem:[%s153 + $0xe0] sm:%s145] %v266
                %v268 = vld [vmem:[%s152 + $0x1bc] sm:%s145]
                %269 = vst [vmem:[%s153 + $0xe4] sm:%s145] %v268
                %v270 = vld [vmem:[%s152 + $0x1c0] sm:%s145]
                %271 = vst [vmem:[%s153 + $0xe8] sm:%s145] %v270
                %v272 = vld [vmem:[%s152 + $0x1c4] sm:%s145]
                %273 = vst [vmem:[%s153 + $0xec] sm:%s145] %v272
                %v274 = vld [vmem:[%s152 + $0x1c8] sm:%s145]
                %275 = vst [vmem:[%s153 + $0xf0] sm:%s145] %v274
                %v276 = vld [vmem:[%s152 + $0x1cc] sm:%s145]
                %277 = vst [vmem:[%s153 + $0xf4] sm:%s145] %v276
                %v278 = vld [vmem:[%s152 + $0x1d0] sm:%s145]
                %279 = vst [vmem:[%s153 + $0xf8] sm:%s145] %v278
                %v280 = vld [vmem:[%s152 + $0x1d4] sm:%s145]
                %281 = vst [vmem:[%s153 + $0xfc] sm:%s145] %v280
                %v282 = vld [vmem:[%s152 + $0x1d8] sm:%s145]
                %283 = vst [vmem:[%s153 + $0x100] sm:%s145] %v282
                %v284 = vld [vmem:[%s152 + $0x1dc] sm:%s145]
                %285 = vst [vmem:[%s153 + $0x104] sm:%s145] %v284
                %v286 = vld [vmem:[%s152 + $0x1e0] sm:%s145]
                %287 = vst [vmem:[%s153 + $0x108] sm:%s145] %v286
                %v288 = vld [vmem:[%s152 + $0x1e4] sm:%s145]
                %289 = vst [vmem:[%s153 + $0x10c] sm:%s145] %v288
                %v290 = vld [vmem:[%s152 + $0x1e8] sm:%s145]
                %291 = vst [vmem:[%s153 + $0x110] sm:%s145] %v290
                %v292 = vld [vmem:[%s152 + $0x1ec] sm:%s145]
                %293 = vst [vmem:[%s153 + $0x114] sm:%s145] %v292
                %v294 = vld [vmem:[%s152 + $0x1f0] sm:%s145]
                %295 = vst [vmem:[%s153 + $0x118] sm:%s145] %v294
                %v296 = vld [vmem:[%s152 + $0x1f4] sm:%s145]
                %297 = vst [vmem:[%s153 + $0x11c] sm:%s145] %v296
              $region45: #{net_forward.3} parent=39 // loop_footer
                %s151 = sadd.s32 1, %s147
              $region46: #{net_forward.3} parent=39 // loop_footer_branch
                %146 = sbr.rel target = $region42
              $region47: #{net_forward.3} parent=39 // loop_exit
                _
            $region40: #{net_forward.3} parent=31 // pred_fallthru
              _
          $region32: #{net_forward.3} parent=27 // pred_fallthru
            _
          %462 = vnop
        $region28: #{net_forward.3} parent=23 // pred_fallthru
          _
      $region24: #{net_forward.3} parent=5 // pred_fallthru
        _
      %p463 = scmp.le.s32.totalorder 1, %s9
      %p464 = scmp.lt.s32.totalorder %s9, 3
      %p465 = pnand %p463, %p464
      %p466 = pneg %p465
      // Predicated region
      $region66: #{net_forward.3} parent=5 // pred_check
        _
      $region67: #{net_forward.3} parent=5 // pred_check_branch
        %468 = sbr.rel (%p465) target = $region69
      $region68: #{net_forward.3} parent=5 // pred_region
        %s469 = ssub.s32 %s9, 1
        %s470 = sand.u32 %s22, 1
        %s471 = sand.u32 %s22, 1
        %s472 = smul.addr %s471, 288
        %s473 = scalar_lea.vmem [#allocation2], %s472
        // Predicated region
        $region70: #{net_forward.3} parent=68 // pred_check
          %p474 = pneg %p35
        $region71: #{net_forward.3} parent=68 // pred_check_branch
          %476 = sbr.rel (%p474) target = $region73
        $region72: #{net_forward.3} parent=68 // pred_region
          _
        $region73: #{net_forward.3} parent=68 // pred_fallthru
          _
        %s477 = sand.u32 %s22, 1
        %s478 = sand.u32 %s22, 1
        %s479 = smul.addr %s478, 288
        %s480 = scalar_lea.vmem [#allocation2], %s479
        %p481 = pneg %p35
        %p482 = pneg %p32
        %p483 = pneg %p56
        %p484 = pneg %p53
        %p485 = pneg %p77
        %p486 = pneg %p74
        %p487 = pneg %p103
        %p488 = pneg %p100
        %s489 = smul.u32 18, %s14
        %p490 = scmp.lt.s32.totalorder %s489, 35
        %s491 = scalar_select %p490, %s489, 35
        %s492 = smul.addr %s491, 4
        %s493 = scalar_lea.vmem %s3, %s492
        %s494 = smul.u32 18, %s14
        %s495 = smul.u32 18, %s14
        %p496 = scmp.lt.s32.totalorder %s495, 35
        %s497 = scalar_select %p496, %s495, 35
        %s498 = smul.addr %s497, 4
        %s499 = scalar_lea.vmem %s3, %s498
        %s500 = smul.u32 18, %s14
        %v502 = vld [vmem:[%s1] sm:$0xf]
        %v503 = vld [vmem:[%s1 + $0x4] sm:$0xf]
        %v504 = vld [vmem:[%s1 + $0x8] sm:$0xf]
        %v505 = vld [vmem:[%s1 + $0xc] sm:$0x1]
        %v506 = vld [vmem:[%s473] sm:$0xf]
        %v507 = vld [vmem:[%s473 + $0x4] sm:$0xf]
        %v508 = vld [vmem:[%s473 + $0x8] sm:$0xf]
        %v509 = vld [vmem:[%s473 + $0xc] sm:$0xf]
        %v510 = vld [vmem:[%s473 + $0x10] sm:$0xf]
        %v511 = vld [vmem:[%s473 + $0x14] sm:$0xf]
        %v512 = vld [vmem:[%s473 + $0x18] sm:$0xf]
        %v513 = vld [vmem:[%s473 + $0x1c] sm:$0xf]
        %v514 = vld [vmem:[%s473 + $0x20] sm:$0xf]
        %v515 = vld [vmem:[%s473 + $0x24] sm:$0xf]
        %v516 = vld [vmem:[%s473 + $0x28] sm:$0xf]
        %v517 = vld [vmem:[%s473 + $0x2c] sm:$0xf]
        %v518 = vld [vmem:[%s473 + $0x30] sm:$0xf]
        %v519 = vld [vmem:[%s473 + $0x34] sm:$0xf]
        %v520 = vld [vmem:[%s473 + $0x38] sm:$0xf]
        %v521 = vld [vmem:[%s473 + $0x3c] sm:$0xf]
        %v522 = vld [vmem:[%s473 + $0x40] sm:$0xf]
        %v523 = vld [vmem:[%s473 + $0x44] sm:$0xf]
        %v542 = vunpack.c.l.b16 %v506
        %v543 = vunpack.c.l.b16 %v507
        %v544 = vunpack.c.l.b16 %v508
        %v545 = vunpack.c.l.b16 %v509
        %v546 = vunpack.c.l.b16 %v510
        %v547 = vunpack.c.l.b16 %v511
        %v548 = vunpack.c.l.b16 %v512
        %v549 = vunpack.c.l.b16 %v513
        %v550 = vunpack.c.l.b16 %v514
        %v551 = vunpack.c.l.b16 %v515
        %v552 = vunpack.c.l.b16 %v516
        %v553 = vunpack.c.l.b16 %v517
        %v554 = vunpack.c.l.b16 %v518
        %v555 = vunpack.c.l.b16 %v519
        %v556 = vunpack.c.l.b16 %v520
        %v557 = vunpack.c.l.b16 %v521
        %v558 = vunpack.c.l.b16 %v522
        %v559 = vunpack.c.l.b16 %v523
        %v560 = vpack.c.b16 %v543, %v542
        %v561 = vpack.c.b16 %v545, %v544
        %v562 = vpack.c.b16 %v547, %v546
        %v563 = vpack.c.b16 %v549, %v548
        %v564 = vpack.c.b16 %v551, %v550
        %v565 = vpack.c.b16 %v553, %v552
        %v566 = vpack.c.b16 %v555, %v554
        %v567 = vpack.c.b16 %v557, %v556
        %v568 = vpack.c.b16 %v559, %v558
        %v573 = vunpack.c.l.b16 %v502
        %v574 = vunpack.c.l.b16 %v503
        %v575 = vunpack.c.l.b16 %v504
        %v576 = vunpack.c.l.b16 %v505
        %v577 = vpack.c.b16 %v574, %v573
        %v578 = vpack.c.b16 %v576, %v575
        %vm580 = vcmask 203776
        %v582 = vsel %vm580, %v560, 0
        %v585 = vsel %vm580, %v561, 0
        %v588 = vsel %vm580, %v562, 0
        %v591 = vsel %vm580, %v563, 0
        %v594 = vsel %vm580, %v564, 0
        %v597 = vsel %vm580, %v565, 0
        %v600 = vsel %vm580, %v566, 0
        %v603 = vsel %vm580, %v567, 0
        %v606 = vsel %vm580, %v568, 0
        %vm608 = vcmask 1043456
        %vm609 = vcmask 1044480
        %v610 = vsel %vm608, 4294967295, 65535
        %v611 = vsel %vm609, %v610, 0
        %v613 = vand.u32 %v578, %v611
        %615 = vmatpush.bf16.msra.mxu0 0
        %616 = vmatpush.bf16.msra.mxu0 0
        %617 = vmatpush.bf16.msra.mxu0 0
        %618 = vmatpush.bf16.msra.mxu0 0
        %619 = vmatpush.bf16.msra.mxu0 0
        %620 = vmatpush.bf16.msra.mxu0 0
        %621 = vmatpush.bf16.msra.mxu0 %v613
        %622 = vmatpush.bf16.msra.mxu0 %v577
        %623 = vmatmul.bf16.gmra.mxu0 %v582
        %v624 = vpop.f32.mrf.mxu0
        %v625 = vadd.f32 0.0, %v624
        %v626 = vpop.f32.mrf.mxu0
        %v627 = vadd.f32 0.0, %v626
        %628 = vmatmul.bf16.gmra.mxu0 %v585
        %v629 = vpop.f32.mrf.mxu0
        %v630 = vadd.f32 0.0, %v629
        %v631 = vpop.f32.mrf.mxu0
        %v632 = vadd.f32 0.0, %v631
        %633 = vmatmul.bf16.gmra.mxu0 %v588
        %v634 = vpop.f32.mrf.mxu0
        %v635 = vadd.f32 0.0, %v634
        %v636 = vpop.f32.mrf.mxu0
        %v637 = vadd.f32 0.0, %v636
        %638 = vmatmul.bf16.gmra.mxu0 %v591
        %v639 = vpop.f32.mrf.mxu0
        %v640 = vadd.f32 0.0, %v639
        %v641 = vpop.f32.mrf.mxu0
        %v642 = vadd.f32 0.0, %v641
        %643 = vmatmul.bf16.gmra.mxu0 %v594
        %v644 = vpop.f32.mrf.mxu0
        %v645 = vadd.f32 0.0, %v644
        %v646 = vpop.f32.mrf.mxu0
        %v647 = vadd.f32 0.0, %v646
        %648 = vmatmul.bf16.gmra.mxu0 %v597
        %v649 = vpop.f32.mrf.mxu0
        %v650 = vadd.f32 0.0, %v649
        %v651 = vpop.f32.mrf.mxu0
        %v652 = vadd.f32 0.0, %v651
        %653 = vmatmul.bf16.gmra.mxu0 %v600
        %v654 = vpop.f32.mrf.mxu0
        %v655 = vadd.f32 0.0, %v654
        %v656 = vpop.f32.mrf.mxu0
        %v657 = vadd.f32 0.0, %v656
        %658 = vmatmul.bf16.gmra.mxu0 %v603
        %v659 = vpop.f32.mrf.mxu0
        %v660 = vadd.f32 0.0, %v659
        %v661 = vpop.f32.mrf.mxu0
        %v662 = vadd.f32 0.0, %v661
        %663 = vmatmul.bf16.gmra.mxu0 %v606
        %v664 = vpop.f32.mrf.mxu0
        %v665 = vadd.f32 0.0, %v664
        %v666 = vpop.f32.mrf.mxu0
        %v667 = vadd.f32 0.0, %v666
        %668 = vdwg.mxu0
        %s669 = scalar_lea.vmem %s473, 72 [#allocation2]
        %v670 = vld [vmem:[%s669] sm:$0xf]
        %v671 = vld [vmem:[%s669 + $0x4] sm:$0xf]
        %v672 = vld [vmem:[%s669 + $0x8] sm:$0xf]
        %v673 = vld [vmem:[%s669 + $0xc] sm:$0xf]
        %v674 = vld [vmem:[%s669 + $0x10] sm:$0xf]
        %v675 = vld [vmem:[%s669 + $0x14] sm:$0xf]
        %v676 = vld [vmem:[%s669 + $0x18] sm:$0xf]
        %v677 = vld [vmem:[%s669 + $0x1c] sm:$0xf]
        %v678 = vld [vmem:[%s669 + $0x20] sm:$0xf]
        %v679 = vld [vmem:[%s669 + $0x24] sm:$0xf]
        %v680 = vld [vmem:[%s669 + $0x28] sm:$0xf]
        %v681 = vld [vmem:[%s669 + $0x2c] sm:$0xf]
        %v682 = vld [vmem:[%s669 + $0x30] sm:$0xf]
        %v683 = vld [vmem:[%s669 + $0x34] sm:$0xf]
        %v684 = vld [vmem:[%s669 + $0x38] sm:$0xf]
        %v685 = vld [vmem:[%s669 + $0x3c] sm:$0xf]
        %v686 = vld [vmem:[%s669 + $0x40] sm:$0xf]
        %v687 = vld [vmem:[%s669 + $0x44] sm:$0xf]
        %v706 = vunpack.c.l.b16 %v670
        %v707 = vunpack.c.l.b16 %v671
        %v708 = vunpack.c.l.b16 %v672
        %v709 = vunpack.c.l.b16 %v673
        %v710 = vunpack.c.l.b16 %v674
        %v711 = vunpack.c.l.b16 %v675
        %v712 = vunpack.c.l.b16 %v676
        %v713 = vunpack.c.l.b16 %v677
        %v714 = vunpack.c.l.b16 %v678
        %v715 = vunpack.c.l.b16 %v679
        %v716 = vunpack.c.l.b16 %v680
        %v717 = vunpack.c.l.b16 %v681
        %v718 = vunpack.c.l.b16 %v682
        %v719 = vunpack.c.l.b16 %v683
        %v720 = vunpack.c.l.b16 %v684
        %v721 = vunpack.c.l.b16 %v685
        %v722 = vunpack.c.l.b16 %v686
        %v723 = vunpack.c.l.b16 %v687
        %v724 = vpack.c.b16 %v707, %v706
        %v725 = vpack.c.b16 %v709, %v708
        %v726 = vpack.c.b16 %v711, %v710
        %v727 = vpack.c.b16 %v713, %v712
        %v728 = vpack.c.b16 %v715, %v714
        %v729 = vpack.c.b16 %v717, %v716
        %v730 = vpack.c.b16 %v719, %v718
        %v731 = vpack.c.b16 %v721, %v720
        %v732 = vpack.c.b16 %v723, %v722
        %v734 = vsel %vm580, %v724, 0
        %v737 = vsel %vm580, %v725, 0
        %v740 = vsel %vm580, %v726, 0
        %v743 = vsel %vm580, %v727, 0
        %v746 = vsel %vm580, %v728, 0
        %v749 = vsel %vm580, %v729, 0
        %v752 = vsel %vm580, %v730, 0
        %v755 = vsel %vm580, %v731, 0
        %v758 = vsel %vm580, %v732, 0
        %760 = vmatpush.bf16.msra.mxu0 0
        %761 = vmatpush.bf16.msra.mxu0 0
        %762 = vmatpush.bf16.msra.mxu0 0
        %763 = vmatpush.bf16.msra.mxu0 0
        %764 = vmatpush.bf16.msra.mxu0 0
        %765 = vmatpush.bf16.msra.mxu0 0
        %766 = vmatpush.bf16.msra.mxu0 %v613
        %767 = vmatpush.bf16.msra.mxu0 %v577
        %768 = vmatmul.bf16.gmra.mxu0 %v734
        %v769 = vpop.f32.mrf.mxu0
        %v770 = vadd.f32 0.0, %v769
        %v771 = vpop.f32.mrf.mxu0
        %v772 = vadd.f32 0.0, %v771
        %773 = vmatmul.bf16.gmra.mxu0 %v737
        %v774 = vpop.f32.mrf.mxu0
        %v775 = vadd.f32 0.0, %v774
        %v776 = vpop.f32.mrf.mxu0
        %v777 = vadd.f32 0.0, %v776
        %778 = vmatmul.bf16.gmra.mxu0 %v740
        %v779 = vpop.f32.mrf.mxu0
        %v780 = vadd.f32 0.0, %v779
        %v781 = vpop.f32.mrf.mxu0
        %v782 = vadd.f32 0.0, %v781
        %783 = vmatmul.bf16.gmra.mxu0 %v743
        %v784 = vpop.f32.mrf.mxu0
        %v785 = vadd.f32 0.0, %v784
        %v786 = vpop.f32.mrf.mxu0
        %v787 = vadd.f32 0.0, %v786
        %788 = vmatmul.bf16.gmra.mxu0 %v746
        %v789 = vpop.f32.mrf.mxu0
        %v790 = vadd.f32 0.0, %v789
        %v791 = vpop.f32.mrf.mxu0
        %v792 = vadd.f32 0.0, %v791
        %793 = vmatmul.bf16.gmra.mxu0 %v749
        %v794 = vpop.f32.mrf.mxu0
        %v795 = vadd.f32 0.0, %v794
        %v796 = vpop.f32.mrf.mxu0
        %v797 = vadd.f32 0.0, %v796
        %798 = vmatmul.bf16.gmra.mxu0 %v752
        %v799 = vpop.f32.mrf.mxu0
        %v800 = vadd.f32 0.0, %v799
        %v801 = vpop.f32.mrf.mxu0
        %v802 = vadd.f32 0.0, %v801
        %803 = vmatmul.bf16.gmra.mxu0 %v755
        %v804 = vpop.f32.mrf.mxu0
        %v805 = vadd.f32 0.0, %v804
        %v806 = vpop.f32.mrf.mxu0
        %v807 = vadd.f32 0.0, %v806
        %808 = vmatmul.bf16.gmra.mxu0 %v758
        %v809 = vpop.f32.mrf.mxu0
        %v810 = vadd.f32 0.0, %v809
        %v811 = vpop.f32.mrf.mxu0
        %v812 = vadd.f32 0.0, %v811
        %813 = vdwg.mxu0
        %v814 = vmax.f32 %v625, %v770
        %v815 = vmax.f32 %v627, %v772
        %v816 = vmax.f32 %v630, %v775
        %v817 = vmax.f32 %v632, %v777
        %v818 = vmax.f32 %v635, %v780
        %v819 = vmax.f32 %v637, %v782
        %v820 = vmax.f32 %v640, %v785
        %v821 = vmax.f32 %v642, %v787
        %v822 = vmax.f32 %v645, %v790
        %v823 = vmax.f32 %v647, %v792
        %v824 = vmax.f32 %v650, %v795
        %v825 = vmax.f32 %v652, %v797
        %v826 = vmax.f32 %v655, %v800
        %v827 = vmax.f32 %v657, %v802
        %v828 = vmax.f32 %v660, %v805
        %v829 = vmax.f32 %v662, %v807
        %v830 = vmax.f32 %v665, %v810
        %v831 = vmax.f32 %v667, %v812
        %s832 = scalar_lea.vmem %s473, 144 [#allocation2]
        %v833 = vld [vmem:[%s832] sm:$0xf]
        %v834 = vld [vmem:[%s832 + $0x4] sm:$0xf]
        %v835 = vld [vmem:[%s832 + $0x8] sm:$0xf]
        %v836 = vld [vmem:[%s832 + $0xc] sm:$0xf]
        %v837 = vld [vmem:[%s832 + $0x10] sm:$0xf]
        %v838 = vld [vmem:[%s832 + $0x14] sm:$0xf]
        %v839 = vld [vmem:[%s832 + $0x18] sm:$0xf]
        %v840 = vld [vmem:[%s832 + $0x1c] sm:$0xf]
        %v841 = vld [vmem:[%s832 + $0x20] sm:$0xf]
        %v842 = vld [vmem:[%s832 + $0x24] sm:$0xf]
        %v843 = vld [vmem:[%s832 + $0x28] sm:$0xf]
        %v844 = vld [vmem:[%s832 + $0x2c] sm:$0xf]
        %v845 = vld [vmem:[%s832 + $0x30] sm:$0xf]
        %v846 = vld [vmem:[%s832 + $0x34] sm:$0xf]
        %v847 = vld [vmem:[%s832 + $0x38] sm:$0xf]
        %v848 = vld [vmem:[%s832 + $0x3c] sm:$0xf]
        %v849 = vld [vmem:[%s832 + $0x40] sm:$0xf]
        %v850 = vld [vmem:[%s832 + $0x44] sm:$0xf]
        %v869 = vunpack.c.l.b16 %v833
        %v870 = vunpack.c.l.b16 %v834
        %v871 = vunpack.c.l.b16 %v835
        %v872 = vunpack.c.l.b16 %v836
        %v873 = vunpack.c.l.b16 %v837
        %v874 = vunpack.c.l.b16 %v838
        %v875 = vunpack.c.l.b16 %v839
        %v876 = vunpack.c.l.b16 %v840
        %v877 = vunpack.c.l.b16 %v841
        %v878 = vunpack.c.l.b16 %v842
        %v879 = vunpack.c.l.b16 %v843
        %v880 = vunpack.c.l.b16 %v844
        %v881 = vunpack.c.l.b16 %v845
        %v882 = vunpack.c.l.b16 %v846
        %v883 = vunpack.c.l.b16 %v847
        %v884 = vunpack.c.l.b16 %v848
        %v885 = vunpack.c.l.b16 %v849
        %v886 = vunpack.c.l.b16 %v850
        %v887 = vpack.c.b16 %v870, %v869
        %v888 = vpack.c.b16 %v872, %v871
        %v889 = vpack.c.b16 %v874, %v873
        %v890 = vpack.c.b16 %v876, %v875
        %v891 = vpack.c.b16 %v878, %v877
        %v892 = vpack.c.b16 %v880, %v879
        %v893 = vpack.c.b16 %v882, %v881
        %v894 = vpack.c.b16 %v884, %v883
        %v895 = vpack.c.b16 %v886, %v885
        %v897 = vsel %vm580, %v887, 0
        %v900 = vsel %vm580, %v888, 0
        %v903 = vsel %vm580, %v889, 0
        %v906 = vsel %vm580, %v890, 0
        %v909 = vsel %vm580, %v891, 0
        %v912 = vsel %vm580, %v892, 0
        %v915 = vsel %vm580, %v893, 0
        %v918 = vsel %vm580, %v894, 0
        %v921 = vsel %vm580, %v895, 0
        %923 = vmatpush.bf16.msra.mxu0 0
        %924 = vmatpush.bf16.msra.mxu0 0
        %925 = vmatpush.bf16.msra.mxu0 0
        %926 = vmatpush.bf16.msra.mxu0 0
        %927 = vmatpush.bf16.msra.mxu0 0
        %928 = vmatpush.bf16.msra.mxu0 0
        %929 = vmatpush.bf16.msra.mxu0 %v613
        %930 = vmatpush.bf16.msra.mxu0 %v577
        %931 = vmatmul.bf16.gmra.mxu0 %v897
        %v932 = vpop.f32.mrf.mxu0
        %v933 = vadd.f32 0.0, %v932
        %v934 = vpop.f32.mrf.mxu0
        %v935 = vadd.f32 0.0, %v934
        %936 = vmatmul.bf16.gmra.mxu0 %v900
        %v937 = vpop.f32.mrf.mxu0
        %v938 = vadd.f32 0.0, %v937
        %v939 = vpop.f32.mrf.mxu0
        %v940 = vadd.f32 0.0, %v939
        %941 = vmatmul.bf16.gmra.mxu0 %v903
        %v942 = vpop.f32.mrf.mxu0
        %v943 = vadd.f32 0.0, %v942
        %v944 = vpop.f32.mrf.mxu0
        %v945 = vadd.f32 0.0, %v944
        %946 = vmatmul.bf16.gmra.mxu0 %v906
        %v947 = vpop.f32.mrf.mxu0
        %v948 = vadd.f32 0.0, %v947
        %v949 = vpop.f32.mrf.mxu0
        %v950 = vadd.f32 0.0, %v949
        %951 = vmatmul.bf16.gmra.mxu0 %v909
        %v952 = vpop.f32.mrf.mxu0
        %v953 = vadd.f32 0.0, %v952
        %v954 = vpop.f32.mrf.mxu0
        %v955 = vadd.f32 0.0, %v954
        %956 = vmatmul.bf16.gmra.mxu0 %v912
        %v957 = vpop.f32.mrf.mxu0
        %v958 = vadd.f32 0.0, %v957
        %v959 = vpop.f32.mrf.mxu0
        %v960 = vadd.f32 0.0, %v959
        %961 = vmatmul.bf16.gmra.mxu0 %v915
        %v962 = vpop.f32.mrf.mxu0
        %v963 = vadd.f32 0.0, %v962
        %v964 = vpop.f32.mrf.mxu0
        %v965 = vadd.f32 0.0, %v964
        %966 = vmatmul.bf16.gmra.mxu0 %v918
        %v967 = vpop.f32.mrf.mxu0
        %v968 = vadd.f32 0.0, %v967
        %v969 = vpop.f32.mrf.mxu0
        %v970 = vadd.f32 0.0, %v969
        %971 = vmatmul.bf16.gmra.mxu0 %v921
        %v972 = vpop.f32.mrf.mxu0
        %v973 = vadd.f32 0.0, %v972
        %v974 = vpop.f32.mrf.mxu0
        %v975 = vadd.f32 0.0, %v974
        %976 = vdwg.mxu0
        %v977 = vmax.f32 %v814, %v933
        %v978 = vmax.f32 %v815, %v935
        %v979 = vmax.f32 %v816, %v938
        %v980 = vmax.f32 %v817, %v940
        %v981 = vmax.f32 %v818, %v943
        %v982 = vmax.f32 %v819, %v945
        %v983 = vmax.f32 %v820, %v948
        %v984 = vmax.f32 %v821, %v950
        %v985 = vmax.f32 %v822, %v953
        %v986 = vmax.f32 %v823, %v955
        %v987 = vmax.f32 %v824, %v958
        %v988 = vmax.f32 %v825, %v960
        %v989 = vmax.f32 %v826, %v963
        %v990 = vmax.f32 %v827, %v965
        %v991 = vmax.f32 %v828, %v968
        %v992 = vmax.f32 %v829, %v970
        %v993 = vmax.f32 %v830, %v973
        %v994 = vmax.f32 %v831, %v975
        %s995 = scalar_lea.vmem %s473, 216 [#allocation2]
        %v996 = vld [vmem:[%s995] sm:$0xf]
        %v997 = vld [vmem:[%s995 + $0x4] sm:$0xf]
        %v998 = vld [vmem:[%s995 + $0x8] sm:$0xf]
        %v999 = vld [vmem:[%s995 + $0xc] sm:$0xf]
        %v1000 = vld [vmem:[%s995 + $0x10] sm:$0xf]
        %v1001 = vld [vmem:[%s995 + $0x14] sm:$0xf]
        %v1002 = vld [vmem:[%s995 + $0x18] sm:$0xf]
        %v1003 = vld [vmem:[%s995 + $0x1c] sm:$0xf]
        %v1004 = vld [vmem:[%s995 + $0x20] sm:$0xf]
        %v1005 = vld [vmem:[%s995 + $0x24] sm:$0xf]
        %v1006 = vld [vmem:[%s995 + $0x28] sm:$0xf]
        %v1007 = vld [vmem:[%s995 + $0x2c] sm:$0xf]
        %v1008 = vld [vmem:[%s995 + $0x30] sm:$0xf]
        %v1009 = vld [vmem:[%s995 + $0x34] sm:$0xf]
        %v1010 = vld [vmem:[%s995 + $0x38] sm:$0xf]
        %v1011 = vld [vmem:[%s995 + $0x3c] sm:$0xf]
        %v1012 = vld [vmem:[%s995 + $0x40] sm:$0xf]
        %v1013 = vld [vmem:[%s995 + $0x44] sm:$0xf]
        %v1032 = vunpack.c.l.b16 %v996
        %v1033 = vunpack.c.l.b16 %v997
        %v1034 = vunpack.c.l.b16 %v998
        %v1035 = vunpack.c.l.b16 %v999
        %v1036 = vunpack.c.l.b16 %v1000
        %v1037 = vunpack.c.l.b16 %v1001
        %v1038 = vunpack.c.l.b16 %v1002
        %v1039 = vunpack.c.l.b16 %v1003
        %v1040 = vunpack.c.l.b16 %v1004
        %v1041 = vunpack.c.l.b16 %v1005
        %v1042 = vunpack.c.l.b16 %v1006
        %v1043 = vunpack.c.l.b16 %v1007
        %v1044 = vunpack.c.l.b16 %v1008
        %v1045 = vunpack.c.l.b16 %v1009
        %v1046 = vunpack.c.l.b16 %v1010
        %v1047 = vunpack.c.l.b16 %v1011
        %v1048 = vunpack.c.l.b16 %v1012
        %v1049 = vunpack.c.l.b16 %v1013
        %v1050 = vpack.c.b16 %v1033, %v1032
        %v1051 = vpack.c.b16 %v1035, %v1034
        %v1052 = vpack.c.b16 %v1037, %v1036
        %v1053 = vpack.c.b16 %v1039, %v1038
        %v1054 = vpack.c.b16 %v1041, %v1040
        %v1055 = vpack.c.b16 %v1043, %v1042
        %v1056 = vpack.c.b16 %v1045, %v1044
        %v1057 = vpack.c.b16 %v1047, %v1046
        %v1058 = vpack.c.b16 %v1049, %v1048
        %v1060 = vsel %vm580, %v1050, 0
        %v1063 = vsel %vm580, %v1051, 0
        %v1066 = vsel %vm580, %v1052, 0
        %v1069 = vsel %vm580, %v1053, 0
        %v1072 = vsel %vm580, %v1054, 0
        %v1075 = vsel %vm580, %v1055, 0
        %v1078 = vsel %vm580, %v1056, 0
        %v1081 = vsel %vm580, %v1057, 0
        %v1084 = vsel %vm580, %v1058, 0
        %1086 = vmatpush.bf16.msra.mxu0 0
        %1087 = vmatpush.bf16.msra.mxu0 0
        %1088 = vmatpush.bf16.msra.mxu0 0
        %1089 = vmatpush.bf16.msra.mxu0 0
        %1090 = vmatpush.bf16.msra.mxu0 0
        %1091 = vmatpush.bf16.msra.mxu0 0
        %1092 = vmatpush.bf16.msra.mxu0 %v613
        %1093 = vmatpush.bf16.msra.mxu0 %v577
        %1094 = vmatmul.bf16.gmra.mxu0 %v1060
        %v1095 = vpop.f32.mrf.mxu0
        %v1096 = vadd.f32 0.0, %v1095
        %v1097 = vpop.f32.mrf.mxu0
        %v1098 = vadd.f32 0.0, %v1097
        %1099 = vmatmul.bf16.gmra.mxu0 %v1063
        %v1100 = vpop.f32.mrf.mxu0
        %v1101 = vadd.f32 0.0, %v1100
        %v1102 = vpop.f32.mrf.mxu0
        %v1103 = vadd.f32 0.0, %v1102
        %1104 = vmatmul.bf16.gmra.mxu0 %v1066
        %v1105 = vpop.f32.mrf.mxu0
        %v1106 = vadd.f32 0.0, %v1105
        %v1107 = vpop.f32.mrf.mxu0
        %v1108 = vadd.f32 0.0, %v1107
        %1109 = vmatmul.bf16.gmra.mxu0 %v1069
        %v1110 = vpop.f32.mrf.mxu0
        %v1111 = vadd.f32 0.0, %v1110
        %v1112 = vpop.f32.mrf.mxu0
        %v1113 = vadd.f32 0.0, %v1112
        %1114 = vmatmul.bf16.gmra.mxu0 %v1072
        %v1115 = vpop.f32.mrf.mxu0
        %v1116 = vadd.f32 0.0, %v1115
        %v1117 = vpop.f32.mrf.mxu0
        %v1118 = vadd.f32 0.0, %v1117
        %1119 = vmatmul.bf16.gmra.mxu0 %v1075
        %v1120 = vpop.f32.mrf.mxu0
        %v1121 = vadd.f32 0.0, %v1120
        %v1122 = vpop.f32.mrf.mxu0
        %v1123 = vadd.f32 0.0, %v1122
        %1124 = vmatmul.bf16.gmra.mxu0 %v1078
        %v1125 = vpop.f32.mrf.mxu0
        %v1126 = vadd.f32 0.0, %v1125
        %v1127 = vpop.f32.mrf.mxu0
        %v1128 = vadd.f32 0.0, %v1127
        %1129 = vmatmul.bf16.gmra.mxu0 %v1081
        %v1130 = vpop.f32.mrf.mxu0
        %v1131 = vadd.f32 0.0, %v1130
        %v1132 = vpop.f32.mrf.mxu0
        %v1133 = vadd.f32 0.0, %v1132
        %1134 = vmatmul.bf16.gmra.mxu0 %v1084
        %v1135 = vpop.f32.mrf.mxu0
        %v1136 = vadd.f32 0.0, %v1135
        %v1137 = vpop.f32.mrf.mxu0
        %v1138 = vadd.f32 0.0, %v1137
        %1139 = vdwg.mxu0
        %v1140 = vmax.f32 %v977, %v1096
        %v1141 = vmax.f32 %v978, %v1098
        %v1142 = vmax.f32 %v979, %v1101
        %v1143 = vmax.f32 %v980, %v1103
        %v1144 = vmax.f32 %v981, %v1106
        %v1145 = vmax.f32 %v982, %v1108
        %v1146 = vmax.f32 %v983, %v1111
        %v1147 = vmax.f32 %v984, %v1113
        %v1148 = vmax.f32 %v985, %v1116
        %v1149 = vmax.f32 %v986, %v1118
        %v1150 = vmax.f32 %v987, %v1121
        %v1151 = vmax.f32 %v988, %v1123
        %v1152 = vmax.f32 %v989, %v1126
        %v1153 = vmax.f32 %v990, %v1128
        %v1154 = vmax.f32 %v991, %v1131
        %v1155 = vmax.f32 %v992, %v1133
        %v1156 = vmax.f32 %v993, %v1136
        %v1157 = vmax.f32 %v994, %v1138
        %v1158 = vld [vmem:[%s2] sm:$0x1]
        %v1160 = vperm.slane %v1158, 0
        %v1162 = vadd.f32 %v1140, %v1160
        %v1163 = vadd.f32 %v1141, %v1160
        %v1164 = vadd.f32 %v1142, %v1160
        %v1165 = vadd.f32 %v1143, %v1160
        %v1166 = vadd.f32 %v1144, %v1160
        %v1167 = vadd.f32 %v1145, %v1160
        %v1168 = vadd.f32 %v1146, %v1160
        %v1169 = vadd.f32 %v1147, %v1160
        %v1170 = vadd.f32 %v1148, %v1160
        %v1171 = vadd.f32 %v1149, %v1160
        %v1172 = vadd.f32 %v1150, %v1160
        %v1173 = vadd.f32 %v1151, %v1160
        %v1174 = vadd.f32 %v1152, %v1160
        %v1175 = vadd.f32 %v1153, %v1160
        %v1176 = vadd.f32 %v1154, %v1160
        %v1177 = vadd.f32 %v1155, %v1160
        %v1178 = vadd.f32 %v1156, %v1160
        %v1179 = vadd.f32 %v1157, %v1160
        %v1180 = vmax.f32 %v1162, 0.0
        %v1181 = vmax.f32 %v1163, 0.0
        %v1182 = vmax.f32 %v1164, 0.0
        %v1183 = vmax.f32 %v1165, 0.0
        %v1184 = vmax.f32 %v1166, 0.0
        %v1185 = vmax.f32 %v1167, 0.0
        %v1186 = vmax.f32 %v1168, 0.0
        %v1187 = vmax.f32 %v1169, 0.0
        %v1188 = vmax.f32 %v1170, 0.0
        %v1189 = vmax.f32 %v1171, 0.0
        %v1190 = vmax.f32 %v1172, 0.0
        %v1191 = vmax.f32 %v1173, 0.0
        %v1192 = vmax.f32 %v1174, 0.0
        %v1193 = vmax.f32 %v1175, 0.0
        %v1194 = vmax.f32 %v1176, 0.0
        %v1195 = vmax.f32 %v1177, 0.0
        %v1196 = vmax.f32 %v1178, 0.0
        %v1197 = vmax.f32 %v1179, 0.0
        %v1198 = vpack.c.bf16 %v1180, %v1180
        %v1199 = vpack.c.bf16 %v1181, %v1181
        %v1200 = vpack.c.bf16 %v1182, %v1182
        %v1201 = vpack.c.bf16 %v1183, %v1183
        %v1202 = vpack.c.bf16 %v1184, %v1184
        %v1203 = vpack.c.bf16 %v1185, %v1185
        %v1204 = vpack.c.bf16 %v1186, %v1186
        %v1205 = vpack.c.bf16 %v1187, %v1187
        %v1206 = vpack.c.bf16 %v1188, %v1188
        %v1207 = vpack.c.bf16 %v1189, %v1189
        %v1208 = vpack.c.bf16 %v1190, %v1190
        %v1209 = vpack.c.bf16 %v1191, %v1191
        %v1210 = vpack.c.bf16 %v1192, %v1192
        %v1211 = vpack.c.bf16 %v1193, %v1193
        %v1212 = vpack.c.bf16 %v1194, %v1194
        %v1213 = vpack.c.bf16 %v1195, %v1195
        %v1214 = vpack.c.bf16 %v1196, %v1196
        %v1215 = vpack.c.bf16 %v1197, %v1197
        %1216 = vst [vmem:[%s499] sm:$0xf] %v1198
        %1217 = vst [vmem:[%s499 + $0x4] sm:$0xf] %v1199
        %1218 = vst [vmem:[%s499 + $0x8] sm:$0xf] %v1200
        %1219 = vst [vmem:[%s499 + $0xc] sm:$0xf] %v1201
        %1220 = vst [vmem:[%s499 + $0x10] sm:$0xf] %v1202
        %1221 = vst [vmem:[%s499 + $0x14] sm:$0xf] %v1203
        %1222 = vst [vmem:[%s499 + $0x18] sm:$0xf] %v1204
        %1223 = vst [vmem:[%s499 + $0x1c] sm:$0xf] %v1205
        %1224 = vst [vmem:[%s499 + $0x20] sm:$0xf] %v1206
        %1225 = vst [vmem:[%s499 + $0x24] sm:$0xf] %v1207
        %1226 = vst [vmem:[%s499 + $0x28] sm:$0xf] %v1208
        %1227 = vst [vmem:[%s499 + $0x2c] sm:$0xf] %v1209
        %1228 = vst [vmem:[%s499 + $0x30] sm:$0xf] %v1210
        %1229 = vst [vmem:[%s499 + $0x34] sm:$0xf] %v1211
        %1230 = vst [vmem:[%s499 + $0x38] sm:$0xf] %v1212
        %1231 = vst [vmem:[%s499 + $0x3c] sm:$0xf] %v1213
        %1232 = vst [vmem:[%s499 + $0x40] sm:$0xf] %v1214
        %1233 = vst [vmem:[%s499 + $0x44] sm:$0xf] %v1215
        %s1234 = smul.u32 18, %s14
        %p1235 = scmp.lt.s32.totalorder %s1234, 35
        %s1236 = scalar_select %p1235, %s1234, 35
        %s1237 = smul.addr %s1236, 4
        %s1238 = scalar_lea.vmem %s3, %s1237
        // Predicated region
        $region74: #{net_forward.3} parent=68 // pred_check
          %p1239 = pneg %p100
        $region75: #{net_forward.3} parent=68 // pred_check_branch
          %1241 = sbr.rel (%p1239) target = $region77
        $region76: #{net_forward.3} parent=68 // pred_region
          %s1242 = smul.u32 18, %s14
        $region77: #{net_forward.3} parent=68 // pred_fallthru
          _
      $region69: #{net_forward.3} parent=5 // pred_fallthru
        _
      %p1243 = scmp.le.s32.totalorder 2, %s9
      // Predicated region
      $region78: #{net_forward.3} parent=5 // pred_check
        %p1244 = pneg %p1243
      $region79: #{net_forward.3} parent=5 // pred_check_branch
        %1246 = sbr.rel (%p1244) target = $region81
      $region80: #{net_forward.3} parent=5 // pred_region
        %s1247 = ssub.s32 %s9, 2
        // Predicated region
        $region82: #{net_forward.3} parent=80 // pred_check
          %p1248 = pneg %p106
        $region83: #{net_forward.3} parent=80 // pred_check_branch
          %1250 = sbr.rel (%p1248) target = $region85
        $region84: #{net_forward.3} parent=80 // pred_region
          %s1251 = smul.u32 18, %s15
          %p1252 = scmp.lt.s32.totalorder %s1251, 35
          %s1253 = scalar_select %p1252, %s1251, 35
          %s1254 = smul.addr %s1253, 4
          %s1255 = scalar_lea.vmem %s3, %s1254
        $region85: #{net_forward.3} parent=80 // pred_fallthru
          _
      $region81: #{net_forward.3} parent=5 // pred_fallthru
        _
    $region6: #{net_forward.3} parent=1 // loop_footer
      %s13 = sadd.s32 1, %s9
    $region7: #{net_forward.3} parent=1 // loop_footer_branch
      %8 = sbr.rel target = $region3
    $region8: #{net_forward.3} parent=1 // loop_exit
      _

// kernel: net_forward.4
$region0: #{net_forward.4}
  #allocation0 [shape = 'u32[]', space=smem, size = 0x4, offset = 0x4, fixed_abs, tag = 'smem constant byte address 0x4 - core index']
  #allocation1 [shape = 'u32[72,128]{1,0:T(1,128)}', space=vmem, size = 0x9000, scoped, tag = 'internal scratch']
  %s0 = inlined_call_operand.vmem [shape: bf16[4,32,800], index: 0, kind: input, shape index: {}]
  %s1 = inlined_call_operand.vmem [shape: bf16[800,128], index: 1, kind: input, shape index: {}]
  %s2 = inlined_call_operand.vmem [shape: f32[1,128], index: 2, kind: input, shape index: {}]
  %s3 = inlined_call_operand.vmem [shape: bf16[32,128], index: 3, kind: output, shape index: {}]
  %s4 = sld [smem:[#allocation0]]
  $region71: #{net_forward.4} parent=0
    _
  %s6 = ssub.s32 1, %s4
  %s7 = scalar_select 0, %s6, %s4
  $region1: #{net_forward.4} parent=0
    #allocation2 [shape = 'u8[229376]{0}', space=vmem, size = 0x38000, scoped, tag = 'input window, operand 0']
    loop: start=0, step=1, limit=4
    $region2: #{net_forward.4} parent=1 // loop_pre_header
      _
    $region3: #{net_forward.4} parent=1 // loop_header
      %s9 = sphi 0, %s13
      %p10 = scmp.ge.s32.totalorder %s9, 4
      %s19 = sphi 0, %s21
      %s22 = sphi 0, %s19
      %s23 = sphi 0, %s22
      %s39 = sphi 0, %s23
      %s43 = sphi 0, %s43
      %s45 = sphi 0, %s43
      %s46 = sphi 0, %s45
      %s60 = sphi 0, %s46
      %s64 = sphi 0, %s64
      %s66 = sphi 0, %s64
      %s67 = sphi 0, %s66
      %s81 = sphi 0, %s67
      %s87 = sphi 0, %s89
      %s90 = sphi 0, %s87
      %s91 = sphi 0, %s90
      %s107 = sphi 0, %s91
    $region4: #{net_forward.4} parent=1 // loop_header_branch
      %12 = sbr.rel (%p10) target = $region8
    $region5: #{net_forward.4} parent=1 // loop_body
      %s14 = ssub.s32 %s9, 1
      %s15 = ssub.s32 %s9, 2
      %s16 = sadd.s32 %s9, 1
      %s17 = ssub.s32 %s9, %s16
      %p18 = scmp.eq.s32.totalorder %s17, 0
      %s20 = sadd.s32 %s19, 1
      %s21 = scalar_select %p18, %s19, %s20
      %p24 = pneg %p18
      %p25 = scmp.eq.s32.totalorder %s9, 1
      %p26 = por %p24, %p25
      %p27 = scmp.ne.s32.totalorder %s19, %s22
      %p28 = scmp.eq.s32.totalorder %s9, 0
      %p29 = por %p27, %p28
      %p30 = scmp.ne.s32.totalorder %s19, %s22
      %p31 = scmp.eq.s32.totalorder %s14, 1
      %p32 = por %p30, %p31
      %p33 = scmp.ne.s32.totalorder %s22, %s23
      %p34 = scmp.eq.s32.totalorder %s14, 0
      %p35 = por %p33, %p34
      %p36 = scmp.ne.s32.totalorder %s22, %s23
      %p37 = scmp.eq.s32.totalorder %s15, 1
      %p38 = por %p36, %p37
      %p40 = scmp.ne.s32.totalorder %s23, %s39
      %p41 = scmp.eq.s32.totalorder %s15, 0
      %p42 = por %p40, %p41
      %s44 = sadd.s32 %s43, 1
      %p47 = scmp.eq.s32.totalorder %s9, 1
      %p48 = scmp.ne.s32.totalorder %s43, %s45
      %p49 = scmp.eq.s32.totalorder %s9, 0
      %p50 = por %p48, %p49
      %p51 = scmp.ne.s32.totalorder %s43, %s45
      %p52 = scmp.eq.s32.totalorder %s14, 1
      %p53 = por %p51, %p52
      %p54 = scmp.ne.s32.totalorder %s45, %s46
      %p55 = scmp.eq.s32.totalorder %s14, 0
      %p56 = por %p54, %p55
      %p57 = scmp.ne.s32.totalorder %s45, %s46
      %p58 = scmp.eq.s32.totalorder %s15, 1
      %p59 = por %p57, %p58
      %p61 = scmp.ne.s32.totalorder %s46, %s60
      %p62 = scmp.eq.s32.totalorder %s15, 0
      %p63 = por %p61, %p62
      %s65 = sadd.s32 %s64, 1
      %p68 = scmp.eq.s32.totalorder %s9, 1
      %p69 = scmp.ne.s32.totalorder %s64, %s66
      %p70 = scmp.eq.s32.totalorder %s9, 0
      %p71 = por %p69, %p70
      %p72 = scmp.ne.s32.totalorder %s64, %s66
      %p73 = scmp.eq.s32.totalorder %s14, 1
      %p74 = por %p72, %p73
      %p75 = scmp.ne.s32.totalorder %s66, %s67
      %p76 = scmp.eq.s32.totalorder %s14, 0
      %p77 = por %p75, %p76
      %p78 = scmp.ne.s32.totalorder %s66, %s67
      %p79 = scmp.eq.s32.totalorder %s15, 1
      %p80 = por %p78, %p79
      %p82 = scmp.ne.s32.totalorder %s67, %s81
      %p83 = scmp.eq.s32.totalorder %s15, 0
      %p84 = por %p82, %p83
      %s85 = ssub.s32 %s9, %s16
      %p86 = scmp.eq.s32.totalorder %s85, 0
      %s88 = sadd.s32 %s87, 1
      %s89 = scalar_select %p86, %s87, %s88
      %p92 = pneg %p86
      %p93 = scmp.eq.s32.totalorder %s9, 1
      %p94 = por %p92, %p93
      %p95 = scmp.ne.s32.totalorder %s87, %s90
      %p96 = scmp.eq.s32.totalorder %s9, 0
      %p97 = por %p95, %p96
      %p98 = scmp.ne.s32.totalorder %s87, %s90
      %p99 = scmp.eq.s32.totalorder %s14, 1
      %p100 = por %p98, %p99
      %p101 = scmp.ne.s32.totalorder %s90, %s91
      %p102 = scmp.eq.s32.totalorder %s14, 0
      %p103 = por %p101, %p102
      %p104 = scmp.ne.s32.totalorder %s90, %s91
      %p105 = scmp.eq.s32.totalorder %s15, 1
      %p106 = por %p104, %p105
      %p108 = scmp.ne.s32.totalorder %s91, %s107
      %p109 = scmp.eq.s32.totalorder %s15, 0
      %p110 = por %p108, %p109
      %p111 = scmp.le.s32.totalorder 1, %s9
      %p112 = scmp.lt.s32.totalorder %s9, 3
      %p113 = pnand %p111, %p112
      %p114 = pneg %p113
      // Predicated region
      $region9: #{net_forward.4} parent=5 // pred_check
        _
      $region10: #{net_forward.4} parent=5 // pred_check_branch
        %116 = sbr.rel (%p113) target = $region12
      $region11: #{net_forward.4} parent=5 // pred_region
        %s117 = ssub.s32 %s9, 1
        // Predicated region
        $region13: #{net_forward.4} parent=11 // pred_check
          %p118 = pneg %p56
        $region14: #{net_forward.4} parent=11 // pred_check_branch
          %120 = sbr.rel (%p118) target = $region16
        $region15: #{net_forward.4} parent=11 // pred_region
          _
        $region16: #{net_forward.4} parent=11 // pred_fallthru
          _
        // Predicated region
        $region17: #{net_forward.4} parent=11 // pred_check
          %p121 = pneg %p77
        $region18: #{net_forward.4} parent=11 // pred_check_branch
          %123 = sbr.rel (%p121) target = $region20
        $region19: #{net_forward.4} parent=11 // pred_region
          _
        $region20: #{net_forward.4} parent=11 // pred_fallthru
          _
      $region12: #{net_forward.4} parent=5 // pred_fallthru
        _
      %p124 = scmp.lt.s32.totalorder %s9, 2
      // Predicated region
      $region21: #{net_forward.4} parent=5 // pred_check
        %p125 = pneg %p124
      $region22: #{net_forward.4} parent=5 // pred_check_branch
        %127 = sbr.rel (%p125) target = $region24
      $region23: #{net_forward.4} parent=5 // pred_region
        // Predicated region
        $region25: #{net_forward.4} parent=23 // pred_check
          %p128 = pneg %p29
        $region26: #{net_forward.4} parent=23 // pred_check_branch
          %130 = sbr.rel (%p128) target = $region28
        $region27: #{net_forward.4} parent=23 // pred_region
          %s131 = sand.u32 %s19, 1
          %s132 = sand.u32 %s19, 1
          %s133 = smul.addr %s132, 224
          %s134 = scalar_lea.vmem [#allocation2], %s133
          %s135 = smul.u32 2, %s9
          %s136 = smul.addr %s135, 7
          %s137 = smul.addr %s136, 4
          %s138 = scalar_lea.vmem %s0, %s137
          // Predicated region
          $region29: #{net_forward.4} parent=27 // pred_check
            _
          $region30: #{net_forward.4} parent=27 // pred_check_branch
            %140 = sbr.rel (0) target = $region32
          $region31: #{net_forward.4} parent=27 // pred_region
            // Predicated region
            $region33: #{net_forward.4} parent=31 // pred_check
              _
            $region34: #{net_forward.4} parent=31 // pred_check_branch
              %142 = sbr.rel (0) target = $region36
            $region35: #{net_forward.4} parent=31 // pred_region
              %s143 = scalar_lea.vmem %s138, 24
              %s144 = scalar_lea.vmem %s134, 24 [#allocation2]
              loop: start=0, step=1, limit=1
              $region37: #{net_forward.4} parent=35 // loop_pre_header
                _
              $region38: #{net_forward.4} parent=35 // loop_header
                %s146 = sphi 0, %s150
                %p147 = scmp.ge.s32.totalorder %s146, 1
                %s151 = sphi %s138, %s138
                %s152 = sphi %s134, %s134
              $region39: #{net_forward.4} parent=35 // loop_header_branch
                %149 = sbr.rel (%p147) target = $region43
              $region40: #{net_forward.4} parent=35 // loop_body
                %v153 = vld [vmem:[%s151] sm:$0xff]
                %154 = vst [vmem:[%s152] sm:$0xff] %v153
                %v155 = vld [vmem:[%s151 + $0x8] sm:$0xff]
                %156 = vst [vmem:[%s152 + $0x8] sm:$0xff] %v155
                %v157 = vld [vmem:[%s151 + $0x10] sm:$0xff]
                %158 = vst [vmem:[%s152 + $0x10] sm:$0xff] %v157
                %v159 = vld [vmem:[%s151 + $0x1c] sm:$0xff]
                %160 = vst [vmem:[%s152 + $0x1c] sm:$0xff] %v159
                %v161 = vld [vmem:[%s151 + $0x24] sm:$0xff]
                %162 = vst [vmem:[%s152 + $0x24] sm:$0xff] %v161
                %v163 = vld [vmem:[%s151 + $0x2c] sm:$0xff]
                %164 = vst [vmem:[%s152 + $0x2c] sm:$0xff] %v163
                %v165 = vld [vmem:[%s151 + $0x70] sm:$0xff]
                %166 = vst [vmem:[%s152 + $0x38] sm:$0xff] %v165
                %v167 = vld [vmem:[%s151 + $0x78] sm:$0xff]
                %168 = vst [vmem:[%s152 + $0x40] sm:$0xff] %v167
                %v169 = vld [vmem:[%s151 + $0x80] sm:$0xff]
                %170 = vst [vmem:[%s152 + $0x48] sm:$0xff] %v169
                %v171 = vld [vmem:[%s151 + $0x8c] sm:$0xff]
                %172 = vst [vmem:[%s152 + $0x54] sm:$0xff] %v171
                %v173 = vld [vmem:[%s151 + $0x94] sm:$0xff]
                %174 = vst [vmem:[%s152 + $0x5c] sm:$0xff] %v173
                %v175 = vld [vmem:[%s151 + $0x9c] sm:$0xff]
                %176 = vst [vmem:[%s152 + $0x64] sm:$0xff] %v175
                %v177 = vld [vmem:[%s151 + $0xe0] sm:$0xff]
                %178 = vst [vmem:[%s152 + $0x70] sm:$0xff] %v177
                %v179 = vld [vmem:[%s151 + $0xe8] sm:$0xff]
                %180 = vst [vmem:[%s152 + $0x78] sm:$0xff] %v179
                %v181 = vld [vmem:[%s151 + $0xf0] sm:$0xff]
                %182 = vst [vmem:[%s152 + $0x80] sm:$0xff] %v181
                %v183 = vld [vmem:[%s151 + $0xfc] sm:$0xff]
                %184 = vst [vmem:[%s152 + $0x8c] sm:$0xff] %v183
                %v185 = vld [vmem:[%s151 + $0x104] sm:$0xff]
                %186 = vst [vmem:[%s152 + $0x94] sm:$0xff] %v185
                %v187 = vld [vmem:[%s151 + $0x10c] sm:$0xff]
                %188 = vst [vmem:[%s152 + $0x9c] sm:$0xff] %v187
                %v189 = vld [vmem:[%s151 + $0x150] sm:$0xff]
                %190 = vst [vmem:[%s152 + $0xa8] sm:$0xff] %v189
                %v191 = vld [vmem:[%s151 + $0x158] sm:$0xff]
                %192 = vst [vmem:[%s152 + $0xb0] sm:$0xff] %v191
                %v193 = vld [vmem:[%s151 + $0x160] sm:$0xff]
                %194 = vst [vmem:[%s152 + $0xb8] sm:$0xff] %v193
                %v195 = vld [vmem:[%s151 + $0x16c] sm:$0xff]
                %196 = vst [vmem:[%s152 + $0xc4] sm:$0xff] %v195
                %v197 = vld [vmem:[%s151 + $0x174] sm:$0xff]
                %198 = vst [vmem:[%s152 + $0xcc] sm:$0xff] %v197
                %v199 = vld [vmem:[%s151 + $0x17c] sm:$0xff]
                %200 = vst [vmem:[%s152 + $0xd4] sm:$0xff] %v199
              $region41: #{net_forward.4} parent=35 // loop_footer
                %s150 = sadd.s32 1, %s146
              $region42: #{net_forward.4} parent=35 // loop_footer_branch
                %145 = sbr.rel target = $region38
              $region43: #{net_forward.4} parent=35 // loop_exit
                _
              %s202 = ssub.s32 16, 1
              loop: start=0, step=1, limit=1
              $region44: #{net_forward.4} parent=35 // loop_pre_header
                _
              $region45: #{net_forward.4} parent=35 // loop_header
                %s204 = sphi 0, %s208
                %p205 = scmp.ge.s32.totalorder %s204, 1
                %s209 = sphi %s143, %s143
                %s210 = sphi %s144, %s144
              $region46: #{net_forward.4} parent=35 // loop_header_branch
                %207 = sbr.rel (%p205) target = $region50
              $region47: #{net_forward.4} parent=35 // loop_body
                %v211 = vld [vmem:[%s209] sm:%s202]
                %212 = vst [vmem:[%s210] sm:%s202] %v211
                %v213 = vld [vmem:[%s209 + $0x1c] sm:%s202]
                %214 = vst [vmem:[%s210 + $0x1c] sm:%s202] %v213
                %v215 = vld [vmem:[%s209 + $0x70] sm:%s202]
                %216 = vst [vmem:[%s210 + $0x38] sm:%s202] %v215
                %v217 = vld [vmem:[%s209 + $0x8c] sm:%s202]
                %218 = vst [vmem:[%s210 + $0x54] sm:%s202] %v217
                %v219 = vld [vmem:[%s209 + $0xe0] sm:%s202]
                %220 = vst [vmem:[%s210 + $0x70] sm:%s202] %v219
                %v221 = vld [vmem:[%s209 + $0xfc] sm:%s202]
                %222 = vst [vmem:[%s210 + $0x8c] sm:%s202] %v221
                %v223 = vld [vmem:[%s209 + $0x150] sm:%s202]
                %224 = vst [vmem:[%s210 + $0xa8] sm:%s202] %v223
                %v225 = vld [vmem:[%s209 + $0x16c] sm:%s202]
                %226 = vst [vmem:[%s210 + $0xc4] sm:%s202] %v225
              $region48: #{net_forward.4} parent=35 // loop_footer
                %s208 = sadd.s32 1, %s204
              $region49: #{net_forward.4} parent=35 // loop_footer_branch
                %203 = sbr.rel target = $region45
              $region50: #{net_forward.4} parent=35 // loop_exit
                _
            $region36: #{net_forward.4} parent=31 // pred_fallthru
              _
          $region32: #{net_forward.4} parent=27 // pred_fallthru
            _
          %227 = vnop
        $region28: #{net_forward.4} parent=23 // pred_fallthru
          _
      $region24: #{net_forward.4} parent=5 // pred_fallthru
        _
      %p228 = scmp.le.s32.totalorder 1, %s9
      %p229 = scmp.lt.s32.totalorder %s9, 3
      %p230 = pnand %p228, %p229
      %p231 = pneg %p230
      // Predicated region
      $region51: #{net_forward.4} parent=5 // pred_check
        _
      $region52: #{net_forward.4} parent=5 // pred_check_branch
        %233 = sbr.rel (%p230) target = $region54
      $region53: #{net_forward.4} parent=5 // pred_region
        %s234 = ssub.s32 %s9, 1
        %s235 = sand.u32 %s22, 1
        %s236 = sand.u32 %s22, 1
        %s237 = smul.addr %s236, 224
        %s238 = scalar_lea.vmem [#allocation2], %s237
        // Predicated region
        $region55: #{net_forward.4} parent=53 // pred_check
          %p239 = pneg %p35
        $region56: #{net_forward.4} parent=53 // pred_check_branch
          %241 = sbr.rel (%p239) target = $region58
        $region57: #{net_forward.4} parent=53 // pred_region
          _
        $region58: #{net_forward.4} parent=53 // pred_fallthru
          _
        %s242 = sand.u32 %s22, 1
        %s243 = sand.u32 %s22, 1
        %s244 = smul.addr %s243, 224
        %s245 = scalar_lea.vmem [#allocation2], %s244
        %p246 = pneg %p35
        %p247 = pneg %p32
        %p248 = pneg %p56
        %p249 = pneg %p53
        %p250 = pneg %p77
        %p251 = pneg %p74
        %p252 = pneg %p103
        %p253 = pneg %p100
        %s254 = smul.u32 2, %s14
        %p255 = scmp.lt.s32.totalorder %s254, 3
        %s256 = scalar_select %p255, %s254, 3
        %s257 = smul.addr %s256, 4
        %s258 = scalar_lea.vmem %s3, %s257
        %s259 = smul.u32 2, %s14
        %s260 = smul.u32 2, %s14
        %p261 = scmp.lt.s32.totalorder %s260, 3
        %s262 = scalar_select %p261, %s260, 3
        %s263 = smul.addr %s262, 4
        %s264 = scalar_lea.vmem %s3, %s263
        %s265 = smul.u32 2, %s14
        %v267 = vld [vmem:[%s1] sm:$0xf]
        %v268 = vld [vmem:[%s1 + $0x4] sm:$0xf]
        %v269 = vld [vmem:[%s1 + $0x8] sm:$0xf]
        %v270 = vld [vmem:[%s1 + $0xc] sm:$0xf]
        %v271 = vld [vmem:[%s1 + $0x10] sm:$0xf]
        %v272 = vld [vmem:[%s1 + $0x14] sm:$0xf]
        %v273 = vld [vmem:[%s1 + $0x18] sm:$0xf]
        %v274 = vld [vmem:[%s1 + $0x1c] sm:$0xf]
        %v275 = vld [vmem:[%s1 + $0x20] sm:$0xf]
        %v276 = vld [vmem:[%s1 + $0x24] sm:$0xf]
        %v277 = vld [vmem:[%s1 + $0x28] sm:$0xf]
        %v278 = vld [vmem:[%s1 + $0x2c] sm:$0xf]
        %v279 = vld [vmem:[%s1 + $0x30] sm:$0xf]
        %v280 = vld [vmem:[%s1 + $0x34] sm:$0xf]
        %v281 = vld [vmem:[%s1 + $0x38] sm:$0xf]
        %v282 = vld [vmem:[%s1 + $0x3c] sm:$0xf]
        %v283 = vld [vmem:[%s1 + $0x40] sm:$0xf]
        %v284 = vld [vmem:[%s1 + $0x44] sm:$0xf]
        %v285 = vld [vmem:[%s1 + $0x48] sm:$0xf]
        %v286 = vld [vmem:[%s1 + $0x4c] sm:$0xf]
        %v287 = vld [vmem:[%s1 + $0x50] sm:$0xf]
        %v288 = vld [vmem:[%s1 + $0x54] sm:$0xf]
        %v289 = vld [vmem:[%s1 + $0x58] sm:$0xf]
        %v290 = vld [vmem:[%s1 + $0x5c] sm:$0xf]
        %v291 = vld [vmem:[%s1 + $0x60] sm:$0xf]
        %v292 = vld [vmem:[%s1 + $0x64] sm:$0xf]
        %v293 = vld [vmem:[%s1 + $0x68] sm:$0xf]
        %v294 = vld [vmem:[%s1 + $0x6c] sm:$0xf]
        %v295 = vld [vmem:[%s1 + $0x70] sm:$0xf]
        %v296 = vld [vmem:[%s1 + $0x74] sm:$0xf]
        %v297 = vld [vmem:[%s1 + $0x78] sm:$0xf]
        %v298 = vld [vmem:[%s1 + $0x7c] sm:$0xf]
        %v299 = vld [vmem:[%s1 + $0x80] sm:$0xf]
        %v300 = vld [vmem:[%s1 + $0x84] sm:$0xf]
        %v301 = vld [vmem:[%s1 + $0x88] sm:$0xf]
        %v302 = vld [vmem:[%s1 + $0x8c] sm:$0xf]
        %v303 = vld [vmem:[%s1 + $0x90] sm:$0xf]
        %v304 = vld [vmem:[%s1 + $0x94] sm:$0xf]
        %v305 = vld [vmem:[%s1 + $0x98] sm:$0xf]
        %v306 = vld [vmem:[%s1 + $0x9c] sm:$0xf]
        %v307 = vld [vmem:[%s1 + $0xa0] sm:$0xf]
        %v308 = vld [vmem:[%s1 + $0xa4] sm:$0xf]
        %v309 = vld [vmem:[%s1 + $0xa8] sm:$0xf]
        %v310 = vld [vmem:[%s1 + $0xac] sm:$0xf]
        %v311 = vld [vmem:[%s1 + $0xb0] sm:$0xf]
        %v312 = vld [vmem:[%s1 + $0xb4] sm:$0xf]
        %v313 = vld [vmem:[%s1 + $0xb8] sm:$0xf]
        %v314 = vld [vmem:[%s1 + $0xbc] sm:$0xf]
        %v315 = vld [vmem:[%s1 + $0xc0] sm:$0xf]
        %v316 = vld [vmem:[%s1 + $0xc4] sm:$0xf]
        %v317 = vld [vmem:[%s1 + $0xc8] sm:$0xf]
        %v318 = vld [vmem:[%s1 + $0xcc] sm:$0xf]
        %v319 = vld [vmem:[%s1 + $0xd0] sm:$0xf]
        %v320 = vld [vmem:[%s1 + $0xd4] sm:$0xf]
        %v321 = vld [vmem:[%s1 + $0xd8] sm:$0xf]
        %v322 = vld [vmem:[%s1 + $0xdc] sm:$0xf]
        %v323 = vld [vmem:[%s1 + $0xe0] sm:$0xf]
        %v324 = vld [vmem:[%s1 + $0xe4] sm:$0xf]
        %v325 = vld [vmem:[%s1 + $0xe8] sm:$0xf]
        %v326 = vld [vmem:[%s1 + $0xec] sm:$0xf]
        %v327 = vld [vmem:[%s1 + $0xf0] sm:$0xf]
        %v328 = vld [vmem:[%s1 + $0xf4] sm:$0xf]
        %v329 = vld [vmem:[%s1 + $0xf8] sm:$0xf]
        %v330 = vld [vmem:[%s1 + $0xfc] sm:$0xf]
        %v331 = vld [vmem:[%s1 + $0x100] sm:$0xf]
        %v332 = vld [vmem:[%s1 + $0x104] sm:$0xf]
        %v333 = vld [vmem:[%s1 + $0x108] sm:$0xf]
        %v334 = vld [vmem:[%s1 + $0x10c] sm:$0xf]
        %v335 = vld [vmem:[%s1 + $0x110] sm:$0xf]
        %v336 = vld [vmem:[%s1 + $0x114] sm:$0xf]
        %v337 = vld [vmem:[%s1 + $0x118] sm:$0xf]
        %v338 = vld [vmem:[%s1 + $0x11c] sm:$0xf]
        %v339 = vld [vmem:[%s1 + $0x120] sm:$0xf]
        %v340 = vld [vmem:[%s1 + $0x124] sm:$0xf]
        %v341 = vld [vmem:[%s1 + $0x128] sm:$0xf]
        %v342 = vld [vmem:[%s1 + $0x12c] sm:$0xf]
        %v343 = vld [vmem:[%s1 + $0x130] sm:$0xf]
        %v344 = vld [vmem:[%s1 + $0x134] sm:$0xf]
        %v345 = vld [vmem:[%s1 + $0x138] sm:$0xf]
        %v346 = vld [vmem:[%s1 + $0x13c] sm:$0xf]
        %v347 = vld [vmem:[%s1 + $0x140] sm:$0xf]
        %v348 = vld [vmem:[%s1 + $0x144] sm:$0xf]
        %v349 = vld [vmem:[%s1 + $0x148] sm:$0xf]
        %v350 = vld [vmem:[%s1 + $0x14c] sm:$0xf]
        %v351 = vld [vmem:[%s1 + $0x150] sm:$0xf]
        %v352 = vld [vmem:[%s1 + $0x154] sm:$0xf]
        %v353 = vld [vmem:[%s1 + $0x158] sm:$0xf]
        %v354 = vld [vmem:[%s1 + $0x15c] sm:$0xf]
        %v355 = vld [vmem:[%s1 + $0x160] sm:$0xf]
        %v356 = vld [vmem:[%s1 + $0x164] sm:$0xf]
        %v357 = vld [vmem:[%s1 + $0x168] sm:$0xf]
        %v358 = vld [vmem:[%s1 + $0x16c] sm:$0xf]
        %v359 = vld [vmem:[%s1 + $0x170] sm:$0xf]
        %v360 = vld [vmem:[%s1 + $0x174] sm:$0xf]
        %v361 = vld [vmem:[%s1 + $0x178] sm:$0xf]
        %v362 = vld [vmem:[%s1 + $0x17c] sm:$0xf]
        %v363 = vld [vmem:[%s1 + $0x180] sm:$0xf]
        %v364 = vld [vmem:[%s1 + $0x184] sm:$0xf]
        %v365 = vld [vmem:[%s1 + $0x188] sm:$0xf]
        %v366 = vld [vmem:[%s1 + $0x18c] sm:$0xf]
        %v367 = vld [vmem:[%s238] sm:$0xff]
        %v368 = vld [vmem:[%s238 + $0x8] sm:$0xff]
        %v369 = vld [vmem:[%s238 + $0x10] sm:$0xff]
        %v370 = vld [vmem:[%s238 + $0x18] sm:$0xf]
        %v371 = vld [vmem:[%s238 + $0x1c] sm:$0xff]
        %v372 = vld [vmem:[%s238 + $0x24] sm:$0xff]
        %v373 = vld [vmem:[%s238 + $0x2c] sm:$0xff]
        %v374 = vld [vmem:[%s238 + $0x34] sm:$0xf]
        %v383 = vunpack.c.l.b16 %v367
        %v384 = vunpack.c.h.b16 %v367
        %v385 = vunpack.c.l.b16 %v368
        %v386 = vunpack.c.h.b16 %v368
        %v387 = vunpack.c.l.b16 %v369
        %v388 = vunpack.c.h.b16 %v369
        %v389 = vunpack.c.l.b16 %v370
        %v390 = vunpack.c.l.b16 %v371
        %v391 = vunpack.c.h.b16 %v371
        %v392 = vunpack.c.l.b16 %v372
        %v393 = vunpack.c.h.b16 %v372
        %v394 = vunpack.c.l.b16 %v373
        %v395 = vunpack.c.h.b16 %v373
        %v396 = vunpack.c.l.b16 %v374
        %v397 = vpack.c.b16 %v390, %v383
        %v398 = vpack.c.b16 %v391, %v384
        %v399 = vpack.c.b16 %v392, %v385
        %v400 = vpack.c.b16 %v393, %v386
        %v401 = vpack.c.b16 %v394, %v387
        %v402 = vpack.c.b16 %v395, %v388
        %v403 = vpack.c.b16 %v396, %v389
        %v510 = vunpack.c.l.b16 %v267
        %v511 = vunpack.c.l.b16 %v268
        %v512 = vunpack.c.l.b16 %v269
        %v513 = vunpack.c.l.b16 %v270
        %v514 = vunpack.c.l.b16 %v271
        %v515 = vunpack.c.l.b16 %v272
        %v516 = vunpack.c.l.b16 %v273
        %v517 = vunpack.c.l.b16 %v274
        %v518 = vunpack.c.l.b16 %v275
        %v519 = vunpack.c.l.b16 %v276
        %v520 = vunpack.c.l.b16 %v277
        %v521 = vunpack.c.l.b16 %v278
        %v522 = vunpack.c.l.b16 %v279
        %v523 = vunpack.c.l.b16 %v280
        %v524 = vunpack.c.l.b16 %v281
        %v525 = vunpack.c.l.b16 %v282
        %v526 = vunpack.c.l.b16 %v283
        %v527 = vunpack.c.l.b16 %v284
        %v528 = vunpack.c.l.b16 %v285
        %v529 = vunpack.c.l.b16 %v286
        %v530 = vunpack.c.l.b16 %v287
        %v531 = vunpack.c.l.b16 %v288
        %v532 = vunpack.c.l.b16 %v289
        %v533 = vunpack.c.l.b16 %v290
        %v534 = vunpack.c.l.b16 %v291
        %v535 = vunpack.c.l.b16 %v292
        %v536 = vunpack.c.l.b16 %v293
        %v537 = vunpack.c.l.b16 %v294
        %v538 = vunpack.c.l.b16 %v295
        %v539 = vunpack.c.l.b16 %v296
        %v540 = vunpack.c.l.b16 %v297
        %v541 = vunpack.c.l.b16 %v298
        %v542 = vunpack.c.l.b16 %v299
        %v543 = vunpack.c.l.b16 %v300
        %v544 = vunpack.c.l.b16 %v301
        %v545 = vunpack.c.l.b16 %v302
        %v546 = vunpack.c.l.b16 %v303
        %v547 = vunpack.c.l.b16 %v304
        %v548 = vunpack.c.l.b16 %v305
        %v549 = vunpack.c.l.b16 %v306
        %v550 = vunpack.c.l.b16 %v307
        %v551 = vunpack.c.l.b16 %v308
        %v552 = vunpack.c.l.b16 %v309
        %v553 = vunpack.c.l.b16 %v310
        %v554 = vunpack.c.l.b16 %v311
        %v555 = vunpack.c.l.b16 %v312
        %v556 = vunpack.c.l.b16 %v313
        %v557 = vunpack.c.l.b16 %v314
        %v558 = vunpack.c.l.b16 %v315
        %v559 = vunpack.c.l.b16 %v316
        %v560 = vunpack.c.l.b16 %v317
        %v561 = vunpack.c.l.b16 %v318
        %v562 = vunpack.c.l.b16 %v319
        %v563 = vunpack.c.l.b16 %v320
        %v564 = vunpack.c.l.b16 %v321
        %v565 = vunpack.c.l.b16 %v322
        %v566 = vunpack.c.l.b16 %v323
        %v567 = vunpack.c.l.b16 %v324
        %v568 = vunpack.c.l.b16 %v325
        %v569 = vunpack.c.l.b16 %v326
        %v570 = vunpack.c.l.b16 %v327
        %v571 = vunpack.c.l.b16 %v328
        %v572 = vunpack.c.l.b16 %v329
        %v573 = vunpack.c.l.b16 %v330
        %v574 = vunpack.c.l.b16 %v331
        %v575 = vunpack.c.l.b16 %v332
        %v576 = vunpack.c.l.b16 %v333
        %v577 = vunpack.c.l.b16 %v334
        %v578 = vunpack.c.l.b16 %v335
        %v579 = vunpack.c.l.b16 %v336
        %v580 = vunpack.c.l.b16 %v337
        %v581 = vunpack.c.l.b16 %v338
        %v582 = vunpack.c.l.b16 %v339
        %v583 = vunpack.c.l.b16 %v340
        %v584 = vunpack.c.l.b16 %v341
        %v585 = vunpack.c.l.b16 %v342
        %v586 = vunpack.c.l.b16 %v343
        %v587 = vunpack.c.l.b16 %v344
        %v588 = vunpack.c.l.b16 %v345
        %v589 = vunpack.c.l.b16 %v346
        %v590 = vunpack.c.l.b16 %v347
        %v591 = vunpack.c.l.b16 %v348
        %v592 = vunpack.c.l.b16 %v349
        %v593 = vunpack.c.l.b16 %v350
        %v594 = vunpack.c.l.b16 %v351
        %v595 = vunpack.c.l.b16 %v352
        %v596 = vunpack.c.l.b16 %v353
        %v597 = vunpack.c.l.b16 %v354
        %v598 = vunpack.c.l.b16 %v355
        %v599 = vunpack.c.l.b16 %v356
        %v600 = vunpack.c.l.b16 %v357
        %v601 = vunpack.c.l.b16 %v358
        %v602 = vunpack.c.l.b16 %v359
        %v603 = vunpack.c.l.b16 %v360
        %v604 = vunpack.c.l.b16 %v361
        %v605 = vunpack.c.l.b16 %v362
        %v606 = vunpack.c.l.b16 %v363
        %v607 = vunpack.c.l.b16 %v364
        %v608 = vunpack.c.l.b16 %v365
        %v609 = vunpack.c.l.b16 %v366
        %v610 = vpack.c.b16 %v511, %v510
        %v611 = vpack.c.b16 %v513, %v512
        %v612 = vpack.c.b16 %v515, %v514
        %v613 = vpack.c.b16 %v517, %v516
        %v614 = vpack.c.b16 %v519, %v518
        %v615 = vpack.c.b16 %v521, %v520
        %v616 = vpack.c.b16 %v523, %v522
        %v617 = vpack.c.b16 %v525, %v524
        %v618 = vpack.c.b16 %v527, %v526
        %v619 = vpack.c.b16 %v529, %v528
        %v620 = vpack.c.b16 %v531, %v530
        %v621 = vpack.c.b16 %v533, %v532
        %v622 = vpack.c.b16 %v535, %v534
        %v623 = vpack.c.b16 %v537, %v536
        %v624 = vpack.c.b16 %v539, %v538
        %v625 = vpack.c.b16 %v541, %v540
        %v626 = vpack.c.b16 %v543, %v542
        %v627 = vpack.c.b16 %v545, %v544
        %v628 = vpack.c.b16 %v547, %v546
        %v629 = vpack.c.b16 %v549, %v548
        %v630 = vpack.c.b16 %v551, %v550
        %v631 = vpack.c.b16 %v553, %v552
        %v632 = vpack.c.b16 %v555, %v554
        %v633 = vpack.c.b16 %v557, %v556
        %v634 = vpack.c.b16 %v559, %v558
        %v635 = vpack.c.b16 %v561, %v560
        %v636 = vpack.c.b16 %v563, %v562
        %v637 = vpack.c.b16 %v565, %v564
        %v638 = vpack.c.b16 %v567, %v566
        %v639 = vpack.c.b16 %v569, %v568
        %v640 = vpack.c.b16 %v571, %v570
        %v641 = vpack.c.b16 %v573, %v572
        %v642 = vpack.c.b16 %v575, %v574
        %v643 = vpack.c.b16 %v577, %v576
        %v644 = vpack.c.b16 %v579, %v578
        %v645 = vpack.c.b16 %v581, %v580
        %v646 = vpack.c.b16 %v583, %v582
        %v647 = vpack.c.b16 %v585, %v584
        %v648 = vpack.c.b16 %v587, %v586
        %v649 = vpack.c.b16 %v589, %v588
        %v650 = vpack.c.b16 %v591, %v590
        %v651 = vpack.c.b16 %v593, %v592
        %v652 = vpack.c.b16 %v595, %v594
        %v653 = vpack.c.b16 %v597, %v596
        %v654 = vpack.c.b16 %v599, %v598
        %v655 = vpack.c.b16 %v601, %v600
        %v656 = vpack.c.b16 %v603, %v602
        %v657 = vpack.c.b16 %v605, %v604
        %v658 = vpack.c.b16 %v607, %v606
        %v659 = vpack.c.b16 %v609, %v608
        %vm710 = vcmask 261120
        %v712 = vsel %vm710, %v403, 0
        %714 = vmatpush.bf16.msra.mxu0 %v617
        %715 = vmatpush.bf16.msra.mxu0 %v616
        %716 = vmatpush.bf16.msra.mxu0 %v615
        %717 = vmatpush.bf16.msra.mxu0 %v614
        %718 = vmatpush.bf16.msra.mxu0 %v613
        %719 = vmatpush.bf16.msra.mxu0 %v612
        %720 = vmatpush.bf16.msra.mxu0 %v611
        %721 = vmatpush.bf16.msra.mxu0 %v610
        %722 = vmatmul.bf16.gmra.mxu0 %v397
        %v723 = vpop.f32.mrf.mxu0
        %v724 = vadd.f32 0.0, %v723
        %v725 = vpop.f32.mrf.mxu0
        %v726 = vadd.f32 0.0, %v725
        %727 = vdwg.mxu0
        %728 = vmatpush.bf16.msra.mxu0 %v625
        %729 = vmatpush.bf16.msra.mxu0 %v624
        %730 = vmatpush.bf16.msra.mxu0 %v623
        %731 = vmatpush.bf16.msra.mxu0 %v622
        %732 = vmatpush.bf16.msra.mxu0 %v621
        %733 = vmatpush.bf16.msra.mxu0 %v620
        %734 = vmatpush.bf16.msra.mxu0 %v619
        %735 = vmatpush.bf16.msra.mxu0 %v618
        %736 = vmatmul.bf16.gmra.mxu0 %v398
        %v737 = vpop.f32.mrf.mxu0
        %v738 = vadd.f32 %v724, %v737
        %v739 = vpop.f32.mrf.mxu0
        %v740 = vadd.f32 %v726, %v739
        %741 = vdwg.mxu0
        %742 = vmatpush.bf16.msra.mxu0 %v633
        %743 = vmatpush.bf16.msra.mxu0 %v632
        %744 = vmatpush.bf16.msra.mxu0 %v631
        %745 = vmatpush.bf16.msra.mxu0 %v630
        %746 = vmatpush.bf16.msra.mxu0 %v629
        %747 = vmatpush.bf16.msra.mxu0 %v628
        %748 = vmatpush.bf16.msra.mxu0 %v627
        %749 = vmatpush.bf16.msra.mxu0 %v626
        %750 = vmatmul.bf16.gmra.mxu0 %v399
        %v751 = vpop.f32.mrf.mxu0
        %v752 = vadd.f32 %v738, %v751
        %v753 = vpop.f32.mrf.mxu0
        %v754 = vadd.f32 %v740, %v753
        %755 = vdwg.mxu0
        %756 = vmatpush.bf16.msra.mxu0 %v641
        %757 = vmatpush.bf16.msra.mxu0 %v640
        %758 = vmatpush.bf16.msra.mxu0 %v639
        %759 = vmatpush.bf16.msra.mxu0 %v638
        %760 = vmatpush.bf16.msra.mxu0 %v637
        %761 = vmatpush.bf16.msra.mxu0 %v636
        %762 = vmatpush.bf16.msra.mxu0 %v635
        %763 = vmatpush.bf16.msra.mxu0 %v634
        %764 = vmatmul.bf16.gmra.mxu0 %v400
        %v765 = vpop.f32.mrf.mxu0
        %v766 = vadd.f32 %v752, %v765
        %v767 = vpop.f32.mrf.mxu0
        %v768 = vadd.f32 %v754, %v767
        %769 = vdwg.mxu0
        %770 = vmatpush.bf16.msra.mxu0 %v649
        %771 = vmatpush.bf16.msra.mxu0 %v648
        %772 = vmatpush.bf16.msra.mxu0 %v647
        %773 = vmatpush.bf16.msra.mxu0 %v646
        %774 = vmatpush.bf16.msra.mxu0 %v645
        %775 = vmatpush.bf16.msra.mxu0 %v644
        %776 = vmatpush.bf16.msra.mxu0 %v643
        %777 = vmatpush.bf16.msra.mxu0 %v642
        %778 = vmatmul.bf16.gmra.mxu0 %v401
        %v779 = vpop.f32.mrf.mxu0
        %v780 = vadd.f32 %v766, %v779
        %v781 = vpop.f32.mrf.mxu0
        %v782 = vadd.f32 %v768, %v781
        %783 = vdwg.mxu0
        %784 = vmatpush.bf16.msra.mxu0 %v657
        %785 = vmatpush.bf16.msra.mxu0 %v656
        %786 = vmatpush.bf16.msra.mxu0 %v655
        %787 = vmatpush.bf16.msra.mxu0 %v654
        %788 = vmatpush.bf16.msra.mxu0 %v653
        %789 = vmatpush.bf16.msra.mxu0 %v652
        %790 = vmatpush.bf16.msra.mxu0 %v651
        %791 = vmatpush.bf16.msra.mxu0 %v650
        %792 = vmatmul.bf16.gmra.mxu0 %v402
        %v793 = vpop.f32.mrf.mxu0
        %v794 = vadd.f32 %v780, %v793
        %v795 = vpop.f32.mrf.mxu0
        %v796 = vadd.f32 %v782, %v795
        %797 = vdwg.mxu0
        %798 = vmatpush.bf16.msra.mxu0 0
        %799 = vmatpush.bf16.msra.mxu0 0
        %800 = vmatpush.bf16.msra.mxu0 0
        %801 = vmatpush.bf16.msra.mxu0 0
        %802 = vmatpush.bf16.msra.mxu0 0
        %803 = vmatpush.bf16.msra.mxu0 0
        %804 = vmatpush.bf16.msra.mxu0 %v659
        %805 = vmatpush.bf16.msra.mxu0 %v658
        %806 = vmatmul.bf16.gmra.mxu0 %v712
        %v807 = vpop.f32.mrf.mxu0
        %v808 = vadd.f32 %v794, %v807
        %v809 = vpop.f32.mrf.mxu0
        %v810 = vadd.f32 %v796, %v809
        %811 = vdwg.mxu0
        %s812 = scalar_lea.vmem %s238, 56 [#allocation2]
        %v813 = vld [vmem:[%s812] sm:$0xff]
        %v814 = vld [vmem:[%s812 + $0x8] sm:$0xff]
        %v815 = vld [vmem:[%s812 + $0x10] sm:$0xff]
        %v816 = vld [vmem:[%s812 + $0x18] sm:$0xf]
        %v817 = vld [vmem:[%s812 + $0x1c] sm:$0xff]
        %v818 = vld [vmem:[%s812 + $0x24] sm:$0xff]
        %v819 = vld [vmem:[%s812 + $0x2c] sm:$0xff]
        %v820 = vld [vmem:[%s812 + $0x34] sm:$0xf]
        %v829 = vunpack.c.l.b16 %v813
        %v830 = vunpack.c.h.b16 %v813
        %v831 = vunpack.c.l.b16 %v814
        %v832 = vunpack.c.h.b16 %v814
        %v833 = vunpack.c.l.b16 %v815
        %v834 = vunpack.c.h.b16 %v815
        %v835 = vunpack.c.l.b16 %v816
        %v836 = vunpack.c.l.b16 %v817
        %v837 = vunpack.c.h.b16 %v817
        %v838 = vunpack.c.l.b16 %v818
        %v839 = vunpack.c.h.b16 %v818
        %v840 = vunpack.c.l.b16 %v819
        %v841 = vunpack.c.h.b16 %v819
        %v842 = vunpack.c.l.b16 %v820
        %v843 = vpack.c.b16 %v836, %v829
        %v844 = vpack.c.b16 %v837, %v830
        %v845 = vpack.c.b16 %v838, %v831
        %v846 = vpack.c.b16 %v839, %v832
        %v847 = vpack.c.b16 %v840, %v833
        %v848 = vpack.c.b16 %v841, %v834
        %v849 = vpack.c.b16 %v842, %v835
        %v857 = vsel %vm710, %v849, 0
        %859 = vmatpush.bf16.msra.mxu0 %v617
        %860 = vmatpush.bf16.msra.mxu0 %v616
        %861 = vmatpush.bf16.msra.mxu0 %v615
        %862 = vmatpush.bf16.msra.mxu0 %v614
        %863 = vmatpush.bf16.msra.mxu0 %v613
        %864 = vmatpush.bf16.msra.mxu0 %v612
        %865 = vmatpush.bf16.msra.mxu0 %v611
        %866 = vmatpush.bf16.msra.mxu0 %v610
        %867 = vmatmul.bf16.gmra.mxu0 %v843
        %v868 = vpop.f32.mrf.mxu0
        %v869 = vadd.f32 0.0, %v868
        %v870 = vpop.f32.mrf.mxu0
        %v871 = vadd.f32 0.0, %v870
        %872 = vdwg.mxu0
        %873 = vmatpush.bf16.msra.mxu0 %v625
        %874 = vmatpush.bf16.msra.mxu0 %v624
        %875 = vmatpush.bf16.msra.mxu0 %v623
        %876 = vmatpush.bf16.msra.mxu0 %v622
        %877 = vmatpush.bf16.msra.mxu0 %v621
        %878 = vmatpush.bf16.msra.mxu0 %v620
        %879 = vmatpush.bf16.msra.mxu0 %v619
        %880 = vmatpush.bf16.msra.mxu0 %v618
        %881 = vmatmul.bf16.gmra.mxu0 %v844
        %v882 = vpop.f32.mrf.mxu0
        %v883 = vadd.f32 %v869, %v882
        %v884 = vpop.f32.mrf.mxu0
        %v885 = vadd.f32 %v871, %v884
        %886 = vdwg.mxu0
        %887 = vmatpush.bf16.msra.mxu0 %v633
        %888 = vmatpush.bf16.msra.mxu0 %v632
        %889 = vmatpush.bf16.msra.mxu0 %v631
        %890 = vmatpush.bf16.msra.mxu0 %v630
        %891 = vmatpush.bf16.msra.mxu0 %v629
        %892 = vmatpush.bf16.msra.mxu0 %v628
        %893 = vmatpush.bf16.msra.mxu0 %v627
        %894 = vmatpush.bf16.msra.mxu0 %v626
        %895 = vmatmul.bf16.gmra.mxu0 %v845
        %v896 = vpop.f32.mrf.mxu0
        %v897 = vadd.f32 %v883, %v896
        %v898 = vpop.f32.mrf.mxu0
        %v899 = vadd.f32 %v885, %v898
        %900 = vdwg.mxu0
        %901 = vmatpush.bf16.msra.mxu0 %v641
        %902 = vmatpush.bf16.msra.mxu0 %v640
        %903 = vmatpush.bf16.msra.mxu0 %v639
        %904 = vmatpush.bf16.msra.mxu0 %v638
        %905 = vmatpush.bf16.msra.mxu0 %v637
        %906 = vmatpush.bf16.msra.mxu0 %v636
        %907 = vmatpush.bf16.msra.mxu0 %v635
        %908 = vmatpush.bf16.msra.mxu0 %v634
        %909 = vmatmul.bf16.gmra.mxu0 %v846
        %v910 = vpop.f32.mrf.mxu0
        %v911 = vadd.f32 %v897, %v910
        %v912 = vpop.f32.mrf.mxu0
        %v913 = vadd.f32 %v899, %v912
        %914 = vdwg.mxu0
        %915 = vmatpush.bf16.msra.mxu0 %v649
        %916 = vmatpush.bf16.msra.mxu0 %v648
        %917 = vmatpush.bf16.msra.mxu0 %v647
        %918 = vmatpush.bf16.msra.mxu0 %v646
        %919 = vmatpush.bf16.msra.mxu0 %v645
        %920 = vmatpush.bf16.msra.mxu0 %v644
        %921 = vmatpush.bf16.msra.mxu0 %v643
        %922 = vmatpush.bf16.msra.mxu0 %v642
        %923 = vmatmul.bf16.gmra.mxu0 %v847
        %v924 = vpop.f32.mrf.mxu0
        %v925 = vadd.f32 %v911, %v924
        %v926 = vpop.f32.mrf.mxu0
        %v927 = vadd.f32 %v913, %v926
        %928 = vdwg.mxu0
        %929 = vmatpush.bf16.msra.mxu0 %v657
        %930 = vmatpush.bf16.msra.mxu0 %v656
        %931 = vmatpush.bf16.msra.mxu0 %v655
        %932 = vmatpush.bf16.msra.mxu0 %v654
        %933 = vmatpush.bf16.msra.mxu0 %v653
        %934 = vmatpush.bf16.msra.mxu0 %v652
        %935 = vmatpush.bf16.msra.mxu0 %v651
        %936 = vmatpush.bf16.msra.mxu0 %v650
        %937 = vmatmul.bf16.gmra.mxu0 %v848
        %v938 = vpop.f32.mrf.mxu0
        %v939 = vadd.f32 %v925, %v938
        %v940 = vpop.f32.mrf.mxu0
        %v941 = vadd.f32 %v927, %v940
        %942 = vdwg.mxu0
        %943 = vmatpush.bf16.msra.mxu0 0
        %944 = vmatpush.bf16.msra.mxu0 0
        %945 = vmatpush.bf16.msra.mxu0 0
        %946 = vmatpush.bf16.msra.mxu0 0
        %947 = vmatpush.bf16.msra.mxu0 0
        %948 = vmatpush.bf16.msra.mxu0 0
        %949 = vmatpush.bf16.msra.mxu0 %v659
        %950 = vmatpush.bf16.msra.mxu0 %v658
        %951 = vmatmul.bf16.gmra.mxu0 %v857
        %v952 = vpop.f32.mrf.mxu0
        %v953 = vadd.f32 %v939, %v952
        %v954 = vpop.f32.mrf.mxu0
        %v955 = vadd.f32 %v941, %v954
        %956 = vdwg.mxu0
        %v957 = vmax.f32 %v808, %v953
        %v958 = vmax.f32 %v810, %v955
        %s959 = scalar_lea.vmem %s238, 112 [#allocation2]
        %v960 = vld [vmem:[%s959] sm:$0xff]
        %v961 = vld [vmem:[%s959 + $0x8] sm:$0xff]
        %v962 = vld [vmem:[%s959 + $0x10] sm:$0xff]
        %v963 = vld [vmem:[%s959 + $0x18] sm:$0xf]
        %v964 = vld [vmem:[%s959 + $0x1c] sm:$0xff]
        %v965 = vld [vmem:[%s959 + $0x24] sm:$0xff]
        %v966 = vld [vmem:[%s959 + $0x2c] sm:$0xff]
        %v967 = vld [vmem:[%s959 + $0x34] sm:$0xf]
        %v976 = vunpack.c.l.b16 %v960
        %v977 = vunpack.c.h.b16 %v960
        %v978 = vunpack.c.l.b16 %v961
        %v979 = vunpack.c.h.b16 %v961
        %v980 = vunpack.c.l.b16 %v962
        %v981 = vunpack.c.h.b16 %v962
        %v982 = vunpack.c.l.b16 %v963
        %v983 = vunpack.c.l.b16 %v964
        %v984 = vunpack.c.h.b16 %v964
        %v985 = vunpack.c.l.b16 %v965
        %v986 = vunpack.c.h.b16 %v965
        %v987 = vunpack.c.l.b16 %v966
        %v988 = vunpack.c.h.b16 %v966
        %v989 = vunpack.c.l.b16 %v967
        %v990 = vpack.c.b16 %v983, %v976
        %v991 = vpack.c.b16 %v984, %v977
        %v992 = vpack.c.b16 %v985, %v978
        %v993 = vpack.c.b16 %v986, %v979
        %v994 = vpack.c.b16 %v987, %v980
        %v995 = vpack.c.b16 %v988, %v981
        %v996 = vpack.c.b16 %v989, %v982
        %v1004 = vsel %vm710, %v996, 0
        %1006 = vmatpush.bf16.msra.mxu0 %v617
        %1007 = vmatpush.bf16.msra.mxu0 %v616
        %1008 = vmatpush.bf16.msra.mxu0 %v615
        %1009 = vmatpush.bf16.msra.mxu0 %v614
        %1010 = vmatpush.bf16.msra.mxu0 %v613
        %1011 = vmatpush.bf16.msra.mxu0 %v612
        %1012 = vmatpush.bf16.msra.mxu0 %v611
        %1013 = vmatpush.bf16.msra.mxu0 %v610
        %1014 = vmatmul.bf16.gmra.mxu0 %v990
        %v1015 = vpop.f32.mrf.mxu0
        %v1016 = vadd.f32 0.0, %v1015
        %v1017 = vpop.f32.mrf.mxu0
        %v1018 = vadd.f32 0.0, %v1017
        %1019 = vdwg.mxu0
        %1020 = vmatpush.bf16.msra.mxu0 %v625
        %1021 = vmatpush.bf16.msra.mxu0 %v624
        %1022 = vmatpush.bf16.msra.mxu0 %v623
        %1023 = vmatpush.bf16.msra.mxu0 %v622
        %1024 = vmatpush.bf16.msra.mxu0 %v621
        %1025 = vmatpush.bf16.msra.mxu0 %v620
        %1026 = vmatpush.bf16.msra.mxu0 %v619
        %1027 = vmatpush.bf16.msra.mxu0 %v618
        %1028 = vmatmul.bf16.gmra.mxu0 %v991
        %v1029 = vpop.f32.mrf.mxu0
        %v1030 = vadd.f32 %v1016, %v1029
        %v1031 = vpop.f32.mrf.mxu0
        %v1032 = vadd.f32 %v1018, %v1031
        %1033 = vdwg.mxu0
        %1034 = vmatpush.bf16.msra.mxu0 %v633
        %1035 = vmatpush.bf16.msra.mxu0 %v632
        %1036 = vmatpush.bf16.msra.mxu0 %v631
        %1037 = vmatpush.bf16.msra.mxu0 %v630
        %1038 = vmatpush.bf16.msra.mxu0 %v629
        %1039 = vmatpush.bf16.msra.mxu0 %v628
        %1040 = vmatpush.bf16.msra.mxu0 %v627
        %1041 = vmatpush.bf16.msra.mxu0 %v626
        %1042 = vmatmul.bf16.gmra.mxu0 %v992
        %v1043 = vpop.f32.mrf.mxu0
        %v1044 = vadd.f32 %v1030, %v1043
        %v1045 = vpop.f32.mrf.mxu0
        %v1046 = vadd.f32 %v1032, %v1045
        %1047 = vdwg.mxu0
        %1048 = vmatpush.bf16.msra.mxu0 %v641
        %1049 = vmatpush.bf16.msra.mxu0 %v640
        %1050 = vmatpush.bf16.msra.mxu0 %v639
        %1051 = vmatpush.bf16.msra.mxu0 %v638
        %1052 = vmatpush.bf16.msra.mxu0 %v637
        %1053 = vmatpush.bf16.msra.mxu0 %v636
        %1054 = vmatpush.bf16.msra.mxu0 %v635
        %1055 = vmatpush.bf16.msra.mxu0 %v634
        %1056 = vmatmul.bf16.gmra.mxu0 %v993
        %v1057 = vpop.f32.mrf.mxu0
        %v1058 = vadd.f32 %v1044, %v1057
        %v1059 = vpop.f32.mrf.mxu0
        %v1060 = vadd.f32 %v1046, %v1059
        %1061 = vdwg.mxu0
        %1062 = vmatpush.bf16.msra.mxu0 %v649
        %1063 = vmatpush.bf16.msra.mxu0 %v648
        %1064 = vmatpush.bf16.msra.mxu0 %v647
        %1065 = vmatpush.bf16.msra.mxu0 %v646
        %1066 = vmatpush.bf16.msra.mxu0 %v645
        %1067 = vmatpush.bf16.msra.mxu0 %v644
        %1068 = vmatpush.bf16.msra.mxu0 %v643
        %1069 = vmatpush.bf16.msra.mxu0 %v642
        %1070 = vmatmul.bf16.gmra.mxu0 %v994
        %v1071 = vpop.f32.mrf.mxu0
        %v1072 = vadd.f32 %v1058, %v1071
        %v1073 = vpop.f32.mrf.mxu0
        %v1074 = vadd.f32 %v1060, %v1073
        %1075 = vdwg.mxu0
        %1076 = vmatpush.bf16.msra.mxu0 %v657
        %1077 = vmatpush.bf16.msra.mxu0 %v656
        %1078 = vmatpush.bf16.msra.mxu0 %v655
        %1079 = vmatpush.bf16.msra.mxu0 %v654
        %1080 = vmatpush.bf16.msra.mxu0 %v653
        %1081 = vmatpush.bf16.msra.mxu0 %v652
        %1082 = vmatpush.bf16.msra.mxu0 %v651
        %1083 = vmatpush.bf16.msra.mxu0 %v650
        %1084 = vmatmul.bf16.gmra.mxu0 %v995
        %v1085 = vpop.f32.mrf.mxu0
        %v1086 = vadd.f32 %v1072, %v1085
        %v1087 = vpop.f32.mrf.mxu0
        %v1088 = vadd.f32 %v1074, %v1087
        %1089 = vdwg.mxu0
        %1090 = vmatpush.bf16.msra.mxu0 0
        %1091 = vmatpush.bf16.msra.mxu0 0
        %1092 = vmatpush.bf16.msra.mxu0 0
        %1093 = vmatpush.bf16.msra.mxu0 0
        %1094 = vmatpush.bf16.msra.mxu0 0
        %1095 = vmatpush.bf16.msra.mxu0 0
        %1096 = vmatpush.bf16.msra.mxu0 %v659
        %1097 = vmatpush.bf16.msra.mxu0 %v658
        %1098 = vmatmul.bf16.gmra.mxu0 %v1004
        %v1099 = vpop.f32.mrf.mxu0
        %v1100 = vadd.f32 %v1086, %v1099
        %v1101 = vpop.f32.mrf.mxu0
        %v1102 = vadd.f32 %v1088, %v1101
        %1103 = vdwg.mxu0
        %v1104 = vmax.f32 %v957, %v1100
        %v1105 = vmax.f32 %v958, %v1102
        %s1106 = scalar_lea.vmem %s238, 168 [#allocation2]
        %v1107 = vld [vmem:[%s1106] sm:$0xff]
        %v1108 = vld [vmem:[%s1106 + $0x8] sm:$0xff]
        %v1109 = vld [vmem:[%s1106 + $0x10] sm:$0xff]
        %v1110 = vld [vmem:[%s1106 + $0x18] sm:$0xf]
        %v1111 = vld [vmem:[%s1106 + $0x1c] sm:$0xff]
        %v1112 = vld [vmem:[%s1106 + $0x24] sm:$0xff]
        %v1113 = vld [vmem:[%s1106 + $0x2c] sm:$0xff]
        %v1114 = vld [vmem:[%s1106 + $0x34] sm:$0xf]
        %v1123 = vunpack.c.l.b16 %v1107
        %v1124 = vunpack.c.h.b16 %v1107
        %v1125 = vunpack.c.l.b16 %v1108
        %v1126 = vunpack.c.h.b16 %v1108
        %v1127 = vunpack.c.l.b16 %v1109
        %v1128 = vunpack.c.h.b16 %v1109
        %v1129 = vunpack.c.l.b16 %v1110
        %v1130 = vunpack.c.l.b16 %v1111
        %v1131 = vunpack.c.h.b16 %v1111
        %v1132 = vunpack.c.l.b16 %v1112
        %v1133 = vunpack.c.h.b16 %v1112
        %v1134 = vunpack.c.l.b16 %v1113
        %v1135 = vunpack.c.h.b16 %v1113
        %v1136 = vunpack.c.l.b16 %v1114
        %v1137 = vpack.c.b16 %v1130, %v1123
        %v1138 = vpack.c.b16 %v1131, %v1124
        %v1139 = vpack.c.b16 %v1132, %v1125
        %v1140 = vpack.c.b16 %v1133, %v1126
        %v1141 = vpack.c.b16 %v1134, %v1127
        %v1142 = vpack.c.b16 %v1135, %v1128
        %v1143 = vpack.c.b16 %v1136, %v1129
        %v1151 = vsel %vm710, %v1143, 0
        %1153 = vmatpush.bf16.msra.mxu0 %v617
        %1154 = vmatpush.bf16.msra.mxu0 %v616
        %1155 = vmatpush.bf16.msra.mxu0 %v615
        %1156 = vmatpush.bf16.msra.mxu0 %v614
        %1157 = vmatpush.bf16.msra.mxu0 %v613
        %1158 = vmatpush.bf16.msra.mxu0 %v612
        %1159 = vmatpush.bf16.msra.mxu0 %v611
        %1160 = vmatpush.bf16.msra.mxu0 %v610
        %1161 = vmatmul.bf16.gmra.mxu0 %v1137
        %v1162 = vpop.f32.mrf.mxu0
        %v1163 = vadd.f32 0.0, %v1162
        %v1164 = vpop.f32.mrf.mxu0
        %v1165 = vadd.f32 0.0, %v1164
        %1166 = vdwg.mxu0
        %1167 = vmatpush.bf16.msra.mxu0 %v625
        %1168 = vmatpush.bf16.msra.mxu0 %v624
        %1169 = vmatpush.bf16.msra.mxu0 %v623
        %1170 = vmatpush.bf16.msra.mxu0 %v622
        %1171 = vmatpush.bf16.msra.mxu0 %v621
        %1172 = vmatpush.bf16.msra.mxu0 %v620
        %1173 = vmatpush.bf16.msra.mxu0 %v619
        %1174 = vmatpush.bf16.msra.mxu0 %v618
        %1175 = vmatmul.bf16.gmra.mxu0 %v1138
        %v1176 = vpop.f32.mrf.mxu0
        %v1177 = vadd.f32 %v1163, %v1176
        %v1178 = vpop.f32.mrf.mxu0
        %v1179 = vadd.f32 %v1165, %v1178
        %1180 = vdwg.mxu0
        %1181 = vmatpush.bf16.msra.mxu0 %v633
        %1182 = vmatpush.bf16.msra.mxu0 %v632
        %1183 = vmatpush.bf16.msra.mxu0 %v631
        %1184 = vmatpush.bf16.msra.mxu0 %v630
        %1185 = vmatpush.bf16.msra.mxu0 %v629
        %1186 = vmatpush.bf16.msra.mxu0 %v628
        %1187 = vmatpush.bf16.msra.mxu0 %v627
        %1188 = vmatpush.bf16.msra.mxu0 %v626
        %1189 = vmatmul.bf16.gmra.mxu0 %v1139
        %v1190 = vpop.f32.mrf.mxu0
        %v1191 = vadd.f32 %v1177, %v1190
        %v1192 = vpop.f32.mrf.mxu0
        %v1193 = vadd.f32 %v1179, %v1192
        %1194 = vdwg.mxu0
        %1195 = vmatpush.bf16.msra.mxu0 %v641
        %1196 = vmatpush.bf16.msra.mxu0 %v640
        %1197 = vmatpush.bf16.msra.mxu0 %v639
        %1198 = vmatpush.bf16.msra.mxu0 %v638
        %1199 = vmatpush.bf16.msra.mxu0 %v637
        %1200 = vmatpush.bf16.msra.mxu0 %v636
        %1201 = vmatpush.bf16.msra.mxu0 %v635
        %1202 = vmatpush.bf16.msra.mxu0 %v634
        %1203 = vmatmul.bf16.gmra.mxu0 %v1140
        %v1204 = vpop.f32.mrf.mxu0
        %v1205 = vadd.f32 %v1191, %v1204
        %v1206 = vpop.f32.mrf.mxu0
        %v1207 = vadd.f32 %v1193, %v1206
        %1208 = vdwg.mxu0
        %1209 = vmatpush.bf16.msra.mxu0 %v649
        %1210 = vmatpush.bf16.msra.mxu0 %v648
        %1211 = vmatpush.bf16.msra.mxu0 %v647
        %1212 = vmatpush.bf16.msra.mxu0 %v646
        %1213 = vmatpush.bf16.msra.mxu0 %v645
        %1214 = vmatpush.bf16.msra.mxu0 %v644
        %1215 = vmatpush.bf16.msra.mxu0 %v643
        %1216 = vmatpush.bf16.msra.mxu0 %v642
        %1217 = vmatmul.bf16.gmra.mxu0 %v1141
        %v1218 = vpop.f32.mrf.mxu0
        %v1219 = vadd.f32 %v1205, %v1218
        %v1220 = vpop.f32.mrf.mxu0
        %v1221 = vadd.f32 %v1207, %v1220
        %1222 = vdwg.mxu0
        %1223 = vmatpush.bf16.msra.mxu0 %v657
        %1224 = vmatpush.bf16.msra.mxu0 %v656
        %1225 = vmatpush.bf16.msra.mxu0 %v655
        %1226 = vmatpush.bf16.msra.mxu0 %v654
        %1227 = vmatpush.bf16.msra.mxu0 %v653
        %1228 = vmatpush.bf16.msra.mxu0 %v652
        %1229 = vmatpush.bf16.msra.mxu0 %v651
        %1230 = vmatpush.bf16.msra.mxu0 %v650
        %1231 = vmatmul.bf16.gmra.mxu0 %v1142
        %v1232 = vpop.f32.mrf.mxu0
        %v1233 = vadd.f32 %v1219, %v1232
        %v1234 = vpop.f32.mrf.mxu0
        %v1235 = vadd.f32 %v1221, %v1234
        %1236 = vdwg.mxu0
        %1237 = vmatpush.bf16.msra.mxu0 0
        %1238 = vmatpush.bf16.msra.mxu0 0
        %1239 = vmatpush.bf16.msra.mxu0 0
        %1240 = vmatpush.bf16.msra.mxu0 0
        %1241 = vmatpush.bf16.msra.mxu0 0
        %1242 = vmatpush.bf16.msra.mxu0 0
        %1243 = vmatpush.bf16.msra.mxu0 %v659
        %1244 = vmatpush.bf16.msra.mxu0 %v658
        %1245 = vmatmul.bf16.gmra.mxu0 %v1151
        %v1246 = vpop.f32.mrf.mxu0
        %v1247 = vadd.f32 %v1233, %v1246
        %v1248 = vpop.f32.mrf.mxu0
        %v1249 = vadd.f32 %v1235, %v1248
        %1250 = vdwg.mxu0
        %v1251 = vmax.f32 %v1104, %v1247
        %v1252 = vmax.f32 %v1105, %v1249
        %v1253 = vld [vmem:[%s2] sm:$0x1]
        %v1255 = vperm.slane %v1253, 0
        %v1257 = vadd.f32 %v1251, %v1255
        %v1258 = vadd.f32 %v1252, %v1255
        %v1259 = vmax.f32 %v1257, 0.0
        %v1260 = vmax.f32 %v1258, 0.0
        %v1261 = vpack.c.bf16 %v1259, %v1259
        %v1262 = vpack.c.bf16 %v1260, %v1260
        %1263 = vst [vmem:[%s264] sm:$0xf] %v1261
        %1264 = vst [vmem:[%s264 + $0x4] sm:$0xf] %v1262
        %s1265 = smul.u32 2, %s14
        %p1266 = scmp.lt.s32.totalorder %s1265, 3
        %s1267 = scalar_select %p1266, %s1265, 3
        %s1268 = smul.addr %s1267, 4
        %s1269 = scalar_lea.vmem %s3, %s1268
        // Predicated region
        $region59: #{net_forward.4} parent=53 // pred_check
          %p1270 = pneg %p100
        $region60: #{net_forward.4} parent=53 // pred_check_branch
          %1272 = sbr.rel (%p1270) target = $region62
        $region61: #{net_forward.4} parent=53 // pred_region
          %s1273 = smul.u32 2, %s14
        $region62: #{net_forward.4} parent=53 // pred_fallthru
          _
      $region54: #{net_forward.4} parent=5 // pred_fallthru
        _
      %p1274 = scmp.le.s32.totalorder 2, %s9
      // Predicated region
      $region63: #{net_forward.4} parent=5 // pred_check
        %p1275 = pneg %p1274
      $region64: #{net_forward.4} parent=5 // pred_check_branch
        %1277 = sbr.rel (%p1275) target = $region66
      $region65: #{net_forward.4} parent=5 // pred_region
        %s1278 = ssub.s32 %s9, 2
        // Predicated region
        $region67: #{net_forward.4} parent=65 // pred_check
          %p1279 = pneg %p106
        $region68: #{net_forward.4} parent=65 // pred_check_branch
          %1281 = sbr.rel (%p1279) target = $region70
        $region69: #{net_forward.4} parent=65 // pred_region
          %s1282 = smul.u32 2, %s15
          %p1283 = scmp.lt.s32.totalorder %s1282, 3
          %s1284 = scalar_select %p1283, %s1282, 3
          %s1285 = smul.addr %s1284, 4
          %s1286 = scalar_lea.vmem %s3, %s1285
        $region70: #{net_forward.4} parent=65 // pred_fallthru
          _
      $region66: #{net_forward.4} parent=5 // pred_fallthru
        _
    $region6: #{net_forward.4} parent=1 // loop_footer
      %s13 = sadd.s32 1, %s9
    $region7: #{net_forward.4} parent=1 // loop_footer_branch
      %8 = sbr.rel target = $region3
    $region8: #{net_forward.4} parent=1 // loop_exit
      _

// kernel: net_forward.5
$region0: #{net_forward.5}
  #allocation0 [shape = 'u32[]', space=smem, size = 0x4, offset = 0x4, fixed_abs, tag = 'smem constant byte address 0x4 - core index']
  #allocation1 [shape = 'u32[72,128]{1,0:T(1,128)}', space=vmem, size = 0x9000, scoped, tag = 'internal scratch']
  %s0 = inlined_call_operand.vmem [shape: bf16[2,1024], index: 0, kind: input, shape index: {}]
  %s1 = inlined_call_operand.vmem [shape: bf16[1024,1024], index: 1, kind: input, shape index: {}]
  %s2 = inlined_call_operand.vmem [shape: f32[1,1024], index: 2, kind: input, shape index: {}]
  %s3 = inlined_call_operand.vmem [shape: bf16[1024,128], index: 3, kind: input, shape index: {}]
  %s4 = inlined_call_operand.vmem [shape: f32[1,128], index: 4, kind: input, shape index: {}]
  %s5 = inlined_call_operand.hbm [shape: f32[2,128], index: 5, kind: output, shape index: {}]
  %s6 = sld [smem:[#allocation0]]
  $region30: #{net_forward.5} parent=0
    _
  %s8 = ssub.s32 1, %s6
  %s9 = scalar_select 0, %s8, %s6
  $region1: #{net_forward.5} parent=0
    #allocation2 [shape = 'u8[1024]{0}', space=vmem, size = 0x400, scoped, tag = 'output window, operand 0, single buffered']
    #allocation3 [shape = 's32[1]{0}', space=sflag, size = 0x4, scoped, tag = 'scoped memory for net_forward.5']
    %10 = vsyncpa [#allocation3], 0
    // Predicated region
    $region2: #{net_forward.5} parent=1 // pred_check
      _
    $region3: #{net_forward.5} parent=1 // pred_check_branch
      %12 = sbr.rel (0) target = $region5
    $region4: #{net_forward.5} parent=1 // pred_region
      _
    $region5: #{net_forward.5} parent=1 // pred_fallthru
      _
    // Predicated region
    $region6: #{net_forward.5} parent=1 // pred_check
      _
    $region7: #{net_forward.5} parent=1 // pred_check_branch
      %14 = sbr.rel (0) target = $region9
    $region8: #{net_forward.5} parent=1 // pred_region
      _
    $region9: #{net_forward.5} parent=1 // pred_fallthru
      _
    // Predicated region
    $region10: #{net_forward.5} parent=1 // pred_check
      _
    $region11: #{net_forward.5} parent=1 // pred_check_branch
      %16 = sbr.rel (0) target = $region13
    $region12: #{net_forward.5} parent=1 // pred_region
      _
    $region13: #{net_forward.5} parent=1 // pred_fallthru
      _
    // Predicated region
    $region14: #{net_forward.5} parent=1 // pred_check
      _
    $region15: #{net_forward.5} parent=1 // pred_check_branch
      %18 = sbr.rel (0) target = $region17
    $region16: #{net_forward.5} parent=1 // pred_region
      _
    $region17: #{net_forward.5} parent=1 // pred_fallthru
      _
    // Predicated region
    $region18: #{net_forward.5} parent=1 // pred_check
      _
    $region19: #{net_forward.5} parent=1 // pred_check_branch
      %20 = sbr.rel (0) target = $region21
    $region20: #{net_forward.5} parent=1 // pred_region
      _
    $region21: #{net_forward.5} parent=1 // pred_fallthru
      _
    %v21 = vld [vmem:[%s0] sm:$0xff]
    %v22 = vld [vmem:[%s1] sm:$0xff]
    %v23 = vld [vmem:[%s1 + $0x8] sm:$0xff]
    %v24 = vld [vmem:[%s1 + $0x10] sm:$0xff]
    %v25 = vld [vmem:[%s1 + $0x18] sm:$0xff]
    %v26 = vld [vmem:[%s1 + $0x20] sm:$0xff]
    %v27 = vld [vmem:[%s1 + $0x28] sm:$0xff]
    %v28 = vld [vmem:[%s1 + $0x30] sm:$0xff]
    %v29 = vld [vmem:[%s1 + $0x38] sm:$0xff]
    %v30 = vld [vmem:[%s1 + $0x40] sm:$0xff]
    %v31 = vld [vmem:[%s1 + $0x48] sm:$0xff]
    %v32 = vld [vmem:[%s1 + $0x50] sm:$0xff]
    %v33 = vld [vmem:[%s1 + $0x58] sm:$0xff]
    %v34 = vld [vmem:[%s1 + $0x60] sm:$0xff]
    %v35 = vld [vmem:[%s1 + $0x68] sm:$0xff]
    %v36 = vld [vmem:[%s1 + $0x70] sm:$0xff]
    %v37 = vld [vmem:[%s1 + $0x78] sm:$0xff]
    %v38 = vld [vmem:[%s1 + $0x80] sm:$0xff]
    %v39 = vld [vmem:[%s1 + $0x88] sm:$0xff]
    %v40 = vld [vmem:[%s1 + $0x90] sm:$0xff]
    %v41 = vld [vmem:[%s1 + $0x98] sm:$0xff]
    %v42 = vld [vmem:[%s1 + $0xa0] sm:$0xff]
    %v43 = vld [vmem:[%s1 + $0xa8] sm:$0xff]
    %v44 = vld [vmem:[%s1 + $0xb0] sm:$0xff]
    %v45 = vld [vmem:[%s1 + $0xb8] sm:$0xff]
    %v46 = vld [vmem:[%s1 + $0xc0] sm:$0xff]
    %v47 = vld [vmem:[%s1 + $0xc8] sm:$0xff]
    %v48 = vld [vmem:[%s1 + $0xd0] sm:$0xff]
    %v49 = vld [vmem:[%s1 + $0xd8] sm:$0xff]
    %v50 = vld [vmem:[%s1 + $0xe0] sm:$0xff]
    %v51 = vld [vmem:[%s1 + $0xe8] sm:$0xff]
    %v52 = vld [vmem:[%s1 + $0xf0] sm:$0xff]
    %v53 = vld [vmem:[%s1 + $0xf8] sm:$0xff]
    %v54 = vld [vmem:[%s1 + $0x100] sm:$0xff]
    %v55 = vld [vmem:[%s1 + $0x108] sm:$0xff]
    %v56 = vld [vmem:[%s1 + $0x110] sm:$0xff]
    %v57 = vld [vmem:[%s1 + $0x118] sm:$0xff]
    %v58 = vld [vmem:[%s1 + $0x120] sm:$0xff]
    %v59 = vld [vmem:[%s1 + $0x128] sm:$0xff]
    %v60 = vld [vmem:[%s1 + $0x130] sm:$0xff]
    %v61 = vld [vmem:[%s1 + $0x138] sm:$0xff]
    %v62 = vld [vmem:[%s1 + $0x140] sm:$0xff]
    %v63 = vld [vmem:[%s1 + $0x148] sm:$0xff]
    %v64 = vld [vmem:[%s1 + $0x150] sm:$0xff]
    %v65 = vld [vmem:[%s1 + $0x158] sm:$0xff]
    %v66 = vld [vmem:[%s1 + $0x160] sm:$0xff]
    %v67 = vld [vmem:[%s1 + $0x168] sm:$0xff]
    %v68 = vld [vmem:[%s1 + $0x170] sm:$0xff]
    %v69 = vld [vmem:[%s1 + $0x178] sm:$0xff]
    %v70 = vld [vmem:[%s1 + $0x180] sm:$0xff]
    %v71 = vld [vmem:[%s1 + $0x188] sm:$0xff]
    %v72 = vld [vmem:[%s1 + $0x190] sm:$0xff]
    %v73 = vld [vmem:[%s1 + $0x198] sm:$0xff]
    %v74 = vld [vmem:[%s1 + $0x1a0] sm:$0xff]
    %v75 = vld [vmem:[%s1 + $0x1a8] sm:$0xff]
    %v76 = vld [vmem:[%s1 + $0x1b0] sm:$0xff]
    %v77 = vld [vmem:[%s1 + $0x1b8] sm:$0xff]
    %v78 = vld [vmem:[%s1 + $0x1c0] sm:$0xff]
    %v79 = vld [vmem:[%s1 + $0x1c8] sm:$0xff]
    %v80 = vld [vmem:[%s1 + $0x1d0] sm:$0xff]
    %v81 = vld [vmem:[%s1 + $0x1d8] sm:$0xff]
    %v82 = vld [vmem:[%s1 + $0x1e0] sm:$0xff]
    %v83 = vld [vmem:[%s1 + $0x1e8] sm:$0xff]
    %v84 = vld [vmem:[%s1 + $0x1f0] sm:$0xff]
    %v85 = vld [vmem:[%s1 + $0x1f8] sm:$0xff]
    %v86 = vld [vmem:[%s1 + $0x200] sm:$0xff]
    %v87 = vld [vmem:[%s1 + $0x208] sm:$0xff]
    %v88 = vld [vmem:[%s1 + $0x210] sm:$0xff]
    %v89 = vld [vmem:[%s1 + $0x218] sm:$0xff]
    %v90 = vld [vmem:[%s1 + $0x220] sm:$0xff]
    %v91 = vld [vmem:[%s1 + $0x228] sm:$0xff]
    %v92 = vld [vmem:[%s1 + $0x230] sm:$0xff]
    %v93 = vld [vmem:[%s1 + $0x238] sm:$0xff]
    %v94 = vld [vmem:[%s1 + $0x240] sm:$0xff]
    %v95 = vld [vmem:[%s1 + $0x248] sm:$0xff]
    %v96 = vld [vmem:[%s1 + $0x250] sm:$0xff]
    %v97 = vld [vmem:[%s1 + $0x258] sm:$0xff]
    %v98 = vld [vmem:[%s1 + $0x260] sm:$0xff]
    %v99 = vld [vmem:[%s1 + $0x268] sm:$0xff]
    %v100 = vld [vmem:[%s1 + $0x270] sm:$0xff]
    %v101 = vld [vmem:[%s1 + $0x278] sm:$0xff]
    %v102 = vld [vmem:[%s1 + $0x280] sm:$0xff]
    %v103 = vld [vmem:[%s1 + $0x288] sm:$0xff]
    %v104 = vld [vmem:[%s1 + $0x290] sm:$0xff]
    %v105 = vld [vmem:[%s1 + $0x298] sm:$0xff]
    %v106 = vld [vmem:[%s1 + $0x2a0] sm:$0xff]
    %v107 = vld [vmem:[%s1 + $0x2a8] sm:$0xff]
    %v108 = vld [vmem:[%s1 + $0x2b0] sm:$0xff]
    %v109 = vld [vmem:[%s1 + $0x2b8] sm:$0xff]
    %v110 = vld [vmem:[%s1 + $0x2c0] sm:$0xff]
    %v111 = vld [vmem:[%s1 + $0x2c8] sm:$0xff]
    %v112 = vld [vmem:[%s1 + $0x2d0] sm:$0xff]
    %v113 = vld [vmem:[%s1 + $0x2d8] sm:$0xff]
    %v114 = vld [vmem:[%s1 + $0x2e0] sm:$0xff]
    %v115 = vld [vmem:[%s1 + $0x2e8] sm:$0xff]
    %v116 = vld [vmem:[%s1 + $0x2f0] sm:$0xff]
    %v117 = vld [vmem:[%s1 + $0x2f8] sm:$0xff]
    %v118 = vld [vmem:[%s1 + $0x300] sm:$0xff]
    %v119 = vld [vmem:[%s1 + $0x308] sm:$0xff]
    %v120 = vld [vmem:[%s1 + $0x310] sm:$0xff]
    %v121 = vld [vmem:[%s1 + $0x318] sm:$0xff]
    %v122 = vld [vmem:[%s1 + $0x320] sm:$0xff]
    %v123 = vld [vmem:[%s1 + $0x328] sm:$0xff]
    %v124 = vld [vmem:[%s1 + $0x330] sm:$0xff]
    %v125 = vld [vmem:[%s1 + $0x338] sm:$0xff]
    %v126 = vld [vmem:[%s1 + $0x340] sm:$0xff]
    %v127 = vld [vmem:[%s1 + $0x348] sm:$0xff]
    %v128 = vld [vmem:[%s1 + $0x350] sm:$0xff]
    %v129 = vld [vmem:[%s1 + $0x358] sm:$0xff]
    %v130 = vld [vmem:[%s1 + $0x360] sm:$0xff]
    %v131 = vld [vmem:[%s1 + $0x368] sm:$0xff]
    %v132 = vld [vmem:[%s1 + $0x370] sm:$0xff]
    %v133 = vld [vmem:[%s1 + $0x378] sm:$0xff]
    %v134 = vld [vmem:[%s1 + $0x380] sm:$0xff]
    %v135 = vld [vmem:[%s1 + $0x388] sm:$0xff]
    %v136 = vld [vmem:[%s1 + $0x390] sm:$0xff]
    %v137 = vld [vmem:[%s1 + $0x398] sm:$0xff]
    %v138 = vld [vmem:[%s1 + $0x3a0] sm:$0xff]
    %v139 = vld [vmem:[%s1 + $0x3a8] sm:$0xff]
    %v140 = vld [vmem:[%s1 + $0x3b0] sm:$0xff]
    %v141 = vld [vmem:[%s1 + $0x3b8] sm:$0xff]
    %v142 = vld [vmem:[%s1 + $0x3c0] sm:$0xff]
    %v143 = vld [vmem:[%s1 + $0x3c8] sm:$0xff]
    %v144 = vld [vmem:[%s1 + $0x3d0] sm:$0xff]
    %v145 = vld [vmem:[%s1 + $0x3d8] sm:$0xff]
    %v146 = vld [vmem:[%s1 + $0x3e0] sm:$0xff]
    %v147 = vld [vmem:[%s1 + $0x3e8] sm:$0xff]
    %v148 = vld [vmem:[%s1 + $0x3f0] sm:$0xff]
    %v149 = vld [vmem:[%s1 + $0x3f8] sm:$0xff]
    %v150 = vld [vmem:[%s1 + $0x400] sm:$0xff]
    %v151 = vld [vmem:[%s1 + $0x408] sm:$0xff]
    %v152 = vld [vmem:[%s1 + $0x410] sm:$0xff]
    %v153 = vld [vmem:[%s1 + $0x418] sm:$0xff]
    %v154 = vld [vmem:[%s1 + $0x420] sm:$0xff]
    %v155 = vld [vmem:[%s1 + $0x428] sm:$0xff]
    %v156 = vld [vmem:[%s1 + $0x430] sm:$0xff]
    %v157 = vld [vmem:[%s1 + $0x438] sm:$0xff]
    %v158 = vld [vmem:[%s1 + $0x440] sm:$0xff]
    %v159 = vld [vmem:[%s1 + $0x448] sm:$0xff]
    %v160 = vld [vmem:[%s1 + $0x450] sm:$0xff]
    %v161 = vld [vmem:[%s1 + $0x458] sm:$0xff]
    %v162 = vld [vmem:[%s1 + $0x460] sm:$0xff]
    %v163 = vld [vmem:[%s1 + $0x468] sm:$0xff]
    %v164 = vld [vmem:[%s1 + $0x470] sm:$0xff]
    %v165 = vld [vmem:[%s1 + $0x478] sm:$0xff]
    %v166 = vld [vmem:[%s1 + $0x480] sm:$0xff]
    %v167 = vld [vmem:[%s1 + $0x488] sm:$0xff]
    %v168 = vld [vmem:[%s1 + $0x490] sm:$0xff]
    %v169 = vld [vmem:[%s1 + $0x498] sm:$0xff]
    %v170 = vld [vmem:[%s1 + $0x4a0] sm:$0xff]
    %v171 = vld [vmem:[%s1 + $0x4a8] sm:$0xff]
    %v172 = vld [vmem:[%s1 + $0x4b0] sm:$0xff]
    %v173 = vld [vmem:[%s1 + $0x4b8] sm:$0xff]
    %v174 = vld [vmem:[%s1 + $0x4c0] sm:$0xff]
    %v175 = vld [vmem:[%s1 + $0x4c8] sm:$0xff]
    %v176 = vld [vmem:[%s1 + $0x4d0] sm:$0xff]
    %v177 = vld [vmem:[%s1 + $0x4d8] sm:$0xff]
    %v178 = vld [vmem:[%s1 + $0x4e0] sm:$0xff]
    %v179 = vld [vmem:[%s1 + $0x4e8] sm:$0xff]
    %v180 = vld [vmem:[%s1 + $0x4f0] sm:$0xff]
    %v181 = vld [vmem:[%s1 + $0x4f8] sm:$0xff]
    %v182 = vld [vmem:[%s1 + $0x500] sm:$0xff]
    %v183 = vld [vmem:[%s1 + $0x508] sm:$0xff]
    %v184 = vld [vmem:[%s1 + $0x510] sm:$0xff]
    %v185 = vld [vmem:[%s1 + $0x518] sm:$0xff]
    %v186 = vld [vmem:[%s1 + $0x520] sm:$0xff]
    %v187 = vld [vmem:[%s1 + $0x528] sm:$0xff]
    %v188 = vld [vmem:[%s1 + $0x530] sm:$0xff]
    %v189 = vld [vmem:[%s1 + $0x538] sm:$0xff]
    %v190 = vld [vmem:[%s1 + $0x540] sm:$0xff]
    %v191 = vld [vmem:[%s1 + $0x548] sm:$0xff]
    %v192 = vld [vmem:[%s1 + $0x550] sm:$0xff]
    %v193 = vld [vmem:[%s1 + $0x558] sm:$0xff]
    %v194 = vld [vmem:[%s1 + $0x560] sm:$0xff]
    %v195 = vld [vmem:[%s1 + $0x568] sm:$0xff]
    %v196 = vld [vmem:[%s1 + $0x570] sm:$0xff]
    %v197 = vld [vmem:[%s1 + $0x578] sm:$0xff]
    %v198 = vld [vmem:[%s1 + $0x580] sm:$0xff]
    %v199 = vld [vmem:[%s1 + $0x588] sm:$0xff]
    %v200 = vld [vmem:[%s1 + $0x590] sm:$0xff]
    %v201 = vld [vmem:[%s1 + $0x598] sm:$0xff]
    %v202 = vld [vmem:[%s1 + $0x5a0] sm:$0xff]
    %v203 = vld [vmem:[%s1 + $0x5a8] sm:$0xff]
    %v204 = vld [vmem:[%s1 + $0x5b0] sm:$0xff]
    %v205 = vld [vmem:[%s1 + $0x5b8] sm:$0xff]
    %v206 = vld [vmem:[%s1 + $0x5c0] sm:$0xff]
    %v207 = vld [vmem:[%s1 + $0x5c8] sm:$0xff]
    %v208 = vld [vmem:[%s1 + $0x5d0] sm:$0xff]
    %v209 = vld [vmem:[%s1 + $0x5d8] sm:$0xff]
    %v210 = vld [vmem:[%s1 + $0x5e0] sm:$0xff]
    %v211 = vld [vmem:[%s1 + $0x5e8] sm:$0xff]
    %v212 = vld [vmem:[%s1 + $0x5f0] sm:$0xff]
    %v213 = vld [vmem:[%s1 + $0x5f8] sm:$0xff]
    %v214 = vld [vmem:[%s1 + $0x600] sm:$0xff]
    %v215 = vld [vmem:[%s1 + $0x608] sm:$0xff]
    %v216 = vld [vmem:[%s1 + $0x610] sm:$0xff]
    %v217 = vld [vmem:[%s1 + $0x618] sm:$0xff]
    %v218 = vld [vmem:[%s1 + $0x620] sm:$0xff]
    %v219 = vld [vmem:[%s1 + $0x628] sm:$0xff]
    %v220 = vld [vmem:[%s1 + $0x630] sm:$0xff]
    %v221 = vld [vmem:[%s1 + $0x638] sm:$0xff]
    %v222 = vld [vmem:[%s1 + $0x640] sm:$0xff]
    %v223 = vld [vmem:[%s1 + $0x648] sm:$0xff]
    %v224 = vld [vmem:[%s1 + $0x650] sm:$0xff]
    %v225 = vld [vmem:[%s1 + $0x658] sm:$0xff]
    %v226 = vld [vmem:[%s1 + $0x660] sm:$0xff]
    %v227 = vld [vmem:[%s1 + $0x668] sm:$0xff]
    %v228 = vld [vmem:[%s1 + $0x670] sm:$0xff]
    %v229 = vld [vmem:[%s1 + $0x678] sm:$0xff]
    %v230 = vld [vmem:[%s1 + $0x680] sm:$0xff]
    %v231 = vld [vmem:[%s1 + $0x688] sm:$0xff]
    %v232 = vld [vmem:[%s1 + $0x690] sm:$0xff]
    %v233 = vld [vmem:[%s1 + $0x698] sm:$0xff]
    %v234 = vld [vmem:[%s1 + $0x6a0] sm:$0xff]
    %v235 = vld [vmem:[%s1 + $0x6a8] sm:$0xff]
    %v236 = vld [vmem:[%s1 + $0x6b0] sm:$0xff]
    %v237 = vld [vmem:[%s1 + $0x6b8] sm:$0xff]
    %v238 = vld [vmem:[%s1 + $0x6c0] sm:$0xff]
    %v239 = vld [vmem:[%s1 + $0x6c8] sm:$0xff]
    %v240 = vld [vmem:[%s1 + $0x6d0] sm:$0xff]
    %v241 = vld [vmem:[%s1 + $0x6d8] sm:$0xff]
    %v242 = vld [vmem:[%s1 + $0x6e0] sm:$0xff]
    %v243 = vld [vmem:[%s1 + $0x6e8] sm:$0xff]
    %v244 = vld [vmem:[%s1 + $0x6f0] sm:$0xff]
    %v245 = vld [vmem:[%s1 + $0x6f8] sm:$0xff]
    %v246 = vld [vmem:[%s1 + $0x700] sm:$0xff]
    %v247 = vld [vmem:[%s1 + $0x708] sm:$0xff]
    %v248 = vld [vmem:[%s1 + $0x710] sm:$0xff]
    %v249 = vld [vmem:[%s1 + $0x718] sm:$0xff]
    %v250 = vld [vmem:[%s1 + $0x720] sm:$0xff]
    %v251 = vld [vmem:[%s1 + $0x728] sm:$0xff]
    %v252 = vld [vmem:[%s1 + $0x730] sm:$0xff]
    %v253 = vld [vmem:[%s1 + $0x738] sm:$0xff]
    %v254 = vld [vmem:[%s1 + $0x740] sm:$0xff]
    %v255 = vld [vmem:[%s1 + $0x748] sm:$0xff]
    %v256 = vld [vmem:[%s1 + $0x750] sm:$0xff]
    %v257 = vld [vmem:[%s1 + $0x758] sm:$0xff]
    %v258 = vld [vmem:[%s1 + $0x760] sm:$0xff]
    %v259 = vld [vmem:[%s1 + $0x768] sm:$0xff]
    %v260 = vld [vmem:[%s1 + $0x770] sm:$0xff]
    %v261 = vld [vmem:[%s1 + $0x778] sm:$0xff]
    %v262 = vld [vmem:[%s1 + $0x780] sm:$0xff]
    %v263 = vld [vmem:[%s1 + $0x788] sm:$0xff]
    %v264 = vld [vmem:[%s1 + $0x790] sm:$0xff]
    %v265 = vld [vmem:[%s1 + $0x798] sm:$0xff]
    %v266 = vld [vmem:[%s1 + $0x7a0] sm:$0xff]
    %v267 = vld [vmem:[%s1 + $0x7a8] sm:$0xff]
    %v268 = vld [vmem:[%s1 + $0x7b0] sm:$0xff]
    %v269 = vld [vmem:[%s1 + $0x7b8] sm:$0xff]
    %v270 = vld [vmem:[%s1 + $0x7c0] sm:$0xff]
    %v271 = vld [vmem:[%s1 + $0x7c8] sm:$0xff]
    %v272 = vld [vmem:[%s1 + $0x7d0] sm:$0xff]
    %v273 = vld [vmem:[%s1 + $0x7d8] sm:$0xff]
    %v274 = vld [vmem:[%s1 + $0x7e0] sm:$0xff]
    %v275 = vld [vmem:[%s1 + $0x7e8] sm:$0xff]
    %v276 = vld [vmem:[%s1 + $0x7f0] sm:$0xff]
    %v277 = vld [vmem:[%s1 + $0x7f8] sm:$0xff]
    %v278 = vld [vmem:[%s1 + $0x800] sm:$0xff]
    %v279 = vld [vmem:[%s1 + $0x808] sm:$0xff]
    %v280 = vld [vmem:[%s1 + $0x810] sm:$0xff]
    %v281 = vld [vmem:[%s1 + $0x818] sm:$0xff]
    %v282 = vld [vmem:[%s1 + $0x820] sm:$0xff]
    %v283 = vld [vmem:[%s1 + $0x828] sm:$0xff]
    %v284 = vld [vmem:[%s1 + $0x830] sm:$0xff]
    %v285 = vld [vmem:[%s1 + $0x838] sm:$0xff]
    %v286 = vld [vmem:[%s1 + $0x840] sm:$0xff]
    %v287 = vld [vmem:[%s1 + $0x848] sm:$0xff]
    %v288 = vld [vmem:[%s1 + $0x850] sm:$0xff]
    %v289 = vld [vmem:[%s1 + $0x858] sm:$0xff]
    %v290 = vld [vmem:[%s1 + $0x860] sm:$0xff]
    %v291 = vld [vmem:[%s1 + $0x868] sm:$0xff]
    %v292 = vld [vmem:[%s1 + $0x870] sm:$0xff]
    %v293 = vld [vmem:[%s1 + $0x878] sm:$0xff]
    %v294 = vld [vmem:[%s1 + $0x880] sm:$0xff]
    %v295 = vld [vmem:[%s1 + $0x888] sm:$0xff]
    %v296 = vld [vmem:[%s1 + $0x890] sm:$0xff]
    %v297 = vld [vmem:[%s1 + $0x898] sm:$0xff]
    %v298 = vld [vmem:[%s1 + $0x8a0] sm:$0xff]
    %v299 = vld [vmem:[%s1 + $0x8a8] sm:$0xff]
    %v300 = vld [vmem:[%s1 + $0x8b0] sm:$0xff]
    %v301 = vld [vmem:[%s1 + $0x8b8] sm:$0xff]
    %v302 = vld [vmem:[%s1 + $0x8c0] sm:$0xff]
    %v303 = vld [vmem:[%s1 + $0x8c8] sm:$0xff]
    %v304 = vld [vmem:[%s1 + $0x8d0] sm:$0xff]
    %v305 = vld [vmem:[%s1 + $0x8d8] sm:$0xff]
    %v306 = vld [vmem:[%s1 + $0x8e0] sm:$0xff]
    %v307 = vld [vmem:[%s1 + $0x8e8] sm:$0xff]
    %v308 = vld [vmem:[%s1 + $0x8f0] sm:$0xff]
    %v309 = vld [vmem:[%s1 + $0x8f8] sm:$0xff]
    %v310 = vld [vmem:[%s1 + $0x900] sm:$0xff]
    %v311 = vld [vmem:[%s1 + $0x908] sm:$0xff]
    %v312 = vld [vmem:[%s1 + $0x910] sm:$0xff]
    %v313 = vld [vmem:[%s1 + $0x918] sm:$0xff]
    %v314 = vld [vmem:[%s1 + $0x920] sm:$0xff]
    %v315 = vld [vmem:[%s1 + $0x928] sm:$0xff]
    %v316 = vld [vmem:[%s1 + $0x930] sm:$0xff]
    %v317 = vld [vmem:[%s1 + $0x938] sm:$0xff]
    %v318 = vld [vmem:[%s1 + $0x940] sm:$0xff]
    %v319 = vld [vmem:[%s1 + $0x948] sm:$0xff]
    %v320 = vld [vmem:[%s1 + $0x950] sm:$0xff]
    %v321 = vld [vmem:[%s1 + $0x958] sm:$0xff]
    %v322 = vld [vmem:[%s1 + $0x960] sm:$0xff]
    %v323 = vld [vmem:[%s1 + $0x968] sm:$0xff]
    %v324 = vld [vmem:[%s1 + $0x970] sm:$0xff]
    %v325 = vld [vmem:[%s1 + $0x978] sm:$0xff]
    %v326 = vld [vmem:[%s1 + $0x980] sm:$0xff]
    %v327 = vld [vmem:[%s1 + $0x988] sm:$0xff]
    %v328 = vld [vmem:[%s1 + $0x990] sm:$0xff]
    %v329 = vld [vmem:[%s1 + $0x998] sm:$0xff]
    %v330 = vld [vmem:[%s1 + $0x9a0] sm:$0xff]
    %v331 = vld [vmem:[%s1 + $0x9a8] sm:$0xff]
    %v332 = vld [vmem:[%s1 + $0x9b0] sm:$0xff]
    %v333 = vld [vmem:[%s1 + $0x9b8] sm:$0xff]
    %v334 = vld [vmem:[%s1 + $0x9c0] sm:$0xff]
    %v335 = vld [vmem:[%s1 + $0x9c8] sm:$0xff]
    %v336 = vld [vmem:[%s1 + $0x9d0] sm:$0xff]
    %v337 = vld [vmem:[%s1 + $0x9d8] sm:$0xff]
    %v338 = vld [vmem:[%s1 + $0x9e0] sm:$0xff]
    %v339 = vld [vmem:[%s1 + $0x9e8] sm:$0xff]
    %v340 = vld [vmem:[%s1 + $0x9f0] sm:$0xff]
    %v341 = vld [vmem:[%s1 + $0x9f8] sm:$0xff]
    %v342 = vld [vmem:[%s1 + $0xa00] sm:$0xff]
    %v343 = vld [vmem:[%s1 + $0xa08] sm:$0xff]
    %v344 = vld [vmem:[%s1 + $0xa10] sm:$0xff]
    %v345 = vld [vmem:[%s1 + $0xa18] sm:$0xff]
    %v346 = vld [vmem:[%s1 + $0xa20] sm:$0xff]
    %v347 = vld [vmem:[%s1 + $0xa28] sm:$0xff]
    %v348 = vld [vmem:[%s1 + $0xa30] sm:$0xff]
    %v349 = vld [vmem:[%s1 + $0xa38] sm:$0xff]
    %v350 = vld [vmem:[%s1 + $0xa40] sm:$0xff]
    %v351 = vld [vmem:[%s1 + $0xa48] sm:$0xff]
    %v352 = vld [vmem:[%s1 + $0xa50] sm:$0xff]
    %v353 = vld [vmem:[%s1 + $0xa58] sm:$0xff]
    %v354 = vld [vmem:[%s1 + $0xa60] sm:$0xff]
    %v355 = vld [vmem:[%s1 + $0xa68] sm:$0xff]
    %v356 = vld [vmem:[%s1 + $0xa70] sm:$0xff]
    %v357 = vld [vmem:[%s1 + $0xa78] sm:$0xff]
    %v358 = vld [vmem:[%s1 + $0xa80] sm:$0xff]
    %v359 = vld [vmem:[%s1 + $0xa88] sm:$0xff]
    %v360 = vld [vmem:[%s1 + $0xa90] sm:$0xff]
    %v361 = vld [vmem:[%s1 + $0xa98] sm:$0xff]
    %v362 = vld [vmem:[%s1 + $0xaa0] sm:$0xff]
    %v363 = vld [vmem:[%s1 + $0xaa8] sm:$0xff]
    %v364 = vld [vmem:[%s1 + $0xab0] sm:$0xff]
    %v365 = vld [vmem:[%s1 + $0xab8] sm:$0xff]
    %v366 = vld [vmem:[%s1 + $0xac0] sm:$0xff]
    %v367 = vld [vmem:[%s1 + $0xac8] sm:$0xff]
    %v368 = vld [vmem:[%s1 + $0xad0] sm:$0xff]
    %v369 = vld [vmem:[%s1 + $0xad8] sm:$0xff]
    %v370 = vld [vmem:[%s1 + $0xae0] sm:$0xff]
    %v371 = vld [vmem:[%s1 + $0xae8] sm:$0xff]
    %v372 = vld [vmem:[%s1 + $0xaf0] sm:$0xff]
    %v373 = vld [vmem:[%s1 + $0xaf8] sm:$0xff]
    %v374 = vld [vmem:[%s1 + $0xb00] sm:$0xff]
    %v375 = vld [vmem:[%s1 + $0xb08] sm:$0xff]
    %v376 = vld [vmem:[%s1 + $0xb10] sm:$0xff]
    %v377 = vld [vmem:[%s1 + $0xb18] sm:$0xff]
    %v378 = vld [vmem:[%s1 + $0xb20] sm:$0xff]
    %v379 = vld [vmem:[%s1 + $0xb28] sm:$0xff]
    %v380 = vld [vmem:[%s1 + $0xb30] sm:$0xff]
    %v381 = vld [vmem:[%s1 + $0xb38] sm:$0xff]
    %v382 = vld [vmem:[%s1 + $0xb40] sm:$0xff]
    %v383 = vld [vmem:[%s1 + $0xb48] sm:$0xff]
    %v384 = vld [vmem:[%s1 + $0xb50] sm:$0xff]
    %v385 = vld [vmem:[%s1 + $0xb58] sm:$0xff]
    %v386 = vld [vmem:[%s1 + $0xb60] sm:$0xff]
    %v387 = vld [vmem:[%s1 + $0xb68] sm:$0xff]
    %v388 = vld [vmem:[%s1 + $0xb70] sm:$0xff]
    %v389 = vld [vmem:[%s1 + $0xb78] sm:$0xff]
    %v390 = vld [vmem:[%s1 + $0xb80] sm:$0xff]
    %v391 = vld [vmem:[%s1 + $0xb88] sm:$0xff]
    %v392 = vld [vmem:[%s1 + $0xb90] sm:$0xff]
    %v393 = vld [vmem:[%s1 + $0xb98] sm:$0xff]
    %v394 = vld [vmem:[%s1 + $0xba0] sm:$0xff]
    %v395 = vld [vmem:[%s1 + $0xba8] sm:$0xff]
    %v396 = vld [vmem:[%s1 + $0xbb0] sm:$0xff]
    %v397 = vld [vmem:[%s1 + $0xbb8] sm:$0xff]
    %v398 = vld [vmem:[%s1 + $0xbc0] sm:$0xff]
    %v399 = vld [vmem:[%s1 + $0xbc8] sm:$0xff]
    %v400 = vld [vmem:[%s1 + $0xbd0] sm:$0xff]
    %v401 = vld [vmem:[%s1 + $0xbd8] sm:$0xff]
    %v402 = vld [vmem:[%s1 + $0xbe0] sm:$0xff]
    %v403 = vld [vmem:[%s1 + $0xbe8] sm:$0xff]
    %v404 = vld [vmem:[%s1 + $0xbf0] sm:$0xff]
    %v405 = vld [vmem:[%s1 + $0xbf8] sm:$0xff]
    %v406 = vld [vmem:[%s1 + $0xc00] sm:$0xff]
    %v407 = vld [vmem:[%s1 + $0xc08] sm:$0xff]
    %v408 = vld [vmem:[%s1 + $0xc10] sm:$0xff]
    %v409 = vld [vmem:[%s1 + $0xc18] sm:$0xff]
    %v410 = vld [vmem:[%s1 + $0xc20] sm:$0xff]
    %v411 = vld [vmem:[%s1 + $0xc28] sm:$0xff]
    %v412 = vld [vmem:[%s1 + $0xc30] sm:$0xff]
    %v413 = vld [vmem:[%s1 + $0xc38] sm:$0xff]
    %v414 = vld [vmem:[%s1 + $0xc40] sm:$0xff]
    %v415 = vld [vmem:[%s1 + $0xc48] sm:$0xff]
    %v416 = vld [vmem:[%s1 + $0xc50] sm:$0xff]
    %v417 = vld [vmem:[%s1 + $0xc58] sm:$0xff]
    %v418 = vld [vmem:[%s1 + $0xc60] sm:$0xff]
    %v419 = vld [vmem:[%s1 + $0xc68] sm:$0xff]
    %v420 = vld [vmem:[%s1 + $0xc70] sm:$0xff]
    %v421 = vld [vmem:[%s1 + $0xc78] sm:$0xff]
    %v422 = vld [vmem:[%s1 + $0xc80] sm:$0xff]
    %v423 = vld [vmem:[%s1 + $0xc88] sm:$0xff]
    %v424 = vld [vmem:[%s1 + $0xc90] sm:$0xff]
    %v425 = vld [vmem:[%s1 + $0xc98] sm:$0xff]
    %v426 = vld [vmem:[%s1 + $0xca0] sm:$0xff]
    %v427 = vld [vmem:[%s1 + $0xca8] sm:$0xff]
    %v428 = vld [vmem:[%s1 + $0xcb0] sm:$0xff]
    %v429 = vld [vmem:[%s1 + $0xcb8] sm:$0xff]
    %v430 = vld [vmem:[%s1 + $0xcc0] sm:$0xff]
    %v431 = vld [vmem:[%s1 + $0xcc8] sm:$0xff]
    %v432 = vld [vmem:[%s1 + $0xcd0] sm:$0xff]
    %v433 = vld [vmem:[%s1 + $0xcd8] sm:$0xff]
    %v434 = vld [vmem:[%s1 + $0xce0] sm:$0xff]
    %v435 = vld [vmem:[%s1 + $0xce8] sm:$0xff]
    %v436 = vld [vmem:[%s1 + $0xcf0] sm:$0xff]
    %v437 = vld [vmem:[%s1 + $0xcf8] sm:$0xff]
    %v438 = vld [vmem:[%s1 + $0xd00] sm:$0xff]
    %v439 = vld [vmem:[%s1 + $0xd08] sm:$0xff]
    %v440 = vld [vmem:[%s1 + $0xd10] sm:$0xff]
    %v441 = vld [vmem:[%s1 + $0xd18] sm:$0xff]
    %v442 = vld [vmem:[%s1 + $0xd20] sm:$0xff]
    %v443 = vld [vmem:[%s1 + $0xd28] sm:$0xff]
    %v444 = vld [vmem:[%s1 + $0xd30] sm:$0xff]
    %v445 = vld [vmem:[%s1 + $0xd38] sm:$0xff]
    %v446 = vld [vmem:[%s1 + $0xd40] sm:$0xff]
    %v447 = vld [vmem:[%s1 + $0xd48] sm:$0xff]
    %v448 = vld [vmem:[%s1 + $0xd50] sm:$0xff]
    %v449 = vld [vmem:[%s1 + $0xd58] sm:$0xff]
    %v450 = vld [vmem:[%s1 + $0xd60] sm:$0xff]
    %v451 = vld [vmem:[%s1 + $0xd68] sm:$0xff]
    %v452 = vld [vmem:[%s1 + $0xd70] sm:$0xff]
    %v453 = vld [vmem:[%s1 + $0xd78] sm:$0xff]
    %v454 = vld [vmem:[%s1 + $0xd80] sm:$0xff]
    %v455 = vld [vmem:[%s1 + $0xd88] sm:$0xff]
    %v456 = vld [vmem:[%s1 + $0xd90] sm:$0xff]
    %v457 = vld [vmem:[%s1 + $0xd98] sm:$0xff]
    %v458 = vld [vmem:[%s1 + $0xda0] sm:$0xff]
    %v459 = vld [vmem:[%s1 + $0xda8] sm:$0xff]
    %v460 = vld [vmem:[%s1 + $0xdb0] sm:$0xff]
    %v461 = vld [vmem:[%s1 + $0xdb8] sm:$0xff]
    %v462 = vld [vmem:[%s1 + $0xdc0] sm:$0xff]
    %v463 = vld [vmem:[%s1 + $0xdc8] sm:$0xff]
    %v464 = vld [vmem:[%s1 + $0xdd0] sm:$0xff]
    %v465 = vld [vmem:[%s1 + $0xdd8] sm:$0xff]
    %v466 = vld [vmem:[%s1 + $0xde0] sm:$0xff]
    %v467 = vld [vmem:[%s1 + $0xde8] sm:$0xff]
    %v468 = vld [vmem:[%s1 + $0xdf0] sm:$0xff]
    %v469 = vld [vmem:[%s1 + $0xdf8] sm:$0xff]
    %v470 = vld [vmem:[%s1 + $0xe00] sm:$0xff]
    %v471 = vld [vmem:[%s1 + $0xe08] sm:$0xff]
    %v472 = vld [vmem:[%s1 + $0xe10] sm:$0xff]
    %v473 = vld [vmem:[%s1 + $0xe18] sm:$0xff]
    %v474 = vld [vmem:[%s1 + $0xe20] sm:$0xff]
    %v475 = vld [vmem:[%s1 + $0xe28] sm:$0xff]
    %v476 = vld [vmem:[%s1 + $0xe30] sm:$0xff]
    %v477 = vld [vmem:[%s1 + $0xe38] sm:$0xff]
    %v478 = vld [vmem:[%s1 + $0xe40] sm:$0xff]
    %v479 = vld [vmem:[%s1 + $0xe48] sm:$0xff]
    %v480 = vld [vmem:[%s1 + $0xe50] sm:$0xff]
    %v481 = vld [vmem:[%s1 + $0xe58] sm:$0xff]
    %v482 = vld [vmem:[%s1 + $0xe60] sm:$0xff]
    %v483 = vld [vmem:[%s1 + $0xe68] sm:$0xff]
    %v484 = vld [vmem:[%s1 + $0xe70] sm:$0xff]
    %v485 = vld [vmem:[%s1 + $0xe78] sm:$0xff]
    %v486 = vld [vmem:[%s1 + $0xe80] sm:$0xff]
    %v487 = vld [vmem:[%s1 + $0xe88] sm:$0xff]
    %v488 = vld [vmem:[%s1 + $0xe90] sm:$0xff]
    %v489 = vld [vmem:[%s1 + $0xe98] sm:$0xff]
    %v490 = vld [vmem:[%s1 + $0xea0] sm:$0xff]
    %v491 = vld [vmem:[%s1 + $0xea8] sm:$0xff]
    %v492 = vld [vmem:[%s1 + $0xeb0] sm:$0xff]
    %v493 = vld [vmem:[%s1 + $0xeb8] sm:$0xff]
    %v494 = vld [vmem:[%s1 + $0xec0] sm:$0xff]
    %v495 = vld [vmem:[%s1 + $0xec8] sm:$0xff]
    %v496 = vld [vmem:[%s1 + $0xed0] sm:$0xff]
    %v497 = vld [vmem:[%s1 + $0xed8] sm:$0xff]
    %v498 = vld [vmem:[%s1 + $0xee0] sm:$0xff]
    %v499 = vld [vmem:[%s1 + $0xee8] sm:$0xff]
    %v500 = vld [vmem:[%s1 + $0xef0] sm:$0xff]
    %v501 = vld [vmem:[%s1 + $0xef8] sm:$0xff]
    %v502 = vld [vmem:[%s1 + $0xf00] sm:$0xff]
    %v503 = vld [vmem:[%s1 + $0xf08] sm:$0xff]
    %v504 = vld [vmem:[%s1 + $0xf10] sm:$0xff]
    %v505 = vld [vmem:[%s1 + $0xf18] sm:$0xff]
    %v506 = vld [vmem:[%s1 + $0xf20] sm:$0xff]
    %v507 = vld [vmem:[%s1 + $0xf28] sm:$0xff]
    %v508 = vld [vmem:[%s1 + $0xf30] sm:$0xff]
    %v509 = vld [vmem:[%s1 + $0xf38] sm:$0xff]
    %v510 = vld [vmem:[%s1 + $0xf40] sm:$0xff]
    %v511 = vld [vmem:[%s1 + $0xf48] sm:$0xff]
    %v512 = vld [vmem:[%s1 + $0xf50] sm:$0xff]
    %v513 = vld [vmem:[%s1 + $0xf58] sm:$0xff]
    %v514 = vld [vmem:[%s1 + $0xf60] sm:$0xff]
    %v515 = vld [vmem:[%s1 + $0xf68] sm:$0xff]
    %v516 = vld [vmem:[%s1 + $0xf70] sm:$0xff]
    %v517 = vld [vmem:[%s1 + $0xf78] sm:$0xff]
    %v518 = vld [vmem:[%s1 + $0xf80] sm:$0xff]
    %v519 = vld [vmem:[%s1 + $0xf88] sm:$0xff]
    %v520 = vld [vmem:[%s1 + $0xf90] sm:$0xff]
    %v521 = vld [vmem:[%s1 + $0xf98] sm:$0xff]
    %v522 = vld [vmem:[%s1 + $0xfa0] sm:$0xff]
    %v523 = vld [vmem:[%s1 + $0xfa8] sm:$0xff]
    %v524 = vld [vmem:[%s1 + $0xfb0] sm:$0xff]
    %v525 = vld [vmem:[%s1 + $0xfb8] sm:$0xff]
    %v526 = vld [vmem:[%s1 + $0xfc0] sm:$0xff]
    %v527 = vld [vmem:[%s1 + $0xfc8] sm:$0xff]
    %v528 = vld [vmem:[%s1 + $0xfd0] sm:$0xff]
    %v529 = vld [vmem:[%s1 + $0xfd8] sm:$0xff]
    %v530 = vld [vmem:[%s1 + $0xfe0] sm:$0xff]
    %v531 = vld [vmem:[%s1 + $0xfe8] sm:$0xff]
    %v532 = vld [vmem:[%s1 + $0xff0] sm:$0xff]
    %v533 = vld [vmem:[%s1 + $0xff8] sm:$0xff]
    %v534 = vld [vmem:[%s2] sm:$0xff]
    %v536 = vperm.slane %v534, 0
    %v537 = vperm.slane %v534, 1
    %v538 = vperm.slane %v534, 2
    %v539 = vperm.slane %v534, 3
    %v540 = vperm.slane %v534, 4
    %v541 = vperm.slane %v534, 5
    %v542 = vperm.slane %v534, 6
    %v543 = vperm.slane %v534, 7
    %553 = vst [vmem:[#allocation1] ss:$9 sm:$0xff] %v21
    %v554 = vld [vmem:[#allocation1] sm:$0xff]
    %v555 = vld [vmem:[#allocation1 + $0x9] sm:$0xff]
    %v556 = vld [vmem:[#allocation1 + $0x12] sm:$0xff]
    %v557 = vld [vmem:[#allocation1 + $0x1b] sm:$0xff]
    %v558 = vld [vmem:[#allocation1 + $0x24] sm:$0xff]
    %v559 = vld [vmem:[#allocation1 + $0x2d] sm:$0xff]
    %v560 = vld [vmem:[#allocation1 + $0x36] sm:$0xff]
    %v561 = vld [vmem:[#allocation1 + $0x3f] sm:$0xff]
    %v1082 = vunpack.c.l.b16 %v22
    %v1083 = vunpack.c.h.b16 %v22
    %v1084 = vunpack.c.l.b16 %v23
    %v1085 = vunpack.c.h.b16 %v23
    %v1086 = vunpack.c.l.b16 %v24
    %v1087 = vunpack.c.h.b16 %v24
    %v1088 = vunpack.c.l.b16 %v25
    %v1089 = vunpack.c.h.b16 %v25
    %v1090 = vunpack.c.l.b16 %v26
    %v1091 = vunpack.c.h.b16 %v26
    %v1092 = vunpack.c.l.b16 %v27
    %v1093 = vunpack.c.h.b16 %v27
    %v1094 = vunpack.c.l.b16 %v28
    %v1095 = vunpack.c.h.b16 %v28
    %v1096 = vunpack.c.l.b16 %v29
    %v1097 = vunpack.c.h.b16 %v29
    %v1098 = vunpack.c.l.b16 %v30
    %v1099 = vunpack.c.h.b16 %v30
    %v1100 = vunpack.c.l.b16 %v31
    %v1101 = vunpack.c.h.b16 %v31
    %v1102 = vunpack.c.l.b16 %v32
    %v1103 = vunpack.c.h.b16 %v32
    %v1104 = vunpack.c.l.b16 %v33
    %v1105 = vunpack.c.h.b16 %v33
    %v1106 = vunpack.c.l.b16 %v34
    %v1107 = vunpack.c.h.b16 %v34
    %v1108 = vunpack.c.l.b16 %v35
    %v1109 = vunpack.c.h.b16 %v35
    %v1110 = vunpack.c.l.b16 %v36
    %v1111 = vunpack.c.h.b16 %v36
    %v1112 = vunpack.c.l.b16 %v37
    %v1113 = vunpack.c.h.b16 %v37
    %v1114 = vunpack.c.l.b16 %v38
    %v1115 = vunpack.c.h.b16 %v38
    %v1116 = vunpack.c.l.b16 %v39
    %v1117 = vunpack.c.h.b16 %v39
    %v1118 = vunpack.c.l.b16 %v40
    %v1119 = vunpack.c.h.b16 %v40
    %v1120 = vunpack.c.l.b16 %v41
    %v1121 = vunpack.c.h.b16 %v41
    %v1122 = vunpack.c.l.b16 %v42
    %v1123 = vunpack.c.h.b16 %v42
    %v1124 = vunpack.c.l.b16 %v43
    %v1125 = vunpack.c.h.b16 %v43
    %v1126 = vunpack.c.l.b16 %v44
    %v1127 = vunpack.c.h.b16 %v44
    %v1128 = vunpack.c.l.b16 %v45
    %v1129 = vunpack.c.h.b16 %v45
    %v1130 = vunpack.c.l.b16 %v46
    %v1131 = vunpack.c.h.b16 %v46
    %v1132 = vunpack.c.l.b16 %v47
    %v1133 = vunpack.c.h.b16 %v47
    %v1134 = vunpack.c.l.b16 %v48
    %v1135 = vunpack.c.h.b16 %v48
    %v1136 = vunpack.c.l.b16 %v49
    %v1137 = vunpack.c.h.b16 %v49
    %v1138 = vunpack.c.l.b16 %v50
    %v1139 = vunpack.c.h.b16 %v50
    %v1140 = vunpack.c.l.b16 %v51
    %v1141 = vunpack.c.h.b16 %v51
    %v1142 = vunpack.c.l.b16 %v52
    %v1143 = vunpack.c.h.b16 %v52
    %v1144 = vunpack.c.l.b16 %v53
    %v1145 = vunpack.c.h.b16 %v53
    %v1146 = vunpack.c.l.b16 %v54
    %v1147 = vunpack.c.h.b16 %v54
    %v1148 = vunpack.c.l.b16 %v55
    %v1149 = vunpack.c.h.b16 %v55
    %v1150 = vunpack.c.l.b16 %v56
    %v1151 = vunpack.c.h.b16 %v56
    %v1152 = vunpack.c.l.b16 %v57
    %v1153 = vunpack.c.h.b16 %v57
    %v1154 = vunpack.c.l.b16 %v58
    %v1155 = vunpack.c.h.b16 %v58
    %v1156 = vunpack.c.l.b16 %v59
    %v1157 = vunpack.c.h.b16 %v59
    %v1158 = vunpack.c.l.b16 %v60
    %v1159 = vunpack.c.h.b16 %v60
    %v1160 = vunpack.c.l.b16 %v61
    %v1161 = vunpack.c.h.b16 %v61
    %v1162 = vunpack.c.l.b16 %v62
    %v1163 = vunpack.c.h.b16 %v62
    %v1164 = vunpack.c.l.b16 %v63
    %v1165 = vunpack.c.h.b16 %v63
    %v1166 = vunpack.c.l.b16 %v64
    %v1167 = vunpack.c.h.b16 %v64
    %v1168 = vunpack.c.l.b16 %v65
    %v1169 = vunpack.c.h.b16 %v65
    %v1170 = vunpack.c.l.b16 %v66
    %v1171 = vunpack.c.h.b16 %v66
    %v1172 = vunpack.c.l.b16 %v67
    %v1173 = vunpack.c.h.b16 %v67
    %v1174 = vunpack.c.l.b16 %v68
    %v1175 = vunpack.c.h.b16 %v68
    %v1176 = vunpack.c.l.b16 %v69
    %v1177 = vunpack.c.h.b16 %v69
    %v1178 = vunpack.c.l.b16 %v70
    %v1179 = vunpack.c.h.b16 %v70
    %v1180 = vunpack.c.l.b16 %v71
    %v1181 = vunpack.c.h.b16 %v71
    %v1182 = vunpack.c.l.b16 %v72
    %v1183 = vunpack.c.h.b16 %v72
    %v1184 = vunpack.c.l.b16 %v73
    %v1185 = vunpack.c.h.b16 %v73
    %v1186 = vunpack.c.l.b16 %v74
    %v1187 = vunpack.c.h.b16 %v74
    %v1188 = vunpack.c.l.b16 %v75
    %v1189 = vunpack.c.h.b16 %v75
    %v1190 = vunpack.c.l.b16 %v76
    %v1191 = vunpack.c.h.b16 %v76
    %v1192 = vunpack.c.l.b16 %v77
    %v1193 = vunpack.c.h.b16 %v77
    %v1194 = vunpack.c.l.b16 %v78
    %v1195 = vunpack.c.h.b16 %v78
    %v1196 = vunpack.c.l.b16 %v79
    %v1197 = vunpack.c.h.b16 %v79
    %v1198 = vunpack.c.l.b16 %v80
    %v1199 = vunpack.c.h.b16 %v80
    %v1200 = vunpack.c.l.b16 %v81
    %v1201 = vunpack.c.h.b16 %v81
    %v1202 = vunpack.c.l.b16 %v82
    %v1203 = vunpack.c.h.b16 %v82
    %v1204 = vunpack.c.l.b16 %v83
    %v1205 = vunpack.c.h.b16 %v83
    %v1206 = vunpack.c.l.b16 %v84
    %v1207 = vunpack.c.h.b16 %v84
    %v1208 = vunpack.c.l.b16 %v85
    %v1209 = vunpack.c.h.b16 %v85
    %v1210 = vunpack.c.l.b16 %v86
    %v1211 = vunpack.c.h.b16 %v86
    %v1212 = vunpack.c.l.b16 %v87
    %v1213 = vunpack.c.h.b16 %v87
    %v1214 = vunpack.c.l.b16 %v88
    %v1215 = vunpack.c.h.b16 %v88
    %v1216 = vunpack.c.l.b16 %v89
    %v1217 = vunpack.c.h.b16 %v89
    %v1218 = vunpack.c.l.b16 %v90
    %v1219 = vunpack.c.h.b16 %v90
    %v1220 = vunpack.c.l.b16 %v91
    %v1221 = vunpack.c.h.b16 %v91
    %v1222 = vunpack.c.l.b16 %v92
    %v1223 = vunpack.c.h.b16 %v92
    %v1224 = vunpack.c.l.b16 %v93
    %v1225 = vunpack.c.h.b16 %v93
    %v1226 = vunpack.c.l.b16 %v94
    %v1227 = vunpack.c.h.b16 %v94
    %v1228 = vunpack.c.l.b16 %v95
    %v1229 = vunpack.c.h.b16 %v95
    %v1230 = vunpack.c.l.b16 %v96
    %v1231 = vunpack.c.h.b16 %v96
    %v1232 = vunpack.c.l.b16 %v97
    %v1233 = vunpack.c.h.b16 %v97
    %v1234 = vunpack.c.l.b16 %v98
    %v1235 = vunpack.c.h.b16 %v98
    %v1236 = vunpack.c.l.b16 %v99
    %v1237 = vunpack.c.h.b16 %v99
    %v1238 = vunpack.c.l.b16 %v100
    %v1239 = vunpack.c.h.b16 %v100
    %v1240 = vunpack.c.l.b16 %v101
    %v1241 = vunpack.c.h.b16 %v101
    %v1242 = vunpack.c.l.b16 %v102
    %v1243 = vunpack.c.h.b16 %v102
    %v1244 = vunpack.c.l.b16 %v103
    %v1245 = vunpack.c.h.b16 %v103
    %v1246 = vunpack.c.l.b16 %v104
    %v1247 = vunpack.c.h.b16 %v104
    %v1248 = vunpack.c.l.b16 %v105
    %v1249 = vunpack.c.h.b16 %v105
    %v1250 = vunpack.c.l.b16 %v106
    %v1251 = vunpack.c.h.b16 %v106
    %v1252 = vunpack.c.l.b16 %v107
    %v1253 = vunpack.c.h.b16 %v107
    %v1254 = vunpack.c.l.b16 %v108
    %v1255 = vunpack.c.h.b16 %v108
    %v1256 = vunpack.c.l.b16 %v109
    %v1257 = vunpack.c.h.b16 %v109
    %v1258 = vunpack.c.l.b16 %v110
    %v1259 = vunpack.c.h.b16 %v110
    %v1260 = vunpack.c.l.b16 %v111
    %v1261 = vunpack.c.h.b16 %v111
    %v1262 = vunpack.c.l.b16 %v112
    %v1263 = vunpack.c.h.b16 %v112
    %v1264 = vunpack.c.l.b16 %v113
    %v1265 = vunpack.c.h.b16 %v113
    %v1266 = vunpack.c.l.b16 %v114
    %v1267 = vunpack.c.h.b16 %v114
    %v1268 = vunpack.c.l.b16 %v115
    %v1269 = vunpack.c.h.b16 %v115
    %v1270 = vunpack.c.l.b16 %v116
    %v1271 = vunpack.c.h.b16 %v116
    %v1272 = vunpack.c.l.b16 %v117
    %v1273 = vunpack.c.h.b16 %v117
    %v1274 = vunpack.c.l.b16 %v118
    %v1275 = vunpack.c.h.b16 %v118
    %v1276 = vunpack.c.l.b16 %v119
    %v1277 = vunpack.c.h.b16 %v119
    %v1278 = vunpack.c.l.b16 %v120
    %v1279 = vunpack.c.h.b16 %v120
    %v1280 = vunpack.c.l.b16 %v121
    %v1281 = vunpack.c.h.b16 %v121
    %v1282 = vunpack.c.l.b16 %v122
    %v1283 = vunpack.c.h.b16 %v122
    %v1284 = vunpack.c.l.b16 %v123
    %v1285 = vunpack.c.h.b16 %v123
    %v1286 = vunpack.c.l.b16 %v124
    %v1287 = vunpack.c.h.b16 %v124
    %v1288 = vunpack.c.l.b16 %v125
    %v1289 = vunpack.c.h.b16 %v125
    %v1290 = vunpack.c.l.b16 %v126
    %v1291 = vunpack.c.h.b16 %v126
    %v1292 = vunpack.c.l.b16 %v127
    %v1293 = vunpack.c.h.b16 %v127
    %v1294 = vunpack.c.l.b16 %v128
    %v1295 = vunpack.c.h.b16 %v128
    %v1296 = vunpack.c.l.b16 %v129
    %v1297 = vunpack.c.h.b16 %v129
    %v1298 = vunpack.c.l.b16 %v130
    %v1299 = vunpack.c.h.b16 %v130
    %v1300 = vunpack.c.l.b16 %v131
    %v1301 = vunpack.c.h.b16 %v131
    %v1302 = vunpack.c.l.b16 %v132
    %v1303 = vunpack.c.h.b16 %v132
    %v1304 = vunpack.c.l.b16 %v133
    %v1305 = vunpack.c.h.b16 %v133
    %v1306 = vunpack.c.l.b16 %v134
    %v1307 = vunpack.c.h.b16 %v134
    %v1308 = vunpack.c.l.b16 %v135
    %v1309 = vunpack.c.h.b16 %v135
    %v1310 = vunpack.c.l.b16 %v136
    %v1311 = vunpack.c.h.b16 %v136
    %v1312 = vunpack.c.l.b16 %v137
    %v1313 = vunpack.c.h.b16 %v137
    %v1314 = vunpack.c.l.b16 %v138
    %v1315 = vunpack.c.h.b16 %v138
    %v1316 = vunpack.c.l.b16 %v139
    %v1317 = vunpack.c.h.b16 %v139
    %v1318 = vunpack.c.l.b16 %v140
    %v1319 = vunpack.c.h.b16 %v140
    %v1320 = vunpack.c.l.b16 %v141
    %v1321 = vunpack.c.h.b16 %v141
    %v1322 = vunpack.c.l.b16 %v142
    %v1323 = vunpack.c.h.b16 %v142
    %v1324 = vunpack.c.l.b16 %v143
    %v1325 = vunpack.c.h.b16 %v143
    %v1326 = vunpack.c.l.b16 %v144
    %v1327 = vunpack.c.h.b16 %v144
    %v1328 = vunpack.c.l.b16 %v145
    %v1329 = vunpack.c.h.b16 %v145
    %v1330 = vunpack.c.l.b16 %v146
    %v1331 = vunpack.c.h.b16 %v146
    %v1332 = vunpack.c.l.b16 %v147
    %v1333 = vunpack.c.h.b16 %v147
    %v1334 = vunpack.c.l.b16 %v148
    %v1335 = vunpack.c.h.b16 %v148
    %v1336 = vunpack.c.l.b16 %v149
    %v1337 = vunpack.c.h.b16 %v149
    %v1338 = vunpack.c.l.b16 %v150
    %v1339 = vunpack.c.h.b16 %v150
    %v1340 = vunpack.c.l.b16 %v151
    %v1341 = vunpack.c.h.b16 %v151
    %v1342 = vunpack.c.l.b16 %v152
    %v1343 = vunpack.c.h.b16 %v152
    %v1344 = vunpack.c.l.b16 %v153
    %v1345 = vunpack.c.h.b16 %v153
    %v1346 = vunpack.c.l.b16 %v154
    %v1347 = vunpack.c.h.b16 %v154
    %v1348 = vunpack.c.l.b16 %v155
    %v1349 = vunpack.c.h.b16 %v155
    %v1350 = vunpack.c.l.b16 %v156
    %v1351 = vunpack.c.h.b16 %v156
    %v1352 = vunpack.c.l.b16 %v157
    %v1353 = vunpack.c.h.b16 %v157
    %v1354 = vunpack.c.l.b16 %v158
    %v1355 = vunpack.c.h.b16 %v158
    %v1356 = vunpack.c.l.b16 %v159
    %v1357 = vunpack.c.h.b16 %v159
    %v1358 = vunpack.c.l.b16 %v160
    %v1359 = vunpack.c.h.b16 %v160
    %v1360 = vunpack.c.l.b16 %v161
    %v1361 = vunpack.c.h.b16 %v161
    %v1362 = vunpack.c.l.b16 %v162
    %v1363 = vunpack.c.h.b16 %v162
    %v1364 = vunpack.c.l.b16 %v163
    %v1365 = vunpack.c.h.b16 %v163
    %v1366 = vunpack.c.l.b16 %v164
    %v1367 = vunpack.c.h.b16 %v164
    %v1368 = vunpack.c.l.b16 %v165
    %v1369 = vunpack.c.h.b16 %v165
    %v1370 = vunpack.c.l.b16 %v166
    %v1371 = vunpack.c.h.b16 %v166
    %v1372 = vunpack.c.l.b16 %v167
    %v1373 = vunpack.c.h.b16 %v167
    %v1374 = vunpack.c.l.b16 %v168
    %v1375 = vunpack.c.h.b16 %v168
    %v1376 = vunpack.c.l.b16 %v169
    %v1377 = vunpack.c.h.b16 %v169
    %v1378 = vunpack.c.l.b16 %v170
    %v1379 = vunpack.c.h.b16 %v170
    %v1380 = vunpack.c.l.b16 %v171
    %v1381 = vunpack.c.h.b16 %v171
    %v1382 = vunpack.c.l.b16 %v172
    %v1383 = vunpack.c.h.b16 %v172
    %v1384 = vunpack.c.l.b16 %v173
    %v1385 = vunpack.c.h.b16 %v173
    %v1386 = vunpack.c.l.b16 %v174
    %v1387 = vunpack.c.h.b16 %v174
    %v1388 = vunpack.c.l.b16 %v175
    %v1389 = vunpack.c.h.b16 %v175
    %v1390 = vunpack.c.l.b16 %v176
    %v1391 = vunpack.c.h.b16 %v176
    %v1392 = vunpack.c.l.b16 %v177
    %v1393 = vunpack.c.h.b16 %v177
    %v1394 = vunpack.c.l.b16 %v178
    %v1395 = vunpack.c.h.b16 %v178
    %v1396 = vunpack.c.l.b16 %v179
    %v1397 = vunpack.c.h.b16 %v179
    %v1398 = vunpack.c.l.b16 %v180
    %v1399 = vunpack.c.h.b16 %v180
    %v1400 = vunpack.c.l.b16 %v181
    %v1401 = vunpack.c.h.b16 %v181
    %v1402 = vunpack.c.l.b16 %v182
    %v1403 = vunpack.c.h.b16 %v182
    %v1404 = vunpack.c.l.b16 %v183
    %v1405 = vunpack.c.h.b16 %v183
    %v1406 = vunpack.c.l.b16 %v184
    %v1407 = vunpack.c.h.b16 %v184
    %v1408 = vunpack.c.l.b16 %v185
    %v1409 = vunpack.c.h.b16 %v185
    %v1410 = vunpack.c.l.b16 %v186
    %v1411 = vunpack.c.h.b16 %v186
    %v1412 = vunpack.c.l.b16 %v187
    %v1413 = vunpack.c.h.b16 %v187
    %v1414 = vunpack.c.l.b16 %v188
    %v1415 = vunpack.c.h.b16 %v188
    %v1416 = vunpack.c.l.b16 %v189
    %v1417 = vunpack.c.h.b16 %v189
    %v1418 = vunpack.c.l.b16 %v190
    %v1419 = vunpack.c.h.b16 %v190
    %v1420 = vunpack.c.l.b16 %v191
    %v1421 = vunpack.c.h.b16 %v191
    %v1422 = vunpack.c.l.b16 %v192
    %v1423 = vunpack.c.h.b16 %v192
    %v1424 = vunpack.c.l.b16 %v193
    %v1425 = vunpack.c.h.b16 %v193
    %v1426 = vunpack.c.l.b16 %v194
    %v1427 = vunpack.c.h.b16 %v194
    %v1428 = vunpack.c.l.b16 %v195
    %v1429 = vunpack.c.h.b16 %v195
    %v1430 = vunpack.c.l.b16 %v196
    %v1431 = vunpack.c.h.b16 %v196
    %v1432 = vunpack.c.l.b16 %v197
    %v1433 = vunpack.c.h.b16 %v197
    %v1434 = vunpack.c.l.b16 %v198
    %v1435 = vunpack.c.h.b16 %v198
    %v1436 = vunpack.c.l.b16 %v199
    %v1437 = vunpack.c.h.b16 %v199
    %v1438 = vunpack.c.l.b16 %v200
    %v1439 = vunpack.c.h.b16 %v200
    %v1440 = vunpack.c.l.b16 %v201
    %v1441 = vunpack.c.h.b16 %v201
    %v1442 = vunpack.c.l.b16 %v202
    %v1443 = vunpack.c.h.b16 %v202
    %v1444 = vunpack.c.l.b16 %v203
    %v1445 = vunpack.c.h.b16 %v203
    %v1446 = vunpack.c.l.b16 %v204
    %v1447 = vunpack.c.h.b16 %v204
    %v1448 = vunpack.c.l.b16 %v205
    %v1449 = vunpack.c.h.b16 %v205
    %v1450 = vunpack.c.l.b16 %v206
    %v1451 = vunpack.c.h.b16 %v206
    %v1452 = vunpack.c.l.b16 %v207
    %v1453 = vunpack.c.h.b16 %v207
    %v1454 = vunpack.c.l.b16 %v208
    %v1455 = vunpack.c.h.b16 %v208
    %v1456 = vunpack.c.l.b16 %v209
    %v1457 = vunpack.c.h.b16 %v209
    %v1458 = vunpack.c.l.b16 %v210
    %v1459 = vunpack.c.h.b16 %v210
    %v1460 = vunpack.c.l.b16 %v211
    %v1461 = vunpack.c.h.b16 %v211
    %v1462 = vunpack.c.l.b16 %v212
    %v1463 = vunpack.c.h.b16 %v212
    %v1464 = vunpack.c.l.b16 %v213
    %v1465 = vunpack.c.h.b16 %v213
    %v1466 = vunpack.c.l.b16 %v214
    %v1467 = vunpack.c.h.b16 %v214
    %v1468 = vunpack.c.l.b16 %v215
    %v1469 = vunpack.c.h.b16 %v215
    %v1470 = vunpack.c.l.b16 %v216
    %v1471 = vunpack.c.h.b16 %v216
    %v1472 = vunpack.c.l.b16 %v217
    %v1473 = vunpack.c.h.b16 %v217
    %v1474 = vunpack.c.l.b16 %v218
    %v1475 = vunpack.c.h.b16 %v218
    %v1476 = vunpack.c.l.b16 %v219
    %v1477 = vunpack.c.h.b16 %v219
    %v1478 = vunpack.c.l.b16 %v220
    %v1479 = vunpack.c.h.b16 %v220
    %v1480 = vunpack.c.l.b16 %v221
    %v1481 = vunpack.c.h.b16 %v221
    %v1482 = vunpack.c.l.b16 %v222
    %v1483 = vunpack.c.h.b16 %v222
    %v1484 = vunpack.c.l.b16 %v223
    %v1485 = vunpack.c.h.b16 %v223
    %v1486 = vunpack.c.l.b16 %v224
    %v1487 = vunpack.c.h.b16 %v224
    %v1488 = vunpack.c.l.b16 %v225
    %v1489 = vunpack.c.h.b16 %v225
    %v1490 = vunpack.c.l.b16 %v226
    %v1491 = vunpack.c.h.b16 %v226
    %v1492 = vunpack.c.l.b16 %v227
    %v1493 = vunpack.c.h.b16 %v227
    %v1494 = vunpack.c.l.b16 %v228
    %v1495 = vunpack.c.h.b16 %v228
    %v1496 = vunpack.c.l.b16 %v229
    %v1497 = vunpack.c.h.b16 %v229
    %v1498 = vunpack.c.l.b16 %v230
    %v1499 = vunpack.c.h.b16 %v230
    %v1500 = vunpack.c.l.b16 %v231
    %v1501 = vunpack.c.h.b16 %v231
    %v1502 = vunpack.c.l.b16 %v232
    %v1503 = vunpack.c.h.b16 %v232
    %v1504 = vunpack.c.l.b16 %v233
    %v1505 = vunpack.c.h.b16 %v233
    %v1506 = vunpack.c.l.b16 %v234
    %v1507 = vunpack.c.h.b16 %v234
    %v1508 = vunpack.c.l.b16 %v235
    %v1509 = vunpack.c.h.b16 %v235
    %v1510 = vunpack.c.l.b16 %v236
    %v1511 = vunpack.c.h.b16 %v236
    %v1512 = vunpack.c.l.b16 %v237
    %v1513 = vunpack.c.h.b16 %v237
    %v1514 = vunpack.c.l.b16 %v238
    %v1515 = vunpack.c.h.b16 %v238
    %v1516 = vunpack.c.l.b16 %v239
    %v1517 = vunpack.c.h.b16 %v239
    %v1518 = vunpack.c.l.b16 %v240
    %v1519 = vunpack.c.h.b16 %v240
    %v1520 = vunpack.c.l.b16 %v241
    %v1521 = vunpack.c.h.b16 %v241
    %v1522 = vunpack.c.l.b16 %v242
    %v1523 = vunpack.c.h.b16 %v242
    %v1524 = vunpack.c.l.b16 %v243
    %v1525 = vunpack.c.h.b16 %v243
    %v1526 = vunpack.c.l.b16 %v244
    %v1527 = vunpack.c.h.b16 %v244
    %v1528 = vunpack.c.l.b16 %v245
    %v1529 = vunpack.c.h.b16 %v245
    %v1530 = vunpack.c.l.b16 %v246
    %v1531 = vunpack.c.h.b16 %v246
    %v1532 = vunpack.c.l.b16 %v247
    %v1533 = vunpack.c.h.b16 %v247
    %v1534 = vunpack.c.l.b16 %v248
    %v1535 = vunpack.c.h.b16 %v248
    %v1536 = vunpack.c.l.b16 %v249
    %v1537 = vunpack.c.h.b16 %v249
    %v1538 = vunpack.c.l.b16 %v250
    %v1539 = vunpack.c.h.b16 %v250
    %v1540 = vunpack.c.l.b16 %v251
    %v1541 = vunpack.c.h.b16 %v251
    %v1542 = vunpack.c.l.b16 %v252
    %v1543 = vunpack.c.h.b16 %v252
    %v1544 = vunpack.c.l.b16 %v253
    %v1545 = vunpack.c.h.b16 %v253
    %v1546 = vunpack.c.l.b16 %v254
    %v1547 = vunpack.c.h.b16 %v254
    %v1548 = vunpack.c.l.b16 %v255
    %v1549 = vunpack.c.h.b16 %v255
    %v1550 = vunpack.c.l.b16 %v256
    %v1551 = vunpack.c.h.b16 %v256
    %v1552 = vunpack.c.l.b16 %v257
    %v1553 = vunpack.c.h.b16 %v257
    %v1554 = vunpack.c.l.b16 %v258
    %v1555 = vunpack.c.h.b16 %v258
    %v1556 = vunpack.c.l.b16 %v259
    %v1557 = vunpack.c.h.b16 %v259
    %v1558 = vunpack.c.l.b16 %v260
    %v1559 = vunpack.c.h.b16 %v260
    %v1560 = vunpack.c.l.b16 %v261
    %v1561 = vunpack.c.h.b16 %v261
    %v1562 = vunpack.c.l.b16 %v262
    %v1563 = vunpack.c.h.b16 %v262
    %v1564 = vunpack.c.l.b16 %v263
    %v1565 = vunpack.c.h.b16 %v263
    %v1566 = vunpack.c.l.b16 %v264
    %v1567 = vunpack.c.h.b16 %v264
    %v1568 = vunpack.c.l.b16 %v265
    %v1569 = vunpack.c.h.b16 %v265
    %v1570 = vunpack.c.l.b16 %v266
    %v1571 = vunpack.c.h.b16 %v266
    %v1572 = vunpack.c.l.b16 %v267
    %v1573 = vunpack.c.h.b16 %v267
    %v1574 = vunpack.c.l.b16 %v268
    %v1575 = vunpack.c.h.b16 %v268
    %v1576 = vunpack.c.l.b16 %v269
    %v1577 = vunpack.c.h.b16 %v269
    %v1578 = vunpack.c.l.b16 %v270
    %v1579 = vunpack.c.h.b16 %v270
    %v1580 = vunpack.c.l.b16 %v271
    %v1581 = vunpack.c.h.b16 %v271
    %v1582 = vunpack.c.l.b16 %v272
    %v1583 = vunpack.c.h.b16 %v272
    %v1584 = vunpack.c.l.b16 %v273
    %v1585 = vunpack.c.h.b16 %v273
    %v1586 = vunpack.c.l.b16 %v274
    %v1587 = vunpack.c.h.b16 %v274
    %v1588 = vunpack.c.l.b16 %v275
    %v1589 = vunpack.c.h.b16 %v275
    %v1590 = vunpack.c.l.b16 %v276
    %v1591 = vunpack.c.h.b16 %v276
    %v1592 = vunpack.c.l.b16 %v277
    %v1593 = vunpack.c.h.b16 %v277
    %v1594 = vunpack.c.l.b16 %v278
    %v1595 = vunpack.c.h.b16 %v278
    %v1596 = vunpack.c.l.b16 %v279
    %v1597 = vunpack.c.h.b16 %v279
    %v1598 = vunpack.c.l.b16 %v280
    %v1599 = vunpack.c.h.b16 %v280
    %v1600 = vunpack.c.l.b16 %v281
    %v1601 = vunpack.c.h.b16 %v281
    %v1602 = vunpack.c.l.b16 %v282
    %v1603 = vunpack.c.h.b16 %v282
    %v1604 = vunpack.c.l.b16 %v283
    %v1605 = vunpack.c.h.b16 %v283
    %v1606 = vunpack.c.l.b16 %v284
    %v1607 = vunpack.c.h.b16 %v284
    %v1608 = vunpack.c.l.b16 %v285
    %v1609 = vunpack.c.h.b16 %v285
    %v1610 = vunpack.c.l.b16 %v286
    %v1611 = vunpack.c.h.b16 %v286
    %v1612 = vunpack.c.l.b16 %v287
    %v1613 = vunpack.c.h.b16 %v287
    %v1614 = vunpack.c.l.b16 %v288
    %v1615 = vunpack.c.h.b16 %v288
    %v1616 = vunpack.c.l.b16 %v289
    %v1617 = vunpack.c.h.b16 %v289
    %v1618 = vunpack.c.l.b16 %v290
    %v1619 = vunpack.c.h.b16 %v290
    %v1620 = vunpack.c.l.b16 %v291
    %v1621 = vunpack.c.h.b16 %v291
    %v1622 = vunpack.c.l.b16 %v292
    %v1623 = vunpack.c.h.b16 %v292
    %v1624 = vunpack.c.l.b16 %v293
    %v1625 = vunpack.c.h.b16 %v293
    %v1626 = vunpack.c.l.b16 %v294
    %v1627 = vunpack.c.h.b16 %v294
    %v1628 = vunpack.c.l.b16 %v295
    %v1629 = vunpack.c.h.b16 %v295
    %v1630 = vunpack.c.l.b16 %v296
    %v1631 = vunpack.c.h.b16 %v296
    %v1632 = vunpack.c.l.b16 %v297
    %v1633 = vunpack.c.h.b16 %v297
    %v1634 = vunpack.c.l.b16 %v298
    %v1635 = vunpack.c.h.b16 %v298
    %v1636 = vunpack.c.l.b16 %v299
    %v1637 = vunpack.c.h.b16 %v299
    %v1638 = vunpack.c.l.b16 %v300
    %v1639 = vunpack.c.h.b16 %v300
    %v1640 = vunpack.c.l.b16 %v301
    %v1641 = vunpack.c.h.b16 %v301
    %v1642 = vunpack.c.l.b16 %v302
    %v1643 = vunpack.c.h.b16 %v302
    %v1644 = vunpack.c.l.b16 %v303
    %v1645 = vunpack.c.h.b16 %v303
    %v1646 = vunpack.c.l.b16 %v304
    %v1647 = vunpack.c.h.b16 %v304
    %v1648 = vunpack.c.l.b16 %v305
    %v1649 = vunpack.c.h.b16 %v305
    %v1650 = vunpack.c.l.b16 %v306
    %v1651 = vunpack.c.h.b16 %v306
    %v1652 = vunpack.c.l.b16 %v307
    %v1653 = vunpack.c.h.b16 %v307
    %v1654 = vunpack.c.l.b16 %v308
    %v1655 = vunpack.c.h.b16 %v308
    %v1656 = vunpack.c.l.b16 %v309
    %v1657 = vunpack.c.h.b16 %v309
    %v1658 = vunpack.c.l.b16 %v310
    %v1659 = vunpack.c.h.b16 %v310
    %v1660 = vunpack.c.l.b16 %v311
    %v1661 = vunpack.c.h.b16 %v311
    %v1662 = vunpack.c.l.b16 %v312
    %v1663 = vunpack.c.h.b16 %v312
    %v1664 = vunpack.c.l.b16 %v313
    %v1665 = vunpack.c.h.b16 %v313
    %v1666 = vunpack.c.l.b16 %v314
    %v1667 = vunpack.c.h.b16 %v314
    %v1668 = vunpack.c.l.b16 %v315
    %v1669 = vunpack.c.h.b16 %v315
    %v1670 = vunpack.c.l.b16 %v316
    %v1671 = vunpack.c.h.b16 %v316
    %v1672 = vunpack.c.l.b16 %v317
    %v1673 = vunpack.c.h.b16 %v317
    %v1674 = vunpack.c.l.b16 %v318
    %v1675 = vunpack.c.h.b16 %v318
    %v1676 = vunpack.c.l.b16 %v319
    %v1677 = vunpack.c.h.b16 %v319
    %v1678 = vunpack.c.l.b16 %v320
    %v1679 = vunpack.c.h.b16 %v320
    %v1680 = vunpack.c.l.b16 %v321
    %v1681 = vunpack.c.h.b16 %v321
    %v1682 = vunpack.c.l.b16 %v322
    %v1683 = vunpack.c.h.b16 %v322
    %v1684 = vunpack.c.l.b16 %v323
    %v1685 = vunpack.c.h.b16 %v323
    %v1686 = vunpack.c.l.b16 %v324
    %v1687 = vunpack.c.h.b16 %v324
    %v1688 = vunpack.c.l.b16 %v325
    %v1689 = vunpack.c.h.b16 %v325
    %v1690 = vunpack.c.l.b16 %v326
    %v1691 = vunpack.c.h.b16 %v326
    %v1692 = vunpack.c.l.b16 %v327
    %v1693 = vunpack.c.h.b16 %v327
    %v1694 = vunpack.c.l.b16 %v328
    %v1695 = vunpack.c.h.b16 %v328
    %v1696 = vunpack.c.l.b16 %v329
    %v1697 = vunpack.c.h.b16 %v329
    %v1698 = vunpack.c.l.b16 %v330
    %v1699 = vunpack.c.h.b16 %v330
    %v1700 = vunpack.c.l.b16 %v331
    %v1701 = vunpack.c.h.b16 %v331
    %v1702 = vunpack.c.l.b16 %v332
    %v1703 = vunpack.c.h.b16 %v332
    %v1704 = vunpack.c.l.b16 %v333
    %v1705 = vunpack.c.h.b16 %v333
    %v1706 = vunpack.c.l.b16 %v334
    %v1707 = vunpack.c.h.b16 %v334
    %v1708 = vunpack.c.l.b16 %v335
    %v1709 = vunpack.c.h.b16 %v335
    %v1710 = vunpack.c.l.b16 %v336
    %v1711 = vunpack.c.h.b16 %v336
    %v1712 = vunpack.c.l.b16 %v337
    %v1713 = vunpack.c.h.b16 %v337
    %v1714 = vunpack.c.l.b16 %v338
    %v1715 = vunpack.c.h.b16 %v338
    %v1716 = vunpack.c.l.b16 %v339
    %v1717 = vunpack.c.h.b16 %v339
    %v1718 = vunpack.c.l.b16 %v340
    %v1719 = vunpack.c.h.b16 %v340
    %v1720 = vunpack.c.l.b16 %v341
    %v1721 = vunpack.c.h.b16 %v341
    %v1722 = vunpack.c.l.b16 %v342
    %v1723 = vunpack.c.h.b16 %v342
    %v1724 = vunpack.c.l.b16 %v343
    %v1725 = vunpack.c.h.b16 %v343
    %v1726 = vunpack.c.l.b16 %v344
    %v1727 = vunpack.c.h.b16 %v344
    %v1728 = vunpack.c.l.b16 %v345
    %v1729 = vunpack.c.h.b16 %v345
    %v1730 = vunpack.c.l.b16 %v346
    %v1731 = vunpack.c.h.b16 %v346
    %v1732 = vunpack.c.l.b16 %v347
    %v1733 = vunpack.c.h.b16 %v347
    %v1734 = vunpack.c.l.b16 %v348
    %v1735 = vunpack.c.h.b16 %v348
    %v1736 = vunpack.c.l.b16 %v349
    %v1737 = vunpack.c.h.b16 %v349
    %v1738 = vunpack.c.l.b16 %v350
    %v1739 = vunpack.c.h.b16 %v350
    %v1740 = vunpack.c.l.b16 %v351
    %v1741 = vunpack.c.h.b16 %v351
    %v1742 = vunpack.c.l.b16 %v352
    %v1743 = vunpack.c.h.b16 %v352
    %v1744 = vunpack.c.l.b16 %v353
    %v1745 = vunpack.c.h.b16 %v353
    %v1746 = vunpack.c.l.b16 %v354
    %v1747 = vunpack.c.h.b16 %v354
    %v1748 = vunpack.c.l.b16 %v355
    %v1749 = vunpack.c.h.b16 %v355
    %v1750 = vunpack.c.l.b16 %v356
    %v1751 = vunpack.c.h.b16 %v356
    %v1752 = vunpack.c.l.b16 %v357
    %v1753 = vunpack.c.h.b16 %v357
    %v1754 = vunpack.c.l.b16 %v358
    %v1755 = vunpack.c.h.b16 %v358
    %v1756 = vunpack.c.l.b16 %v359
    %v1757 = vunpack.c.h.b16 %v359
    %v1758 = vunpack.c.l.b16 %v360
    %v1759 = vunpack.c.h.b16 %v360
    %v1760 = vunpack.c.l.b16 %v361
    %v1761 = vunpack.c.h.b16 %v361
    %v1762 = vunpack.c.l.b16 %v362
    %v1763 = vunpack.c.h.b16 %v362
    %v1764 = vunpack.c.l.b16 %v363
    %v1765 = vunpack.c.h.b16 %v363
    %v1766 = vunpack.c.l.b16 %v364
    %v1767 = vunpack.c.h.b16 %v364
    %v1768 = vunpack.c.l.b16 %v365
    %v1769 = vunpack.c.h.b16 %v365
    %v1770 = vunpack.c.l.b16 %v366
    %v1771 = vunpack.c.h.b16 %v366
    %v1772 = vunpack.c.l.b16 %v367
    %v1773 = vunpack.c.h.b16 %v367
    %v1774 = vunpack.c.l.b16 %v368
    %v1775 = vunpack.c.h.b16 %v368
    %v1776 = vunpack.c.l.b16 %v369
    %v1777 = vunpack.c.h.b16 %v369
    %v1778 = vunpack.c.l.b16 %v370
    %v1779 = vunpack.c.h.b16 %v370
    %v1780 = vunpack.c.l.b16 %v371
    %v1781 = vunpack.c.h.b16 %v371
    %v1782 = vunpack.c.l.b16 %v372
    %v1783 = vunpack.c.h.b16 %v372
    %v1784 = vunpack.c.l.b16 %v373
    %v1785 = vunpack.c.h.b16 %v373
    %v1786 = vunpack.c.l.b16 %v374
    %v1787 = vunpack.c.h.b16 %v374
    %v1788 = vunpack.c.l.b16 %v375
    %v1789 = vunpack.c.h.b16 %v375
    %v1790 = vunpack.c.l.b16 %v376
    %v1791 = vunpack.c.h.b16 %v376
    %v1792 = vunpack.c.l.b16 %v377
    %v1793 = vunpack.c.h.b16 %v377
    %v1794 = vunpack.c.l.b16 %v378
    %v1795 = vunpack.c.h.b16 %v378
    %v1796 = vunpack.c.l.b16 %v379
    %v1797 = vunpack.c.h.b16 %v379
    %v1798 = vunpack.c.l.b16 %v380
    %v1799 = vunpack.c.h.b16 %v380
    %v1800 = vunpack.c.l.b16 %v381
    %v1801 = vunpack.c.h.b16 %v381
    %v1802 = vunpack.c.l.b16 %v382
    %v1803 = vunpack.c.h.b16 %v382
    %v1804 = vunpack.c.l.b16 %v383
    %v1805 = vunpack.c.h.b16 %v383
    %v1806 = vunpack.c.l.b16 %v384
    %v1807 = vunpack.c.h.b16 %v384
    %v1808 = vunpack.c.l.b16 %v385
    %v1809 = vunpack.c.h.b16 %v385
    %v1810 = vunpack.c.l.b16 %v386
    %v1811 = vunpack.c.h.b16 %v386
    %v1812 = vunpack.c.l.b16 %v387
    %v1813 = vunpack.c.h.b16 %v387
    %v1814 = vunpack.c.l.b16 %v388
    %v1815 = vunpack.c.h.b16 %v388
    %v1816 = vunpack.c.l.b16 %v389
    %v1817 = vunpack.c.h.b16 %v389
    %v1818 = vunpack.c.l.b16 %v390
    %v1819 = vunpack.c.h.b16 %v390
    %v1820 = vunpack.c.l.b16 %v391
    %v1821 = vunpack.c.h.b16 %v391
    %v1822 = vunpack.c.l.b16 %v392
    %v1823 = vunpack.c.h.b16 %v392
    %v1824 = vunpack.c.l.b16 %v393
    %v1825 = vunpack.c.h.b16 %v393
    %v1826 = vunpack.c.l.b16 %v394
    %v1827 = vunpack.c.h.b16 %v394
    %v1828 = vunpack.c.l.b16 %v395
    %v1829 = vunpack.c.h.b16 %v395
    %v1830 = vunpack.c.l.b16 %v396
    %v1831 = vunpack.c.h.b16 %v396
    %v1832 = vunpack.c.l.b16 %v397
    %v1833 = vunpack.c.h.b16 %v397
    %v1834 = vunpack.c.l.b16 %v398
    %v1835 = vunpack.c.h.b16 %v398
    %v1836 = vunpack.c.l.b16 %v399
    %v1837 = vunpack.c.h.b16 %v399
    %v1838 = vunpack.c.l.b16 %v400
    %v1839 = vunpack.c.h.b16 %v400
    %v1840 = vunpack.c.l.b16 %v401
    %v1841 = vunpack.c.h.b16 %v401
    %v1842 = vunpack.c.l.b16 %v402
    %v1843 = vunpack.c.h.b16 %v402
    %v1844 = vunpack.c.l.b16 %v403
    %v1845 = vunpack.c.h.b16 %v403
    %v1846 = vunpack.c.l.b16 %v404
    %v1847 = vunpack.c.h.b16 %v404
    %v1848 = vunpack.c.l.b16 %v405
    %v1849 = vunpack.c.h.b16 %v405
    %v1850 = vunpack.c.l.b16 %v406
    %v1851 = vunpack.c.h.b16 %v406
    %v1852 = vunpack.c.l.b16 %v407
    %v1853 = vunpack.c.h.b16 %v407
    %v1854 = vunpack.c.l.b16 %v408
    %v1855 = vunpack.c.h.b16 %v408
    %v1856 = vunpack.c.l.b16 %v409
    %v1857 = vunpack.c.h.b16 %v409
    %v1858 = vunpack.c.l.b16 %v410
    %v1859 = vunpack.c.h.b16 %v410
    %v1860 = vunpack.c.l.b16 %v411
    %v1861 = vunpack.c.h.b16 %v411
    %v1862 = vunpack.c.l.b16 %v412
    %v1863 = vunpack.c.h.b16 %v412
    %v1864 = vunpack.c.l.b16 %v413
    %v1865 = vunpack.c.h.b16 %v413
    %v1866 = vunpack.c.l.b16 %v414
    %v1867 = vunpack.c.h.b16 %v414
    %v1868 = vunpack.c.l.b16 %v415
    %v1869 = vunpack.c.h.b16 %v415
    %v1870 = vunpack.c.l.b16 %v416
    %v1871 = vunpack.c.h.b16 %v416
    %v1872 = vunpack.c.l.b16 %v417
    %v1873 = vunpack.c.h.b16 %v417
    %v1874 = vunpack.c.l.b16 %v418
    %v1875 = vunpack.c.h.b16 %v418
    %v1876 = vunpack.c.l.b16 %v419
    %v1877 = vunpack.c.h.b16 %v419
    %v1878 = vunpack.c.l.b16 %v420
    %v1879 = vunpack.c.h.b16 %v420
    %v1880 = vunpack.c.l.b16 %v421
    %v1881 = vunpack.c.h.b16 %v421
    %v1882 = vunpack.c.l.b16 %v422
    %v1883 = vunpack.c.h.b16 %v422
    %v1884 = vunpack.c.l.b16 %v423
    %v1885 = vunpack.c.h.b16 %v423
    %v1886 = vunpack.c.l.b16 %v424
    %v1887 = vunpack.c.h.b16 %v424
    %v1888 = vunpack.c.l.b16 %v425
    %v1889 = vunpack.c.h.b16 %v425
    %v1890 = vunpack.c.l.b16 %v426
    %v1891 = vunpack.c.h.b16 %v426
    %v1892 = vunpack.c.l.b16 %v427
    %v1893 = vunpack.c.h.b16 %v427
    %v1894 = vunpack.c.l.b16 %v428
    %v1895 = vunpack.c.h.b16 %v428
    %v1896 = vunpack.c.l.b16 %v429
    %v1897 = vunpack.c.h.b16 %v429
    %v1898 = vunpack.c.l.b16 %v430
    %v1899 = vunpack.c.h.b16 %v430
    %v1900 = vunpack.c.l.b16 %v431
    %v1901 = vunpack.c.h.b16 %v431
    %v1902 = vunpack.c.l.b16 %v432
    %v1903 = vunpack.c.h.b16 %v432
    %v1904 = vunpack.c.l.b16 %v433
    %v1905 = vunpack.c.h.b16 %v433
    %v1906 = vunpack.c.l.b16 %v434
    %v1907 = vunpack.c.h.b16 %v434
    %v1908 = vunpack.c.l.b16 %v435
    %v1909 = vunpack.c.h.b16 %v435
    %v1910 = vunpack.c.l.b16 %v436
    %v1911 = vunpack.c.h.b16 %v436
    %v1912 = vunpack.c.l.b16 %v437
    %v1913 = vunpack.c.h.b16 %v437
    %v1914 = vunpack.c.l.b16 %v438
    %v1915 = vunpack.c.h.b16 %v438
    %v1916 = vunpack.c.l.b16 %v439
    %v1917 = vunpack.c.h.b16 %v439
    %v1918 = vunpack.c.l.b16 %v440
    %v1919 = vunpack.c.h.b16 %v440
    %v1920 = vunpack.c.l.b16 %v441
    %v1921 = vunpack.c.h.b16 %v441
    %v1922 = vunpack.c.l.b16 %v442
    %v1923 = vunpack.c.h.b16 %v442
    %v1924 = vunpack.c.l.b16 %v443
    %v1925 = vunpack.c.h.b16 %v443
    %v1926 = vunpack.c.l.b16 %v444
    %v1927 = vunpack.c.h.b16 %v444
    %v1928 = vunpack.c.l.b16 %v445
    %v1929 = vunpack.c.h.b16 %v445
    %v1930 = vunpack.c.l.b16 %v446
    %v1931 = vunpack.c.h.b16 %v446
    %v1932 = vunpack.c.l.b16 %v447
    %v1933 = vunpack.c.h.b16 %v447
    %v1934 = vunpack.c.l.b16 %v448
    %v1935 = vunpack.c.h.b16 %v448
    %v1936 = vunpack.c.l.b16 %v449
    %v1937 = vunpack.c.h.b16 %v449
    %v1938 = vunpack.c.l.b16 %v450
    %v1939 = vunpack.c.h.b16 %v450
    %v1940 = vunpack.c.l.b16 %v451
    %v1941 = vunpack.c.h.b16 %v451
    %v1942 = vunpack.c.l.b16 %v452
    %v1943 = vunpack.c.h.b16 %v452
    %v1944 = vunpack.c.l.b16 %v453
    %v1945 = vunpack.c.h.b16 %v453
    %v1946 = vunpack.c.l.b16 %v454
    %v1947 = vunpack.c.h.b16 %v454
    %v1948 = vunpack.c.l.b16 %v455
    %v1949 = vunpack.c.h.b16 %v455
    %v1950 = vunpack.c.l.b16 %v456
    %v1951 = vunpack.c.h.b16 %v456
    %v1952 = vunpack.c.l.b16 %v457
    %v1953 = vunpack.c.h.b16 %v457
    %v1954 = vunpack.c.l.b16 %v458
    %v1955 = vunpack.c.h.b16 %v458
    %v1956 = vunpack.c.l.b16 %v459
    %v1957 = vunpack.c.h.b16 %v459
    %v1958 = vunpack.c.l.b16 %v460
    %v1959 = vunpack.c.h.b16 %v460
    %v1960 = vunpack.c.l.b16 %v461
    %v1961 = vunpack.c.h.b16 %v461
    %v1962 = vunpack.c.l.b16 %v462
    %v1963 = vunpack.c.h.b16 %v462
    %v1964 = vunpack.c.l.b16 %v463
    %v1965 = vunpack.c.h.b16 %v463
    %v1966 = vunpack.c.l.b16 %v464
    %v1967 = vunpack.c.h.b16 %v464
    %v1968 = vunpack.c.l.b16 %v465
    %v1969 = vunpack.c.h.b16 %v465
    %v1970 = vunpack.c.l.b16 %v466
    %v1971 = vunpack.c.h.b16 %v466
    %v1972 = vunpack.c.l.b16 %v467
    %v1973 = vunpack.c.h.b16 %v467
    %v1974 = vunpack.c.l.b16 %v468
    %v1975 = vunpack.c.h.b16 %v468
    %v1976 = vunpack.c.l.b16 %v469
    %v1977 = vunpack.c.h.b16 %v469
    %v1978 = vunpack.c.l.b16 %v470
    %v1979 = vunpack.c.h.b16 %v470
    %v1980 = vunpack.c.l.b16 %v471
    %v1981 = vunpack.c.h.b16 %v471
    %v1982 = vunpack.c.l.b16 %v472
    %v1983 = vunpack.c.h.b16 %v472
    %v1984 = vunpack.c.l.b16 %v473
    %v1985 = vunpack.c.h.b16 %v473
    %v1986 = vunpack.c.l.b16 %v474
    %v1987 = vunpack.c.h.b16 %v474
    %v1988 = vunpack.c.l.b16 %v475
    %v1989 = vunpack.c.h.b16 %v475
    %v1990 = vunpack.c.l.b16 %v476
    %v1991 = vunpack.c.h.b16 %v476
    %v1992 = vunpack.c.l.b16 %v477
    %v1993 = vunpack.c.h.b16 %v477
    %v1994 = vunpack.c.l.b16 %v478
    %v1995 = vunpack.c.h.b16 %v478
    %v1996 = vunpack.c.l.b16 %v479
    %v1997 = vunpack.c.h.b16 %v479
    %v1998 = vunpack.c.l.b16 %v480
    %v1999 = vunpack.c.h.b16 %v480
    %v2000 = vunpack.c.l.b16 %v481
    %v2001 = vunpack.c.h.b16 %v481
    %v2002 = vunpack.c.l.b16 %v482
    %v2003 = vunpack.c.h.b16 %v482
    %v2004 = vunpack.c.l.b16 %v483
    %v2005 = vunpack.c.h.b16 %v483
    %v2006 = vunpack.c.l.b16 %v484
    %v2007 = vunpack.c.h.b16 %v484
    %v2008 = vunpack.c.l.b16 %v485
    %v2009 = vunpack.c.h.b16 %v485
    %v2010 = vunpack.c.l.b16 %v486
    %v2011 = vunpack.c.h.b16 %v486
    %v2012 = vunpack.c.l.b16 %v487
    %v2013 = vunpack.c.h.b16 %v487
    %v2014 = vunpack.c.l.b16 %v488
    %v2015 = vunpack.c.h.b16 %v488
    %v2016 = vunpack.c.l.b16 %v489
    %v2017 = vunpack.c.h.b16 %v489
    %v2018 = vunpack.c.l.b16 %v490
    %v2019 = vunpack.c.h.b16 %v490
    %v2020 = vunpack.c.l.b16 %v491
    %v2021 = vunpack.c.h.b16 %v491
    %v2022 = vunpack.c.l.b16 %v492
    %v2023 = vunpack.c.h.b16 %v492
    %v2024 = vunpack.c.l.b16 %v493
    %v2025 = vunpack.c.h.b16 %v493
    %v2026 = vunpack.c.l.b16 %v494
    %v2027 = vunpack.c.h.b16 %v494
    %v2028 = vunpack.c.l.b16 %v495
    %v2029 = vunpack.c.h.b16 %v495
    %v2030 = vunpack.c.l.b16 %v496
    %v2031 = vunpack.c.h.b16 %v496
    %v2032 = vunpack.c.l.b16 %v497
    %v2033 = vunpack.c.h.b16 %v497
    %v2034 = vunpack.c.l.b16 %v498
    %v2035 = vunpack.c.h.b16 %v498
    %v2036 = vunpack.c.l.b16 %v499
    %v2037 = vunpack.c.h.b16 %v499
    %v2038 = vunpack.c.l.b16 %v500
    %v2039 = vunpack.c.h.b16 %v500
    %v2040 = vunpack.c.l.b16 %v501
    %v2041 = vunpack.c.h.b16 %v501
    %v2042 = vunpack.c.l.b16 %v502
    %v2043 = vunpack.c.h.b16 %v502
    %v2044 = vunpack.c.l.b16 %v503
    %v2045 = vunpack.c.h.b16 %v503
    %v2046 = vunpack.c.l.b16 %v504
    %v2047 = vunpack.c.h.b16 %v504
    %v2048 = vunpack.c.l.b16 %v505
    %v2049 = vunpack.c.h.b16 %v505
    %v2050 = vunpack.c.l.b16 %v506
    %v2051 = vunpack.c.h.b16 %v506
    %v2052 = vunpack.c.l.b16 %v507
    %v2053 = vunpack.c.h.b16 %v507
    %v2054 = vunpack.c.l.b16 %v508
    %v2055 = vunpack.c.h.b16 %v508
    %v2056 = vunpack.c.l.b16 %v509
    %v2057 = vunpack.c.h.b16 %v509
    %v2058 = vunpack.c.l.b16 %v510
    %v2059 = vunpack.c.h.b16 %v510
    %v2060 = vunpack.c.l.b16 %v511
    %v2061 = vunpack.c.h.b16 %v511
    %v2062 = vunpack.c.l.b16 %v512
    %v2063 = vunpack.c.h.b16 %v512
    %v2064 = vunpack.c.l.b16 %v513
    %v2065 = vunpack.c.h.b16 %v513
    %v2066 = vunpack.c.l.b16 %v514
    %v2067 = vunpack.c.h.b16 %v514
    %v2068 = vunpack.c.l.b16 %v515
    %v2069 = vunpack.c.h.b16 %v515
    %v2070 = vunpack.c.l.b16 %v516
    %v2071 = vunpack.c.h.b16 %v516
    %v2072 = vunpack.c.l.b16 %v517
    %v2073 = vunpack.c.h.b16 %v517
    %v2074 = vunpack.c.l.b16 %v518
    %v2075 = vunpack.c.h.b16 %v518
    %v2076 = vunpack.c.l.b16 %v519
    %v2077 = vunpack.c.h.b16 %v519
    %v2078 = vunpack.c.l.b16 %v520
    %v2079 = vunpack.c.h.b16 %v520
    %v2080 = vunpack.c.l.b16 %v521
    %v2081 = vunpack.c.h.b16 %v521
    %v2082 = vunpack.c.l.b16 %v522
    %v2083 = vunpack.c.h.b16 %v522
    %v2084 = vunpack.c.l.b16 %v523
    %v2085 = vunpack.c.h.b16 %v523
    %v2086 = vunpack.c.l.b16 %v524
    %v2087 = vunpack.c.h.b16 %v524
    %v2088 = vunpack.c.l.b16 %v525
    %v2089 = vunpack.c.h.b16 %v525
    %v2090 = vunpack.c.l.b16 %v526
    %v2091 = vunpack.c.h.b16 %v526
    %v2092 = vunpack.c.l.b16 %v527
    %v2093 = vunpack.c.h.b16 %v527
    %v2094 = vunpack.c.l.b16 %v528
    %v2095 = vunpack.c.h.b16 %v528
    %v2096 = vunpack.c.l.b16 %v529
    %v2097 = vunpack.c.h.b16 %v529
    %v2098 = vunpack.c.l.b16 %v530
    %v2099 = vunpack.c.h.b16 %v530
    %v2100 = vunpack.c.l.b16 %v531
    %v2101 = vunpack.c.h.b16 %v531
    %v2102 = vunpack.c.l.b16 %v532
    %v2103 = vunpack.c.h.b16 %v532
    %v2104 = vunpack.c.l.b16 %v533
    %v2105 = vunpack.c.h.b16 %v533
    %v2106 = vpack.c.b16 %v1090, %v1082
    %v2107 = vpack.c.b16 %v1091, %v1083
    %v2108 = vpack.c.b16 %v1092, %v1084
    %v2109 = vpack.c.b16 %v1093, %v1085
    %v2110 = vpack.c.b16 %v1094, %v1086
    %v2111 = vpack.c.b16 %v1095, %v1087
    %v2112 = vpack.c.b16 %v1096, %v1088
    %v2113 = vpack.c.b16 %v1097, %v1089
    %v2114 = vpack.c.b16 %v1106, %v1098
    %v2115 = vpack.c.b16 %v1107, %v1099
    %v2116 = vpack.c.b16 %v1108, %v1100
    %v2117 = vpack.c.b16 %v1109, %v1101
    %v2118 = vpack.c.b16 %v1110, %v1102
    %v2119 = vpack.c.b16 %v1111, %v1103
    %v2120 = vpack.c.b16 %v1112, %v1104
    %v2121 = vpack.c.b16 %v1113, %v1105
    %v2122 = vpack.c.b16 %v1122, %v1114
    %v2123 = vpack.c.b16 %v1123, %v1115
    %v2124 = vpack.c.b16 %v1124, %v1116
    %v2125 = vpack.c.b16 %v1125, %v1117
    %v2126 = vpack.c.b16 %v1126, %v1118
    %v2127 = vpack.c.b16 %v1127, %v1119
    %v2128 = vpack.c.b16 %v1128, %v1120
    %v2129 = vpack.c.b16 %v1129, %v1121
    %v2130 = vpack.c.b16 %v1138, %v1130
    %v2131 = vpack.c.b16 %v1139, %v1131
    %v2132 = vpack.c.b16 %v1140, %v1132
    %v2133 = vpack.c.b16 %v1141, %v1133
    %v2134 = vpack.c.b16 %v1142, %v1134
    %v2135 = vpack.c.b16 %v1143, %v1135
    %v2136 = vpack.c.b16 %v1144, %v1136
    %v2137 = vpack.c.b16 %v1145, %v1137
    %v2138 = vpack.c.b16 %v1154, %v1146
    %v2139 = vpack.c.b16 %v1155, %v1147
    %v2140 = vpack.c.b16 %v1156, %v1148
    %v2141 = vpack.c.b16 %v1157, %v1149
    %v2142 = vpack.c.b16 %v1158, %v1150
    %v2143 = vpack.c.b16 %v1159, %v1151
    %v2144 = vpack.c.b16 %v1160, %v1152
    %v2145 = vpack.c.b16 %v1161, %v1153
    %v2146 = vpack.c.b16 %v1170, %v1162
    %v2147 = vpack.c.b16 %v1171, %v1163
    %v2148 = vpack.c.b16 %v1172, %v1164
    %v2149 = vpack.c.b16 %v1173, %v1165
    %v2150 = vpack.c.b16 %v1174, %v1166
    %v2151 = vpack.c.b16 %v1175, %v1167
    %v2152 = vpack.c.b16 %v1176, %v1168
    %v2153 = vpack.c.b16 %v1177, %v1169
    %v2154 = vpack.c.b16 %v1186, %v1178
    %v2155 = vpack.c.b16 %v1187, %v1179
    %v2156 = vpack.c.b16 %v1188, %v1180
    %v2157 = vpack.c.b16 %v1189, %v1181
    %v2158 = vpack.c.b16 %v1190, %v1182
    %v2159 = vpack.c.b16 %v1191, %v1183
    %v2160 = vpack.c.b16 %v1192, %v1184
    %v2161 = vpack.c.b16 %v1193, %v1185
    %v2162 = vpack.c.b16 %v1202, %v1194
    %v2163 = vpack.c.b16 %v1203, %v1195
    %v2164 = vpack.c.b16 %v1204, %v1196
    %v2165 = vpack.c.b16 %v1205, %v1197
    %v2166 = vpack.c.b16 %v1206, %v1198
    %v2167 = vpack.c.b16 %v1207, %v1199
    %v2168 = vpack.c.b16 %v1208, %v1200
    %v2169 = vpack.c.b16 %v1209, %v1201
    %v2170 = vpack.c.b16 %v1218, %v1210
    %v2171 = vpack.c.b16 %v1219, %v1211
    %v2172 = vpack.c.b16 %v1220, %v1212
    %v2173 = vpack.c.b16 %v1221, %v1213
    %v2174 = vpack.c.b16 %v1222, %v1214
    %v2175 = vpack.c.b16 %v1223, %v1215
    %v2176 = vpack.c.b16 %v1224, %v1216
    %v2177 = vpack.c.b16 %v1225, %v1217
    %v2178 = vpack.c.b16 %v1234, %v1226
    %v2179 = vpack.c.b16 %v1235, %v1227
    %v2180 = vpack.c.b16 %v1236, %v1228
    %v2181 = vpack.c.b16 %v1237, %v1229
    %v2182 = vpack.c.b16 %v1238, %v1230
    %v2183 = vpack.c.b16 %v1239, %v1231
    %v2184 = vpack.c.b16 %v1240, %v1232
    %v2185 = vpack.c.b16 %v1241, %v1233
    %v2186 = vpack.c.b16 %v1250, %v1242
    %v2187 = vpack.c.b16 %v1251, %v1243
    %v2188 = vpack.c.b16 %v1252, %v1244
    %v2189 = vpack.c.b16 %v1253, %v1245
    %v2190 = vpack.c.b16 %v1254, %v1246
    %v2191 = vpack.c.b16 %v1255, %v1247
    %v2192 = vpack.c.b16 %v1256, %v1248
    %v2193 = vpack.c.b16 %v1257, %v1249
    %v2194 = vpack.c.b16 %v1266, %v1258
    %v2195 = vpack.c.b16 %v1267, %v1259
    %v2196 = vpack.c.b16 %v1268, %v1260
    %v2197 = vpack.c.b16 %v1269, %v1261
    %v2198 = vpack.c.b16 %v1270, %v1262
    %v2199 = vpack.c.b16 %v1271, %v1263
    %v2200 = vpack.c.b16 %v1272, %v1264
    %v2201 = vpack.c.b16 %v1273, %v1265
    %v2202 = vpack.c.b16 %v1282, %v1274
    %v2203 = vpack.c.b16 %v1283, %v1275
    %v2204 = vpack.c.b16 %v1284, %v1276
    %v2205 = vpack.c.b16 %v1285, %v1277
    %v2206 = vpack.c.b16 %v1286, %v1278
    %v2207 = vpack.c.b16 %v1287, %v1279
    %v2208 = vpack.c.b16 %v1288, %v1280
    %v2209 = vpack.c.b16 %v1289, %v1281
    %v2210 = vpack.c.b16 %v1298, %v1290
    %v2211 = vpack.c.b16 %v1299, %v1291
    %v2212 = vpack.c.b16 %v1300, %v1292
    %v2213 = vpack.c.b16 %v1301, %v1293
    %v2214 = vpack.c.b16 %v1302, %v1294
    %v2215 = vpack.c.b16 %v1303, %v1295
    %v2216 = vpack.c.b16 %v1304, %v1296
    %v2217 = vpack.c.b16 %v1305, %v1297
    %v2218 = vpack.c.b16 %v1314, %v1306
    %v2219 = vpack.c.b16 %v1315, %v1307
    %v2220 = vpack.c.b16 %v1316, %v1308
    %v2221 = vpack.c.b16 %v1317, %v1309
    %v2222 = vpack.c.b16 %v1318, %v1310
    %v2223 = vpack.c.b16 %v1319, %v1311
    %v2224 = vpack.c.b16 %v1320, %v1312
    %v2225 = vpack.c.b16 %v1321, %v1313
    %v2226 = vpack.c.b16 %v1330, %v1322
    %v2227 = vpack.c.b16 %v1331, %v1323
    %v2228 = vpack.c.b16 %v1332, %v1324
    %v2229 = vpack.c.b16 %v1333, %v1325
    %v2230 = vpack.c.b16 %v1334, %v1326
    %v2231 = vpack.c.b16 %v1335, %v1327
    %v2232 = vpack.c.b16 %v1336, %v1328
    %v2233 = vpack.c.b16 %v1337, %v1329
    %v2234 = vpack.c.b16 %v1346, %v1338
    %v2235 = vpack.c.b16 %v1347, %v1339
    %v2236 = vpack.c.b16 %v1348, %v1340
    %v2237 = vpack.c.b16 %v1349, %v1341
    %v2238 = vpack.c.b16 %v1350, %v1342
    %v2239 = vpack.c.b16 %v1351, %v1343
    %v2240 = vpack.c.b16 %v1352, %v1344
    %v2241 = vpack.c.b16 %v1353, %v1345
    %v2242 = vpack.c.b16 %v1362, %v1354
    %v2243 = vpack.c.b16 %v1363, %v1355
    %v2244 = vpack.c.b16 %v1364, %v1356
    %v2245 = vpack.c.b16 %v1365, %v1357
    %v2246 = vpack.c.b16 %v1366, %v1358
    %v2247 = vpack.c.b16 %v1367, %v1359
    %v2248 = vpack.c.b16 %v1368, %v1360
    %v2249 = vpack.c.b16 %v1369, %v1361
    %v2250 = vpack.c.b16 %v1378, %v1370
    %v2251 = vpack.c.b16 %v1379, %v1371
    %v2252 = vpack.c.b16 %v1380, %v1372
    %v2253 = vpack.c.b16 %v1381, %v1373
    %v2254 = vpack.c.b16 %v1382, %v1374
    %v2255 = vpack.c.b16 %v1383, %v1375
    %v2256 = vpack.c.b16 %v1384, %v1376
    %v2257 = vpack.c.b16 %v1385, %v1377
    %v2258 = vpack.c.b16 %v1394, %v1386
    %v2259 = vpack.c.b16 %v1395, %v1387
    %v2260 = vpack.c.b16 %v1396, %v1388
    %v2261 = vpack.c.b16 %v1397, %v1389
    %v2262 = vpack.c.b16 %v1398, %v1390
    %v2263 = vpack.c.b16 %v1399, %v1391
    %v2264 = vpack.c.b16 %v1400, %v1392
    %v2265 = vpack.c.b16 %v1401, %v1393
    %v2266 = vpack.c.b16 %v1410, %v1402
    %v2267 = vpack.c.b16 %v1411, %v1403
    %v2268 = vpack.c.b16 %v1412, %v1404
    %v2269 = vpack.c.b16 %v1413, %v1405
    %v2270 = vpack.c.b16 %v1414, %v1406
    %v2271 = vpack.c.b16 %v1415, %v1407
    %v2272 = vpack.c.b16 %v1416, %v1408
    %v2273 = vpack.c.b16 %v1417, %v1409
    %v2274 = vpack.c.b16 %v1426, %v1418
    %v2275 = vpack.c.b16 %v1427, %v1419
    %v2276 = vpack.c.b16 %v1428, %v1420
    %v2277 = vpack.c.b16 %v1429, %v1421
    %v2278 = vpack.c.b16 %v1430, %v1422
    %v2279 = vpack.c.b16 %v1431, %v1423
    %v2280 = vpack.c.b16 %v1432, %v1424
    %v2281 = vpack.c.b16 %v1433, %v1425
    %v2282 = vpack.c.b16 %v1442, %v1434
    %v2283 = vpack.c.b16 %v1443, %v1435
    %v2284 = vpack.c.b16 %v1444, %v1436
    %v2285 = vpack.c.b16 %v1445, %v1437
    %v2286 = vpack.c.b16 %v1446, %v1438
    %v2287 = vpack.c.b16 %v1447, %v1439
    %v2288 = vpack.c.b16 %v1448, %v1440
    %v2289 = vpack.c.b16 %v1449, %v1441
    %v2290 = vpack.c.b16 %v1458, %v1450
    %v2291 = vpack.c.b16 %v1459, %v1451
    %v2292 = vpack.c.b16 %v1460, %v1452
    %v2293 = vpack.c.b16 %v1461, %v1453
    %v2294 = vpack.c.b16 %v1462, %v1454
    %v2295 = vpack.c.b16 %v1463, %v1455
    %v2296 = vpack.c.b16 %v1464, %v1456
    %v2297 = vpack.c.b16 %v1465, %v1457
    %v2298 = vpack.c.b16 %v1474, %v1466
    %v2299 = vpack.c.b16 %v1475, %v1467
    %v2300 = vpack.c.b16 %v1476, %v1468
    %v2301 = vpack.c.b16 %v1477, %v1469
    %v2302 = vpack.c.b16 %v1478, %v1470
    %v2303 = vpack.c.b16 %v1479, %v1471
    %v2304 = vpack.c.b16 %v1480, %v1472
    %v2305 = vpack.c.b16 %v1481, %v1473
    %v2306 = vpack.c.b16 %v1490, %v1482
    %v2307 = vpack.c.b16 %v1491, %v1483
    %v2308 = vpack.c.b16 %v1492, %v1484
    %v2309 = vpack.c.b16 %v1493, %v1485
    %v2310 = vpack.c.b16 %v1494, %v1486
    %v2311 = vpack.c.b16 %v1495, %v1487
    %v2312 = vpack.c.b16 %v1496, %v1488
    %v2313 = vpack.c.b16 %v1497, %v1489
    %v2314 = vpack.c.b16 %v1506, %v1498
    %v2315 = vpack.c.b16 %v1507, %v1499
    %v2316 = vpack.c.b16 %v1508, %v1500
    %v2317 = vpack.c.b16 %v1509, %v1501
    %v2318 = vpack.c.b16 %v1510, %v1502
    %v2319 = vpack.c.b16 %v1511, %v1503
    %v2320 = vpack.c.b16 %v1512, %v1504
    %v2321 = vpack.c.b16 %v1513, %v1505
    %v2322 = vpack.c.b16 %v1522, %v1514
    %v2323 = vpack.c.b16 %v1523, %v1515
    %v2324 = vpack.c.b16 %v1524, %v1516
    %v2325 = vpack.c.b16 %v1525, %v1517
    %v2326 = vpack.c.b16 %v1526, %v1518
    %v2327 = vpack.c.b16 %v1527, %v1519
    %v2328 = vpack.c.b16 %v1528, %v1520
    %v2329 = vpack.c.b16 %v1529, %v1521
    %v2330 = vpack.c.b16 %v1538, %v1530
    %v2331 = vpack.c.b16 %v1539, %v1531
    %v2332 = vpack.c.b16 %v1540, %v1532
    %v2333 = vpack.c.b16 %v1541, %v1533
    %v2334 = vpack.c.b16 %v1542, %v1534
    %v2335 = vpack.c.b16 %v1543, %v1535
    %v2336 = vpack.c.b16 %v1544, %v1536
    %v2337 = vpack.c.b16 %v1545, %v1537
    %v2338 = vpack.c.b16 %v1554, %v1546
    %v2339 = vpack.c.b16 %v1555, %v1547
    %v2340 = vpack.c.b16 %v1556, %v1548
    %v2341 = vpack.c.b16 %v1557, %v1549
    %v2342 = vpack.c.b16 %v1558, %v1550
    %v2343 = vpack.c.b16 %v1559, %v1551
    %v2344 = vpack.c.b16 %v1560, %v1552
    %v2345 = vpack.c.b16 %v1561, %v1553
    %v2346 = vpack.c.b16 %v1570, %v1562
    %v2347 = vpack.c.b16 %v1571, %v1563
    %v2348 = vpack.c.b16 %v1572, %v1564
    %v2349 = vpack.c.b16 %v1573, %v1565
    %v2350 = vpack.c.b16 %v1574, %v1566
    %v2351 = vpack.c.b16 %v1575, %v1567
    %v2352 = vpack.c.b16 %v1576, %v1568
    %v2353 = vpack.c.b16 %v1577, %v1569
    %v2354 = vpack.c.b16 %v1586, %v1578
    %v2355 = vpack.c.b16 %v1587, %v1579
    %v2356 = vpack.c.b16 %v1588, %v1580
    %v2357 = vpack.c.b16 %v1589, %v1581
    %v2358 = vpack.c.b16 %v1590, %v1582
    %v2359 = vpack.c.b16 %v1591, %v1583
    %v2360 = vpack.c.b16 %v1592, %v1584
    %v2361 = vpack.c.b16 %v1593, %v1585
    %v2362 = vpack.c.b16 %v1602, %v1594
    %v2363 = vpack.c.b16 %v1603, %v1595
    %v2364 = vpack.c.b16 %v1604, %v1596
    %v2365 = vpack.c.b16 %v1605, %v1597
    %v2366 = vpack.c.b16 %v1606, %v1598
    %v2367 = vpack.c.b16 %v1607, %v1599
    %v2368 = vpack.c.b16 %v1608, %v1600
    %v2369 = vpack.c.b16 %v1609, %v1601
    %v2370 = vpack.c.b16 %v1618, %v1610
    %v2371 = vpack.c.b16 %v1619, %v1611
    %v2372 = vpack.c.b16 %v1620, %v1612
    %v2373 = vpack.c.b16 %v1621, %v1613
    %v2374 = vpack.c.b16 %v1622, %v1614
    %v2375 = vpack.c.b16 %v1623, %v1615
    %v2376 = vpack.c.b16 %v1624, %v1616
    %v2377 = vpack.c.b16 %v1625, %v1617
    %v2378 = vpack.c.b16 %v1634, %v1626
    %v2379 = vpack.c.b16 %v1635, %v1627
    %v2380 = vpack.c.b16 %v1636, %v1628
    %v2381 = vpack.c.b16 %v1637, %v1629
    %v2382 = vpack.c.b16 %v1638, %v1630
    %v2383 = vpack.c.b16 %v1639, %v1631
    %v2384 = vpack.c.b16 %v1640, %v1632
    %v2385 = vpack.c.b16 %v1641, %v1633
    %v2386 = vpack.c.b16 %v1650, %v1642
    %v2387 = vpack.c.b16 %v1651, %v1643
    %v2388 = vpack.c.b16 %v1652, %v1644
    %v2389 = vpack.c.b16 %v1653, %v1645
    %v2390 = vpack.c.b16 %v1654, %v1646
    %v2391 = vpack.c.b16 %v1655, %v1647
    %v2392 = vpack.c.b16 %v1656, %v1648
    %v2393 = vpack.c.b16 %v1657, %v1649
    %v2394 = vpack.c.b16 %v1666, %v1658
    %v2395 = vpack.c.b16 %v1667, %v1659
    %v2396 = vpack.c.b16 %v1668, %v1660
    %v2397 = vpack.c.b16 %v1669, %v1661
    %v2398 = vpack.c.b16 %v1670, %v1662
    %v2399 = vpack.c.b16 %v1671, %v1663
    %v2400 = vpack.c.b16 %v1672, %v1664
    %v2401 = vpack.c.b16 %v1673, %v1665
    %v2402 = vpack.c.b16 %v1682, %v1674
    %v2403 = vpack.c.b16 %v1683, %v1675
    %v2404 = vpack.c.b16 %v1684, %v1676
    %v2405 = vpack.c.b16 %v1685, %v1677
    %v2406 = vpack.c.b16 %v1686, %v1678
    %v2407 = vpack.c.b16 %v1687, %v1679
    %v2408 = vpack.c.b16 %v1688, %v1680
    %v2409 = vpack.c.b16 %v1689, %v1681
    %v2410 = vpack.c.b16 %v1698, %v1690
    %v2411 = vpack.c.b16 %v1699, %v1691
    %v2412 = vpack.c.b16 %v1700, %v1692
    %v2413 = vpack.c.b16 %v1701, %v1693
    %v2414 = vpack.c.b16 %v1702, %v1694
    %v2415 = vpack.c.b16 %v1703, %v1695
    %v2416 = vpack.c.b16 %v1704, %v1696
    %v2417 = vpack.c.b16 %v1705, %v1697
    %v2418 = vpack.c.b16 %v1714, %v1706
    %v2419 = vpack.c.b16 %v1715, %v1707
    %v2420 = vpack.c.b16 %v1716, %v1708
    %v2421 = vpack.c.b16 %v1717, %v1709
    %v2422 = vpack.c.b16 %v1718, %v1710
    %v2423 = vpack.c.b16 %v1719, %v1711
    %v2424 = vpack.c.b16 %v1720, %v1712
    %v2425 = vpack.c.b16 %v1721, %v1713
    %v2426 = vpack.c.b16 %v1730, %v1722
    %v2427 = vpack.c.b16 %v1731, %v1723
    %v2428 = vpack.c.b16 %v1732, %v1724
    %v2429 = vpack.c.b16 %v1733, %v1725
    %v2430 = vpack.c.b16 %v1734, %v1726
    %v2431 = vpack.c.b16 %v1735, %v1727
    %v2432 = vpack.c.b16 %v1736, %v1728
    %v2433 = vpack.c.b16 %v1737, %v1729
    %v2434 = vpack.c.b16 %v1746, %v1738
    %v2435 = vpack.c.b16 %v1747, %v1739
    %v2436 = vpack.c.b16 %v1748, %v1740
    %v2437 = vpack.c.b16 %v1749, %v1741
    %v2438 = vpack.c.b16 %v1750, %v1742
    %v2439 = vpack.c.b16 %v1751, %v1743
    %v2440 = vpack.c.b16 %v1752, %v1744
    %v2441 = vpack.c.b16 %v1753, %v1745
    %v2442 = vpack.c.b16 %v1762, %v1754
    %v2443 = vpack.c.b16 %v1763, %v1755
    %v2444 = vpack.c.b16 %v1764, %v1756
    %v2445 = vpack.c.b16 %v1765, %v1757
    %v2446 = vpack.c.b16 %v1766, %v1758
    %v2447 = vpack.c.b16 %v1767, %v1759
    %v2448 = vpack.c.b16 %v1768, %v1760
    %v2449 = vpack.c.b16 %v1769, %v1761
    %v2450 = vpack.c.b16 %v1778, %v1770
    %v2451 = vpack.c.b16 %v1779, %v1771
    %v2452 = vpack.c.b16 %v1780, %v1772
    %v2453 = vpack.c.b16 %v1781, %v1773
    %v2454 = vpack.c.b16 %v1782, %v1774
    %v2455 = vpack.c.b16 %v1783, %v1775
    %v2456 = vpack.c.b16 %v1784, %v1776
    %v2457 = vpack.c.b16 %v1785, %v1777
    %v2458 = vpack.c.b16 %v1794, %v1786
    %v2459 = vpack.c.b16 %v1795, %v1787
    %v2460 = vpack.c.b16 %v1796, %v1788
    %v2461 = vpack.c.b16 %v1797, %v1789
    %v2462 = vpack.c.b16 %v1798, %v1790
    %v2463 = vpack.c.b16 %v1799, %v1791
    %v2464 = vpack.c.b16 %v1800, %v1792
    %v2465 = vpack.c.b16 %v1801, %v1793
    %v2466 = vpack.c.b16 %v1810, %v1802
    %v2467 = vpack.c.b16 %v1811, %v1803
    %v2468 = vpack.c.b16 %v1812, %v1804
    %v2469 = vpack.c.b16 %v1813, %v1805
    %v2470 = vpack.c.b16 %v1814, %v1806
    %v2471 = vpack.c.b16 %v1815, %v1807
    %v2472 = vpack.c.b16 %v1816, %v1808
    %v2473 = vpack.c.b16 %v1817, %v1809
    %v2474 = vpack.c.b16 %v1826, %v1818
    %v2475 = vpack.c.b16 %v1827, %v1819
    %v2476 = vpack.c.b16 %v1828, %v1820
    %v2477 = vpack.c.b16 %v1829, %v1821
    %v2478 = vpack.c.b16 %v1830, %v1822
    %v2479 = vpack.c.b16 %v1831, %v1823
    %v2480 = vpack.c.b16 %v1832, %v1824
    %v2481 = vpack.c.b16 %v1833, %v1825
    %v2482 = vpack.c.b16 %v1842, %v1834
    %v2483 = vpack.c.b16 %v1843, %v1835
    %v2484 = vpack.c.b16 %v1844, %v1836
    %v2485 = vpack.c.b16 %v1845, %v1837
    %v2486 = vpack.c.b16 %v1846, %v1838
    %v2487 = vpack.c.b16 %v1847, %v1839
    %v2488 = vpack.c.b16 %v1848, %v1840
    %v2489 = vpack.c.b16 %v1849, %v1841
    %v2490 = vpack.c.b16 %v1858, %v1850
    %v2491 = vpack.c.b16 %v1859, %v1851
    %v2492 = vpack.c.b16 %v1860, %v1852
    %v2493 = vpack.c.b16 %v1861, %v1853
    %v2494 = vpack.c.b16 %v1862, %v1854
    %v2495 = vpack.c.b16 %v1863, %v1855
    %v2496 = vpack.c.b16 %v1864, %v1856
    %v2497 = vpack.c.b16 %v1865, %v1857
    %v2498 = vpack.c.b16 %v1874, %v1866
    %v2499 = vpack.c.b16 %v1875, %v1867
    %v2500 = vpack.c.b16 %v1876, %v1868
    %v2501 = vpack.c.b16 %v1877, %v1869
    %v2502 = vpack.c.b16 %v1878, %v1870
    %v2503 = vpack.c.b16 %v1879, %v1871
    %v2504 = vpack.c.b16 %v1880, %v1872
    %v2505 = vpack.c.b16 %v1881, %v1873
    %v2506 = vpack.c.b16 %v1890, %v1882
    %v2507 = vpack.c.b16 %v1891, %v1883
    %v2508 = vpack.c.b16 %v1892, %v1884
    %v2509 = vpack.c.b16 %v1893, %v1885
    %v2510 = vpack.c.b16 %v1894, %v1886
    %v2511 = vpack.c.b16 %v1895, %v1887
    %v2512 = vpack.c.b16 %v1896, %v1888
    %v2513 = vpack.c.b16 %v1897, %v1889
    %v2514 = vpack.c.b16 %v1906, %v1898
    %v2515 = vpack.c.b16 %v1907, %v1899
    %v2516 = vpack.c.b16 %v1908, %v1900
    %v2517 = vpack.c.b16 %v1909, %v1901
    %v2518 = vpack.c.b16 %v1910, %v1902
    %v2519 = vpack.c.b16 %v1911, %v1903
    %v2520 = vpack.c.b16 %v1912, %v1904
    %v2521 = vpack.c.b16 %v1913, %v1905
    %v2522 = vpack.c.b16 %v1922, %v1914
    %v2523 = vpack.c.b16 %v1923, %v1915
    %v2524 = vpack.c.b16 %v1924, %v1916
    %v2525 = vpack.c.b16 %v1925, %v1917
    %v2526 = vpack.c.b16 %v1926, %v1918
    %v2527 = vpack.c.b16 %v1927, %v1919
    %v2528 = vpack.c.b16 %v1928, %v1920
    %v2529 = vpack.c.b16 %v1929, %v1921
    %v2530 = vpack.c.b16 %v1938, %v1930
    %v2531 = vpack.c.b16 %v1939, %v1931
    %v2532 = vpack.c.b16 %v1940, %v1932
    %v2533 = vpack.c.b16 %v1941, %v1933
    %v2534 = vpack.c.b16 %v1942, %v1934
    %v2535 = vpack.c.b16 %v1943, %v1935
    %v2536 = vpack.c.b16 %v1944, %v1936
    %v2537 = vpack.c.b16 %v1945, %v1937
    %v2538 = vpack.c.b16 %v1954, %v1946
    %v2539 = vpack.c.b16 %v1955, %v1947
    %v2540 = vpack.c.b16 %v1956, %v1948
    %v2541 = vpack.c.b16 %v1957, %v1949
    %v2542 = vpack.c.b16 %v1958, %v1950
    %v2543 = vpack.c.b16 %v1959, %v1951
    %v2544 = vpack.c.b16 %v1960, %v1952
    %v2545 = vpack.c.b16 %v1961, %v1953
    %v2546 = vpack.c.b16 %v1970, %v1962
    %v2547 = vpack.c.b16 %v1971, %v1963
    %v2548 = vpack.c.b16 %v1972, %v1964
    %v2549 = vpack.c.b16 %v1973, %v1965
    %v2550 = vpack.c.b16 %v1974, %v1966
    %v2551 = vpack.c.b16 %v1975, %v1967
    %v2552 = vpack.c.b16 %v1976, %v1968
    %v2553 = vpack.c.b16 %v1977, %v1969
    %v2554 = vpack.c.b16 %v1986, %v1978
    %v2555 = vpack.c.b16 %v1987, %v1979
    %v2556 = vpack.c.b16 %v1988, %v1980
    %v2557 = vpack.c.b16 %v1989, %v1981
    %v2558 = vpack.c.b16 %v1990, %v1982
    %v2559 = vpack.c.b16 %v1991, %v1983
    %v2560 = vpack.c.b16 %v1992, %v1984
    %v2561 = vpack.c.b16 %v1993, %v1985
    %v2562 = vpack.c.b16 %v2002, %v1994
    %v2563 = vpack.c.b16 %v2003, %v1995
    %v2564 = vpack.c.b16 %v2004, %v1996
    %v2565 = vpack.c.b16 %v2005, %v1997
    %v2566 = vpack.c.b16 %v2006, %v1998
    %v2567 = vpack.c.b16 %v2007, %v1999
    %v2568 = vpack.c.b16 %v2008, %v2000
    %v2569 = vpack.c.b16 %v2009, %v2001
    %v2570 = vpack.c.b16 %v2018, %v2010
    %v2571 = vpack.c.b16 %v2019, %v2011
    %v2572 = vpack.c.b16 %v2020, %v2012
    %v2573 = vpack.c.b16 %v2021, %v2013
    %v2574 = vpack.c.b16 %v2022, %v2014
    %v2575 = vpack.c.b16 %v2023, %v2015
    %v2576 = vpack.c.b16 %v2024, %v2016
    %v2577 = vpack.c.b16 %v2025, %v2017
    %v2578 = vpack.c.b16 %v2034, %v2026
    %v2579 = vpack.c.b16 %v2035, %v2027
    %v2580 = vpack.c.b16 %v2036, %v2028
    %v2581 = vpack.c.b16 %v2037, %v2029
    %v2582 = vpack.c.b16 %v2038, %v2030
    %v2583 = vpack.c.b16 %v2039, %v2031
    %v2584 = vpack.c.b16 %v2040, %v2032
    %v2585 = vpack.c.b16 %v2041, %v2033
    %v2586 = vpack.c.b16 %v2050, %v2042
    %v2587 = vpack.c.b16 %v2051, %v2043
    %v2588 = vpack.c.b16 %v2052, %v2044
    %v2589 = vpack.c.b16 %v2053, %v2045
    %v2590 = vpack.c.b16 %v2054, %v2046
    %v2591 = vpack.c.b16 %v2055, %v2047
    %v2592 = vpack.c.b16 %v2056, %v2048
    %v2593 = vpack.c.b16 %v2057, %v2049
    %v2594 = vpack.c.b16 %v2066, %v2058
    %v2595 = vpack.c.b16 %v2067, %v2059
    %v2596 = vpack.c.b16 %v2068, %v2060
    %v2597 = vpack.c.b16 %v2069, %v2061
    %v2598 = vpack.c.b16 %v2070, %v2062
    %v2599 = vpack.c.b16 %v2071, %v2063
    %v2600 = vpack.c.b16 %v2072, %v2064
    %v2601 = vpack.c.b16 %v2073, %v2065
    %v2602 = vpack.c.b16 %v2082, %v2074
    %v2603 = vpack.c.b16 %v2083, %v2075
    %v2604 = vpack.c.b16 %v2084, %v2076
    %v2605 = vpack.c.b16 %v2085, %v2077
    %v2606 = vpack.c.b16 %v2086, %v2078
    %v2607 = vpack.c.b16 %v2087, %v2079
    %v2608 = vpack.c.b16 %v2088, %v2080
    %v2609 = vpack.c.b16 %v2089, %v2081
    %v2610 = vpack.c.b16 %v2098, %v2090
    %v2611 = vpack.c.b16 %v2099, %v2091
    %v2612 = vpack.c.b16 %v2100, %v2092
    %v2613 = vpack.c.b16 %v2101, %v2093
    %v2614 = vpack.c.b16 %v2102, %v2094
    %v2615 = vpack.c.b16 %v2103, %v2095
    %v2616 = vpack.c.b16 %v2104, %v2096
    %v2617 = vpack.c.b16 %v2105, %v2097
    %3130 = vmatpush.bf16.msra.mxu0 %v2162
    %3131 = vmatpush.bf16.msra.mxu0 %v2154
    %3132 = vmatpush.bf16.msra.mxu0 %v2146
    %3133 = vmatpush.bf16.msra.mxu0 %v2138
    %3134 = vmatpush.bf16.msra.mxu0 %v2130
    %3135 = vmatpush.bf16.msra.mxu0 %v2122
    %3136 = vmatpush.bf16.msra.mxu0 %v2114
    %3137 = vmatpush.bf16.msra.mxu0 %v2106
    %3138 = vmatmul.bf16.gmra.mxu0 %v554
    %v3139 = vpop.f32.mrf.mxu0
    %v3140 = vadd.f32 %v536, %v3139
    %v3141 = vpop.f32.mrf.mxu0
    %3142 = vdwg.mxu0
    %3143 = vmatpush.bf16.msra.mxu0 %v2226
    %3144 = vmatpush.bf16.msra.mxu0 %v2218
    %3145 = vmatpush.bf16.msra.mxu0 %v2210
    %3146 = vmatpush.bf16.msra.mxu0 %v2202
    %3147 = vmatpush.bf16.msra.mxu0 %v2194
    %3148 = vmatpush.bf16.msra.mxu0 %v2186
    %3149 = vmatpush.bf16.msra.mxu0 %v2178
    %3150 = vmatpush.bf16.msra.mxu0 %v2170
    %3151 = vmatmul.bf16.gmra.mxu0 %v555
    %v3152 = vpop.f32.mrf.mxu0
    %v3153 = vadd.f32 %v3140, %v3152
    %v3154 = vpop.f32.mrf.mxu0
    %3155 = vdwg.mxu0
    %3156 = vmatpush.bf16.msra.mxu0 %v2290
    %3157 = vmatpush.bf16.msra.mxu0 %v2282
    %3158 = vmatpush.bf16.msra.mxu0 %v2274
    %3159 = vmatpush.bf16.msra.mxu0 %v2266
    %3160 = vmatpush.bf16.msra.mxu0 %v2258
    %3161 = vmatpush.bf16.msra.mxu0 %v2250
    %3162 = vmatpush.bf16.msra.mxu0 %v2242
    %3163 = vmatpush.bf16.msra.mxu0 %v2234
    %3164 = vmatmul.bf16.gmra.mxu0 %v556
    %v3165 = vpop.f32.mrf.mxu0
    %v3166 = vadd.f32 %v3153, %v3165
    %v3167 = vpop.f32.mrf.mxu0
    %3168 = vdwg.mxu0
    %3169 = vmatpush.bf16.msra.mxu0 %v2354
    %3170 = vmatpush.bf16.msra.mxu0 %v2346
    %3171 = vmatpush.bf16.msra.mxu0 %v2338
    %3172 = vmatpush.bf16.msra.mxu0 %v2330
    %3173 = vmatpush.bf16.msra.mxu0 %v2322
    %3174 = vmatpush.bf16.msra.mxu0 %v2314
    %3175 = vmatpush.bf16.msra.mxu0 %v2306
    %3176 = vmatpush.bf16.msra.mxu0 %v2298
    %3177 = vmatmul.bf16.gmra.mxu0 %v557
    %v3178 = vpop.f32.mrf.mxu0
    %v3179 = vadd.f32 %v3166, %v3178
    %v3180 = vpop.f32.mrf.mxu0
    %3181 = vdwg.mxu0
    %3182 = vmatpush.bf16.msra.mxu0 %v2418
    %3183 = vmatpush.bf16.msra.mxu0 %v2410
    %3184 = vmatpush.bf16.msra.mxu0 %v2402
    %3185 = vmatpush.bf16.msra.mxu0 %v2394
    %3186 = vmatpush.bf16.msra.mxu0 %v2386
    %3187 = vmatpush.bf16.msra.mxu0 %v2378
    %3188 = vmatpush.bf16.msra.mxu0 %v2370
    %3189 = vmatpush.bf16.msra.mxu0 %v2362
    %3190 = vmatmul.bf16.gmra.mxu0 %v558
    %v3191 = vpop.f32.mrf.mxu0
    %v3192 = vadd.f32 %v3179, %v3191
    %v3193 = vpop.f32.mrf.mxu0
    %3194 = vdwg.mxu0
    %3195 = vmatpush.bf16.msra.mxu0 %v2482
    %3196 = vmatpush.bf16.msra.mxu0 %v2474
    %3197 = vmatpush.bf16.msra.mxu0 %v2466
    %3198 = vmatpush.bf16.msra.mxu0 %v2458
    %3199 = vmatpush.bf16.msra.mxu0 %v2450
    %3200 = vmatpush.bf16.msra.mxu0 %v2442
    %3201 = vmatpush.bf16.msra.mxu0 %v2434
    %3202 = vmatpush.bf16.msra.mxu0 %v2426
    %3203 = vmatmul.bf16.gmra.mxu0 %v559
    %v3204 = vpop.f32.mrf.mxu0
    %v3205 = vadd.f32 %v3192, %v3204
    %v3206 = vpop.f32.mrf.mxu0
    %3207 = vdwg.mxu0
    %3208 = vmatpush.bf16.msra.mxu0 %v2546
    %3209 = vmatpush.bf16.msra.mxu0 %v2538
    %3210 = vmatpush.bf16.msra.mxu0 %v2530
    %3211 = vmatpush.bf16.msra.mxu0 %v2522
    %3212 = vmatpush.bf16.msra.mxu0 %v2514
    %3213 = vmatpush.bf16.msra.mxu0 %v2506
    %3214 = vmatpush.bf16.msra.mxu0 %v2498
    %3215 = vmatpush.bf16.msra.mxu0 %v2490
    %3216 = vmatmul.bf16.gmra.mxu0 %v560
    %v3217 = vpop.f32.mrf.mxu0
    %v3218 = vadd.f32 %v3205, %v3217
    %v3219 = vpop.f32.mrf.mxu0
    %3220 = vdwg.mxu0
    %3221 = vmatpush.bf16.msra.mxu0 %v2610
    %3222 = vmatpush.bf16.msra.mxu0 %v2602
    %3223 = vmatpush.bf16.msra.mxu0 %v2594
    %3224 = vmatpush.bf16.msra.mxu0 %v2586
    %3225 = vmatpush.bf16.msra.mxu0 %v2578
    %3226 = vmatpush.bf16.msra.mxu0 %v2570
    %3227 = vmatpush.bf16.msra.mxu0 %v2562
    %3228 = vmatpush.bf16.msra.mxu0 %v2554
    %3229 = vmatmul.bf16.gmra.mxu0 %v561
    %v3230 = vpop.f32.mrf.mxu0
    %v3231 = vadd.f32 %v3218, %v3230
    %v3232 = vpop.f32.mrf.mxu0
    %3233 = vdwg.mxu0
    %3234 = vmatpush.bf16.msra.mxu0 %v2163
    %3235 = vmatpush.bf16.msra.mxu0 %v2155
    %3236 = vmatpush.bf16.msra.mxu0 %v2147
    %3237 = vmatpush.bf16.msra.mxu0 %v2139
    %3238 = vmatpush.bf16.msra.mxu0 %v2131
    %3239 = vmatpush.bf16.msra.mxu0 %v2123
    %3240 = vmatpush.bf16.msra.mxu0 %v2115
    %3241 = vmatpush.bf16.msra.mxu0 %v2107
    %3242 = vmatmul.bf16.gmra.mxu0 %v554
    %v3243 = vpop.f32.mrf.mxu0
    %v3244 = vadd.f32 %v537, %v3243
    %v3245 = vpop.f32.mrf.mxu0
    %3246 = vdwg.mxu0
    %3247 = vmatpush.bf16.msra.mxu0 %v2227
    %3248 = vmatpush.bf16.msra.mxu0 %v2219
    %3249 = vmatpush.bf16.msra.mxu0 %v2211
    %3250 = vmatpush.bf16.msra.mxu0 %v2203
    %3251 = vmatpush.bf16.msra.mxu0 %v2195
    %3252 = vmatpush.bf16.msra.mxu0 %v2187
    %3253 = vmatpush.bf16.msra.mxu0 %v2179
    %3254 = vmatpush.bf16.msra.mxu0 %v2171
    %3255 = vmatmul.bf16.gmra.mxu0 %v555
    %v3256 = vpop.f32.mrf.mxu0
    %v3257 = vadd.f32 %v3244, %v3256
    %v3258 = vpop.f32.mrf.mxu0
    %3259 = vdwg.mxu0
    %3260 = vmatpush.bf16.msra.mxu0 %v2291
    %3261 = vmatpush.bf16.msra.mxu0 %v2283
    %3262 = vmatpush.bf16.msra.mxu0 %v2275
    %3263 = vmatpush.bf16.msra.mxu0 %v2267
    %3264 = vmatpush.bf16.msra.mxu0 %v2259
    %3265 = vmatpush.bf16.msra.mxu0 %v2251
    %3266 = vmatpush.bf16.msra.mxu0 %v2243
    %3267 = vmatpush.bf16.msra.mxu0 %v2235
    %3268 = vmatmul.bf16.gmra.mxu0 %v556
    %v3269 = vpop.f32.mrf.mxu0
    %v3270 = vadd.f32 %v3257, %v3269
    %v3271 = vpop.f32.mrf.mxu0
    %3272 = vdwg.mxu0
    %3273 = vmatpush.bf16.msra.mxu0 %v2355
    %3274 = vmatpush.bf16.msra.mxu0 %v2347
    %3275 = vmatpush.bf16.msra.mxu0 %v2339
    %3276 = vmatpush.bf16.msra.mxu0 %v2331
    %3277 = vmatpush.bf16.msra.mxu0 %v2323
    %3278 = vmatpush.bf16.msra.mxu0 %v2315
    %3279 = vmatpush.bf16.msra.mxu0 %v2307
    %3280 = vmatpush.bf16.msra.mxu0 %v2299
    %3281 = vmatmul.bf16.gmra.mxu0 %v557
    %v3282 = vpop.f32.mrf.mxu0
    %v3283 = vadd.f32 %v3270, %v3282
    %v3284 = vpop.f32.mrf.mxu0
    %3285 = vdwg.mxu0
    %3286 = vmatpush.bf16.msra.mxu0 %v2419
    %3287 = vmatpush.bf16.msra.mxu0 %v2411
    %3288 = vmatpush.bf16.msra.mxu0 %v2403
    %3289 = vmatpush.bf16.msra.mxu0 %v2395
    %3290 = vmatpush.bf16.msra.mxu0 %v2387
    %3291 = vmatpush.bf16.msra.mxu0 %v2379
    %3292 = vmatpush.bf16.msra.mxu0 %v2371
    %3293 = vmatpush.bf16.msra.mxu0 %v2363
    %3294 = vmatmul.bf16.gmra.mxu0 %v558
    %v3295 = vpop.f32.mrf.mxu0
    %v3296 = vadd.f32 %v3283, %v3295
    %v3297 = vpop.f32.mrf.mxu0
    %3298 = vdwg.mxu0
    %3299 = vmatpush.bf16.msra.mxu0 %v2483
    %3300 = vmatpush.bf16.msra.mxu0 %v2475
    %3301 = vmatpush.bf16.msra.mxu0 %v2467
    %3302 = vmatpush.bf16.msra.mxu0 %v2459
    %3303 = vmatpush.bf16.msra.mxu0 %v2451
    %3304 = vmatpush.bf16.msra.mxu0 %v2443
    %3305 = vmatpush.bf16.msra.mxu0 %v2435
    %3306 = vmatpush.bf16.msra.mxu0 %v2427
    %3307 = vmatmul.bf16.gmra.mxu0 %v559
    %v3308 = vpop.f32.mrf.mxu0
    %v3309 = vadd.f32 %v3296, %v3308
    %v3310 = vpop.f32.mrf.mxu0
    %3311 = vdwg.mxu0
    %3312 = vmatpush.bf16.msra.mxu0 %v2547
    %3313 = vmatpush.bf16.msra.mxu0 %v2539
    %3314 = vmatpush.bf16.msra.mxu0 %v2531
    %3315 = vmatpush.bf16.msra.mxu0 %v2523
    %3316 = vmatpush.bf16.msra.mxu0 %v2515
    %3317 = vmatpush.bf16.msra.mxu0 %v2507
    %3318 = vmatpush.bf16.msra.mxu0 %v2499
    %3319 = vmatpush.bf16.msra.mxu0 %v2491
    %3320 = vmatmul.bf16.gmra.mxu0 %v560
    %v3321 = vpop.f32.mrf.mxu0
    %v3322 = vadd.f32 %v3309, %v3321
    %v3323 = vpop.f32.mrf.mxu0
    %3324 = vdwg.mxu0
    %3325 = vmatpush.bf16.msra.mxu0 %v2611
    %3326 = vmatpush.bf16.msra.mxu0 %v2603
    %3327 = vmatpush.bf16.msra.mxu0 %v2595
    %3328 = vmatpush.bf16.msra.mxu0 %v2587
    %3329 = vmatpush.bf16.msra.mxu0 %v2579
    %3330 = vmatpush.bf16.msra.mxu0 %v2571
    %3331 = vmatpush.bf16.msra.mxu0 %v2563
    %3332 = vmatpush.bf16.msra.mxu0 %v2555
    %3333 = vmatmul.bf16.gmra.mxu0 %v561
    %v3334 = vpop.f32.mrf.mxu0
    %v3335 = vadd.f32 %v3322, %v3334
    %v3336 = vpop.f32.mrf.mxu0
    %3337 = vdwg.mxu0
    %3338 = vmatpush.bf16.msra.mxu0 %v2164
    %3339 = vmatpush.bf16.msra.mxu0 %v2156
    %3340 = vmatpush.bf16.msra.mxu0 %v2148
    %3341 = vmatpush.bf16.msra.mxu0 %v2140
    %3342 = vmatpush.bf16.msra.mxu0 %v2132
    %3343 = vmatpush.bf16.msra.mxu0 %v2124
    %3344 = vmatpush.bf16.msra.mxu0 %v2116
    %3345 = vmatpush.bf16.msra.mxu0 %v2108
    %3346 = vmatmul.bf16.gmra.mxu0 %v554
    %v3347 = vpop.f32.mrf.mxu0
    %v3348 = vadd.f32 %v538, %v3347
    %v3349 = vpop.f32.mrf.mxu0
    %3350 = vdwg.mxu0
    %3351 = vmatpush.bf16.msra.mxu0 %v2228
    %3352 = vmatpush.bf16.msra.mxu0 %v2220
    %3353 = vmatpush.bf16.msra.mxu0 %v2212
    %3354 = vmatpush.bf16.msra.mxu0 %v2204
    %3355 = vmatpush.bf16.msra.mxu0 %v2196
    %3356 = vmatpush.bf16.msra.mxu0 %v2188
    %3357 = vmatpush.bf16.msra.mxu0 %v2180
    %3358 = vmatpush.bf16.msra.mxu0 %v2172
    %3359 = vmatmul.bf16.gmra.mxu0 %v555
    %v3360 = vpop.f32.mrf.mxu0
    %v3361 = vadd.f32 %v3348, %v3360
    %v3362 = vpop.f32.mrf.mxu0
    %3363 = vdwg.mxu0
    %3364 = vmatpush.bf16.msra.mxu0 %v2292
    %3365 = vmatpush.bf16.msra.mxu0 %v2284
    %3366 = vmatpush.bf16.msra.mxu0 %v2276
    %3367 = vmatpush.bf16.msra.mxu0 %v2268
    %3368 = vmatpush.bf16.msra.mxu0 %v2260
    %3369 = vmatpush.bf16.msra.mxu0 %v2252
    %3370 = vmatpush.bf16.msra.mxu0 %v2244
    %3371 = vmatpush.bf16.msra.mxu0 %v2236
    %3372 = vmatmul.bf16.gmra.mxu0 %v556
    %v3373 = vpop.f32.mrf.mxu0
    %v3374 = vadd.f32 %v3361, %v3373
    %v3375 = vpop.f32.mrf.mxu0
    %3376 = vdwg.mxu0
    %3377 = vmatpush.bf16.msra.mxu0 %v2356
    %3378 = vmatpush.bf16.msra.mxu0 %v2348
    %3379 = vmatpush.bf16.msra.mxu0 %v2340
    %3380 = vmatpush.bf16.msra.mxu0 %v2332
    %3381 = vmatpush.bf16.msra.mxu0 %v2324
    %3382 = vmatpush.bf16.msra.mxu0 %v2316
    %3383 = vmatpush.bf16.msra.mxu0 %v2308
    %3384 = vmatpush.bf16.msra.mxu0 %v2300
    %3385 = vmatmul.bf16.gmra.mxu0 %v557
    %v3386 = vpop.f32.mrf.mxu0
    %v3387 = vadd.f32 %v3374, %v3386
    %v3388 = vpop.f32.mrf.mxu0
    %3389 = vdwg.mxu0
    %3390 = vmatpush.bf16.msra.mxu0 %v2420
    %3391 = vmatpush.bf16.msra.mxu0 %v2412
    %3392 = vmatpush.bf16.msra.mxu0 %v2404
    %3393 = vmatpush.bf16.msra.mxu0 %v2396
    %3394 = vmatpush.bf16.msra.mxu0 %v2388
    %3395 = vmatpush.bf16.msra.mxu0 %v2380
    %3396 = vmatpush.bf16.msra.mxu0 %v2372
    %3397 = vmatpush.bf16.msra.mxu0 %v2364
    %3398 = vmatmul.bf16.gmra.mxu0 %v558
    %v3399 = vpop.f32.mrf.mxu0
    %v3400 = vadd.f32 %v3387, %v3399
    %v3401 = vpop.f32.mrf.mxu0
    %3402 = vdwg.mxu0
    %3403 = vmatpush.bf16.msra.mxu0 %v2484
    %3404 = vmatpush.bf16.msra.mxu0 %v2476
    %3405 = vmatpush.bf16.msra.mxu0 %v2468
    %3406 = vmatpush.bf16.msra.mxu0 %v2460
    %3407 = vmatpush.bf16.msra.mxu0 %v2452
    %3408 = vmatpush.bf16.msra.mxu0 %v2444
    %3409 = vmatpush.bf16.msra.mxu0 %v2436
    %3410 = vmatpush.bf16.msra.mxu0 %v2428
    %3411 = vmatmul.bf16.gmra.mxu0 %v559
    %v3412 = vpop.f32.mrf.mxu0
    %v3413 = vadd.f32 %v3400, %v3412
    %v3414 = vpop.f32.mrf.mxu0
    %3415 = vdwg.mxu0
    %3416 = vmatpush.bf16.msra.mxu0 %v2548
    %3417 = vmatpush.bf16.msra.mxu0 %v2540
    %3418 = vmatpush.bf16.msra.mxu0 %v2532
    %3419 = vmatpush.bf16.msra.mxu0 %v2524
    %3420 = vmatpush.bf16.msra.mxu0 %v2516
    %3421 = vmatpush.bf16.msra.mxu0 %v2508
    %3422 = vmatpush.bf16.msra.mxu0 %v2500
    %3423 = vmatpush.bf16.msra.mxu0 %v2492
    %3424 = vmatmul.bf16.gmra.mxu0 %v560
    %v3425 = vpop.f32.mrf.mxu0
    %v3426 = vadd.f32 %v3413, %v3425
    %v3427 = vpop.f32.mrf.mxu0
    %3428 = vdwg.mxu0
    %3429 = vmatpush.bf16.msra.mxu0 %v2612
    %3430 = vmatpush.bf16.msra.mxu0 %v2604
    %3431 = vmatpush.bf16.msra.mxu0 %v2596
    %3432 = vmatpush.bf16.msra.mxu0 %v2588
    %3433 = vmatpush.bf16.msra.mxu0 %v2580
    %3434 = vmatpush.bf16.msra.mxu0 %v2572
    %3435 = vmatpush.bf16.msra.mxu0 %v2564
    %3436 = vmatpush.bf16.msra.mxu0 %v2556
    %3437 = vmatmul.bf16.gmra.mxu0 %v561
    %v3438 = vpop.f32.mrf.mxu0
    %v3439 = vadd.f32 %v3426, %v3438
    %v3440 = vpop.f32.mrf.mxu0
    %3441 = vdwg.mxu0
    %3442 = vmatpush.bf16.msra.mxu0 %v2165
    %3443 = vmatpush.bf16.msra.mxu0 %v2157
    %3444 = vmatpush.bf16.msra.mxu0 %v2149
    %3445 = vmatpush.bf16.msra.mxu0 %v2141
    %3446 = vmatpush.bf16.msra.mxu0 %v2133
    %3447 = vmatpush.bf16.msra.mxu0 %v2125
    %3448 = vmatpush.bf16.msra.mxu0 %v2117
    %3449 = vmatpush.bf16.msra.mxu0 %v2109
    %3450 = vmatmul.bf16.gmra.mxu0 %v554
    %v3451 = vpop.f32.mrf.mxu0
    %v3452 = vadd.f32 %v539, %v3451
    %v3453 = vpop.f32.mrf.mxu0
    %3454 = vdwg.mxu0
    %3455 = vmatpush.bf16.msra.mxu0 %v2229
    %3456 = vmatpush.bf16.msra.mxu0 %v2221
    %3457 = vmatpush.bf16.msra.mxu0 %v2213
    %3458 = vmatpush.bf16.msra.mxu0 %v2205
    %3459 = vmatpush.bf16.msra.mxu0 %v2197
    %3460 = vmatpush.bf16.msra.mxu0 %v2189
    %3461 = vmatpush.bf16.msra.mxu0 %v2181
    %3462 = vmatpush.bf16.msra.mxu0 %v2173
    %3463 = vmatmul.bf16.gmra.mxu0 %v555
    %v3464 = vpop.f32.mrf.mxu0
    %v3465 = vadd.f32 %v3452, %v3464
    %v3466 = vpop.f32.mrf.mxu0
    %3467 = vdwg.mxu0
    %3468 = vmatpush.bf16.msra.mxu0 %v2293
    %3469 = vmatpush.bf16.msra.mxu0 %v2285
    %3470 = vmatpush.bf16.msra.mxu0 %v2277
    %3471 = vmatpush.bf16.msra.mxu0 %v2269
    %3472 = vmatpush.bf16.msra.mxu0 %v2261
    %3473 = vmatpush.bf16.msra.mxu0 %v2253
    %3474 = vmatpush.bf16.msra.mxu0 %v2245
    %3475 = vmatpush.bf16.msra.mxu0 %v2237
    %3476 = vmatmul.bf16.gmra.mxu0 %v556
    %v3477 = vpop.f32.mrf.mxu0
    %v3478 = vadd.f32 %v3465, %v3477
    %v3479 = vpop.f32.mrf.mxu0
    %3480 = vdwg.mxu0
    %3481 = vmatpush.bf16.msra.mxu0 %v2357
    %3482 = vmatpush.bf16.msra.mxu0 %v2349
    %3483 = vmatpush.bf16.msra.mxu0 %v2341
    %3484 = vmatpush.bf16.msra.mxu0 %v2333
    %3485 = vmatpush.bf16.msra.mxu0 %v2325
    %3486 = vmatpush.bf16.msra.mxu0 %v2317
    %3487 = vmatpush.bf16.msra.mxu0 %v2309
    %3488 = vmatpush.bf16.msra.mxu0 %v2301
    %3489 = vmatmul.bf16.gmra.mxu0 %v557
    %v3490 = vpop.f32.mrf.mxu0
    %v3491 = vadd.f32 %v3478, %v3490
    %v3492 = vpop.f32.mrf.mxu0
    %3493 = vdwg.mxu0
    %3494 = vmatpush.bf16.msra.mxu0 %v2421
    %3495 = vmatpush.bf16.msra.mxu0 %v2413
    %3496 = vmatpush.bf16.msra.mxu0 %v2405
    %3497 = vmatpush.bf16.msra.mxu0 %v2397
    %3498 = vmatpush.bf16.msra.mxu0 %v2389
    %3499 = vmatpush.bf16.msra.mxu0 %v2381
    %3500 = vmatpush.bf16.msra.mxu0 %v2373
    %3501 = vmatpush.bf16.msra.mxu0 %v2365
    %3502 = vmatmul.bf16.gmra.mxu0 %v558
    %v3503 = vpop.f32.mrf.mxu0
    %v3504 = vadd.f32 %v3491, %v3503
    %v3505 = vpop.f32.mrf.mxu0
    %3506 = vdwg.mxu0
    %3507 = vmatpush.bf16.msra.mxu0 %v2485
    %3508 = vmatpush.bf16.msra.mxu0 %v2477
    %3509 = vmatpush.bf16.msra.mxu0 %v2469
    %3510 = vmatpush.bf16.msra.mxu0 %v2461
    %3511 = vmatpush.bf16.msra.mxu0 %v2453
    %3512 = vmatpush.bf16.msra.mxu0 %v2445
    %3513 = vmatpush.bf16.msra.mxu0 %v2437
    %3514 = vmatpush.bf16.msra.mxu0 %v2429
    %3515 = vmatmul.bf16.gmra.mxu0 %v559
    %v3516 = vpop.f32.mrf.mxu0
    %v3517 = vadd.f32 %v3504, %v3516
    %v3518 = vpop.f32.mrf.mxu0
    %3519 = vdwg.mxu0
    %3520 = vmatpush.bf16.msra.mxu0 %v2549
    %3521 = vmatpush.bf16.msra.mxu0 %v2541
    %3522 = vmatpush.bf16.msra.mxu0 %v2533
    %3523 = vmatpush.bf16.msra.mxu0 %v2525
    %3524 = vmatpush.bf16.msra.mxu0 %v2517
    %3525 = vmatpush.bf16.msra.mxu0 %v2509
    %3526 = vmatpush.bf16.msra.mxu0 %v2501
    %3527 = vmatpush.bf16.msra.mxu0 %v2493
    %3528 = vmatmul.bf16.gmra.mxu0 %v560
    %v3529 = vpop.f32.mrf.mxu0
    %v3530 = vadd.f32 %v3517, %v3529
    %v3531 = vpop.f32.mrf.mxu0
    %3532 = vdwg.mxu0
    %3533 = vmatpush.bf16.msra.mxu0 %v2613
    %3534 = vmatpush.bf16.msra.mxu0 %v2605
    %3535 = vmatpush.bf16.msra.mxu0 %v2597
    %3536 = vmatpush.bf16.msra.mxu0 %v2589
    %3537 = vmatpush.bf16.msra.mxu0 %v2581
    %3538 = vmatpush.bf16.msra.mxu0 %v2573
    %3539 = vmatpush.bf16.msra.mxu0 %v2565
    %3540 = vmatpush.bf16.msra.mxu0 %v2557
    %3541 = vmatmul.bf16.gmra.mxu0 %v561
    %v3542 = vpop.f32.mrf.mxu0
    %v3543 = vadd.f32 %v3530, %v3542
    %v3544 = vpop.f32.mrf.mxu0
    %3545 = vdwg.mxu0
    %3546 = vmatpush.bf16.msra.mxu0 %v2166
    %3547 = vmatpush.bf16.msra.mxu0 %v2158
    %3548 = vmatpush.bf16.msra.mxu0 %v2150
    %3549 = vmatpush.bf16.msra.mxu0 %v2142
    %3550 = vmatpush.bf16.msra.mxu0 %v2134
    %3551 = vmatpush.bf16.msra.mxu0 %v2126
    %3552 = vmatpush.bf16.msra.mxu0 %v2118
    %3553 = vmatpush.bf16.msra.mxu0 %v2110
    %3554 = vmatmul.bf16.gmra.mxu0 %v554
    %v3555 = vpop.f32.mrf.mxu0
    %v3556 = vadd.f32 %v540, %v3555
    %v3557 = vpop.f32.mrf.mxu0
    %3558 = vdwg.mxu0
    %3559 = vmatpush.bf16.msra.mxu0 %v2230
    %3560 = vmatpush.bf16.msra.mxu0 %v2222
    %3561 = vmatpush.bf16.msra.mxu0 %v2214
    %3562 = vmatpush.bf16.msra.mxu0 %v2206
    %3563 = vmatpush.bf16.msra.mxu0 %v2198
    %3564 = vmatpush.bf16.msra.mxu0 %v2190
    %3565 = vmatpush.bf16.msra.mxu0 %v2182
    %3566 = vmatpush.bf16.msra.mxu0 %v2174
    %3567 = vmatmul.bf16.gmra.mxu0 %v555
    %v3568 = vpop.f32.mrf.mxu0
    %v3569 = vadd.f32 %v3556, %v3568
    %v3570 = vpop.f32.mrf.mxu0
    %3571 = vdwg.mxu0
    %3572 = vmatpush.bf16.msra.mxu0 %v2294
    %3573 = vmatpush.bf16.msra.mxu0 %v2286
    %3574 = vmatpush.bf16.msra.mxu0 %v2278
    %3575 = vmatpush.bf16.msra.mxu0 %v2270
    %3576 = vmatpush.bf16.msra.mxu0 %v2262
    %3577 = vmatpush.bf16.msra.mxu0 %v2254
    %3578 = vmatpush.bf16.msra.mxu0 %v2246
    %3579 = vmatpush.bf16.msra.mxu0 %v2238
    %3580 = vmatmul.bf16.gmra.mxu0 %v556
    %v3581 = vpop.f32.mrf.mxu0
    %v3582 = vadd.f32 %v3569, %v3581
    %v3583 = vpop.f32.mrf.mxu0
    %3584 = vdwg.mxu0
    %3585 = vmatpush.bf16.msra.mxu0 %v2358
    %3586 = vmatpush.bf16.msra.mxu0 %v2350
    %3587 = vmatpush.bf16.msra.mxu0 %v2342
    %3588 = vmatpush.bf16.msra.mxu0 %v2334
    %3589 = vmatpush.bf16.msra.mxu0 %v2326
    %3590 = vmatpush.bf16.msra.mxu0 %v2318
    %3591 = vmatpush.bf16.msra.mxu0 %v2310
    %3592 = vmatpush.bf16.msra.mxu0 %v2302
    %3593 = vmatmul.bf16.gmra.mxu0 %v557
    %v3594 = vpop.f32.mrf.mxu0
    %v3595 = vadd.f32 %v3582, %v3594
    %v3596 = vpop.f32.mrf.mxu0
    %3597 = vdwg.mxu0
    %3598 = vmatpush.bf16.msra.mxu0 %v2422
    %3599 = vmatpush.bf16.msra.mxu0 %v2414
    %3600 = vmatpush.bf16.msra.mxu0 %v2406
    %3601 = vmatpush.bf16.msra.mxu0 %v2398
    %3602 = vmatpush.bf16.msra.mxu0 %v2390
    %3603 = vmatpush.bf16.msra.mxu0 %v2382
    %3604 = vmatpush.bf16.msra.mxu0 %v2374
    %3605 = vmatpush.bf16.msra.mxu0 %v2366
    %3606 = vmatmul.bf16.gmra.mxu0 %v558
    %v3607 = vpop.f32.mrf.mxu0
    %v3608 = vadd.f32 %v3595, %v3607
    %v3609 = vpop.f32.mrf.mxu0
    %3610 = vdwg.mxu0
    %3611 = vmatpush.bf16.msra.mxu0 %v2486
    %3612 = vmatpush.bf16.msra.mxu0 %v2478
    %3613 = vmatpush.bf16.msra.mxu0 %v2470
    %3614 = vmatpush.bf16.msra.mxu0 %v2462
    %3615 = vmatpush.bf16.msra.mxu0 %v2454
    %3616 = vmatpush.bf16.msra.mxu0 %v2446
    %3617 = vmatpush.bf16.msra.mxu0 %v2438
    %3618 = vmatpush.bf16.msra.mxu0 %v2430
    %3619 = vmatmul.bf16.gmra.mxu0 %v559
    %v3620 = vpop.f32.mrf.mxu0
    %v3621 = vadd.f32 %v3608, %v3620
    %v3622 = vpop.f32.mrf.mxu0
    %3623 = vdwg.mxu0
    %3624 = vmatpush.bf16.msra.mxu0 %v2550
    %3625 = vmatpush.bf16.msra.mxu0 %v2542
    %3626 = vmatpush.bf16.msra.mxu0 %v2534
    %3627 = vmatpush.bf16.msra.mxu0 %v2526
    %3628 = vmatpush.bf16.msra.mxu0 %v2518
    %3629 = vmatpush.bf16.msra.mxu0 %v2510
    %3630 = vmatpush.bf16.msra.mxu0 %v2502
    %3631 = vmatpush.bf16.msra.mxu0 %v2494
    %3632 = vmatmul.bf16.gmra.mxu0 %v560
    %v3633 = vpop.f32.mrf.mxu0
    %v3634 = vadd.f32 %v3621, %v3633
    %v3635 = vpop.f32.mrf.mxu0
    %3636 = vdwg.mxu0
    %3637 = vmatpush.bf16.msra.mxu0 %v2614
    %3638 = vmatpush.bf16.msra.mxu0 %v2606
    %3639 = vmatpush.bf16.msra.mxu0 %v2598
    %3640 = vmatpush.bf16.msra.mxu0 %v2590
    %3641 = vmatpush.bf16.msra.mxu0 %v2582
    %3642 = vmatpush.bf16.msra.mxu0 %v2574
    %3643 = vmatpush.bf16.msra.mxu0 %v2566
    %3644 = vmatpush.bf16.msra.mxu0 %v2558
    %3645 = vmatmul.bf16.gmra.mxu0 %v561
    %v3646 = vpop.f32.mrf.mxu0
    %v3647 = vadd.f32 %v3634, %v3646
    %v3648 = vpop.f32.mrf.mxu0
    %3649 = vdwg.mxu0
    %3650 = vmatpush.bf16.msra.mxu0 %v2167
    %3651 = vmatpush.bf16.msra.mxu0 %v2159
    %3652 = vmatpush.bf16.msra.mxu0 %v2151
    %3653 = vmatpush.bf16.msra.mxu0 %v2143
    %3654 = vmatpush.bf16.msra.mxu0 %v2135
    %3655 = vmatpush.bf16.msra.mxu0 %v2127
    %3656 = vmatpush.bf16.msra.mxu0 %v2119
    %3657 = vmatpush.bf16.msra.mxu0 %v2111
    %3658 = vmatmul.bf16.gmra.mxu0 %v554
    %v3659 = vpop.f32.mrf.mxu0
    %v3660 = vadd.f32 %v541, %v3659
    %v3661 = vpop.f32.mrf.mxu0
    %3662 = vdwg.mxu0
    %3663 = vmatpush.bf16.msra.mxu0 %v2231
    %3664 = vmatpush.bf16.msra.mxu0 %v2223
    %3665 = vmatpush.bf16.msra.mxu0 %v2215
    %3666 = vmatpush.bf16.msra.mxu0 %v2207
    %3667 = vmatpush.bf16.msra.mxu0 %v2199
    %3668 = vmatpush.bf16.msra.mxu0 %v2191
    %3669 = vmatpush.bf16.msra.mxu0 %v2183
    %3670 = vmatpush.bf16.msra.mxu0 %v2175
    %3671 = vmatmul.bf16.gmra.mxu0 %v555
    %v3672 = vpop.f32.mrf.mxu0
    %v3673 = vadd.f32 %v3660, %v3672
    %v3674 = vpop.f32.mrf.mxu0
    %3675 = vdwg.mxu0
    %3676 = vmatpush.bf16.msra.mxu0 %v2295
    %3677 = vmatpush.bf16.msra.mxu0 %v2287
    %3678 = vmatpush.bf16.msra.mxu0 %v2279
    %3679 = vmatpush.bf16.msra.mxu0 %v2271
    %3680 = vmatpush.bf16.msra.mxu0 %v2263
    %3681 = vmatpush.bf16.msra.mxu0 %v2255
    %3682 = vmatpush.bf16.msra.mxu0 %v2247
    %3683 = vmatpush.bf16.msra.mxu0 %v2239
    %3684 = vmatmul.bf16.gmra.mxu0 %v556
    %v3685 = vpop.f32.mrf.mxu0
    %v3686 = vadd.f32 %v3673, %v3685
    %v3687 = vpop.f32.mrf.mxu0
    %3688 = vdwg.mxu0
    %3689 = vmatpush.bf16.msra.mxu0 %v2359
    %3690 = vmatpush.bf16.msra.mxu0 %v2351
    %3691 = vmatpush.bf16.msra.mxu0 %v2343
    %3692 = vmatpush.bf16.msra.mxu0 %v2335
    %3693 = vmatpush.bf16.msra.mxu0 %v2327
    %3694 = vmatpush.bf16.msra.mxu0 %v2319
    %3695 = vmatpush.bf16.msra.mxu0 %v2311
    %3696 = vmatpush.bf16.msra.mxu0 %v2303
    %3697 = vmatmul.bf16.gmra.mxu0 %v557
    %v3698 = vpop.f32.mrf.mxu0
    %v3699 = vadd.f32 %v3686, %v3698
    %v3700 = vpop.f32.mrf.mxu0
    %3701 = vdwg.mxu0
    %3702 = vmatpush.bf16.msra.mxu0 %v2423
    %3703 = vmatpush.bf16.msra.mxu0 %v2415
    %3704 = vmatpush.bf16.msra.mxu0 %v2407
    %3705 = vmatpush.bf16.msra.mxu0 %v2399
    %3706 = vmatpush.bf16.msra.mxu0 %v2391
    %3707 = vmatpush.bf16.msra.mxu0 %v2383
    %3708 = vmatpush.bf16.msra.mxu0 %v2375
    %3709 = vmatpush.bf16.msra.mxu0 %v2367
    %3710 = vmatmul.bf16.gmra.mxu0 %v558
    %v3711 = vpop.f32.mrf.mxu0
    %v3712 = vadd.f32 %v3699, %v3711
    %v3713 = vpop.f32.mrf.mxu0
    %3714 = vdwg.mxu0
    %3715 = vmatpush.bf16.msra.mxu0 %v2487
    %3716 = vmatpush.bf16.msra.mxu0 %v2479
    %3717 = vmatpush.bf16.msra.mxu0 %v2471
    %3718 = vmatpush.bf16.msra.mxu0 %v2463
    %3719 = vmatpush.bf16.msra.mxu0 %v2455
    %3720 = vmatpush.bf16.msra.mxu0 %v2447
    %3721 = vmatpush.bf16.msra.mxu0 %v2439
    %3722 = vmatpush.bf16.msra.mxu0 %v2431
    %3723 = vmatmul.bf16.gmra.mxu0 %v559
    %v3724 = vpop.f32.mrf.mxu0
    %v3725 = vadd.f32 %v3712, %v3724
    %v3726 = vpop.f32.mrf.mxu0
    %3727 = vdwg.mxu0
    %3728 = vmatpush.bf16.msra.mxu0 %v2551
    %3729 = vmatpush.bf16.msra.mxu0 %v2543
    %3730 = vmatpush.bf16.msra.mxu0 %v2535
    %3731 = vmatpush.bf16.msra.mxu0 %v2527
    %3732 = vmatpush.bf16.msra.mxu0 %v2519
    %3733 = vmatpush.bf16.msra.mxu0 %v2511
    %3734 = vmatpush.bf16.msra.mxu0 %v2503
    %3735 = vmatpush.bf16.msra.mxu0 %v2495
    %3736 = vmatmul.bf16.gmra.mxu0 %v560
    %v3737 = vpop.f32.mrf.mxu0
    %v3738 = vadd.f32 %v3725, %v3737
    %v3739 = vpop.f32.mrf.mxu0
    %3740 = vdwg.mxu0
    %3741 = vmatpush.bf16.msra.mxu0 %v2615
    %3742 = vmatpush.bf16.msra.mxu0 %v2607
    %3743 = vmatpush.bf16.msra.mxu0 %v2599
    %3744 = vmatpush.bf16.msra.mxu0 %v2591
    %3745 = vmatpush.bf16.msra.mxu0 %v2583
    %3746 = vmatpush.bf16.msra.mxu0 %v2575
    %3747 = vmatpush.bf16.msra.mxu0 %v2567
    %3748 = vmatpush.bf16.msra.mxu0 %v2559
    %3749 = vmatmul.bf16.gmra.mxu0 %v561
    %v3750 = vpop.f32.mrf.mxu0
    %v3751 = vadd.f32 %v3738, %v3750
    %v3752 = vpop.f32.mrf.mxu0
    %3753 = vdwg.mxu0
    %3754 = vmatpush.bf16.msra.mxu0 %v2168
    %3755 = vmatpush.bf16.msra.mxu0 %v2160
    %3756 = vmatpush.bf16.msra.mxu0 %v2152
    %3757 = vmatpush.bf16.msra.mxu0 %v2144
    %3758 = vmatpush.bf16.msra.mxu0 %v2136
    %3759 = vmatpush.bf16.msra.mxu0 %v2128
    %3760 = vmatpush.bf16.msra.mxu0 %v2120
    %3761 = vmatpush.bf16.msra.mxu0 %v2112
    %3762 = vmatmul.bf16.gmra.mxu0 %v554
    %v3763 = vpop.f32.mrf.mxu0
    %v3764 = vadd.f32 %v542, %v3763
    %v3765 = vpop.f32.mrf.mxu0
    %3766 = vdwg.mxu0
    %3767 = vmatpush.bf16.msra.mxu0 %v2232
    %3768 = vmatpush.bf16.msra.mxu0 %v2224
    %3769 = vmatpush.bf16.msra.mxu0 %v2216
    %3770 = vmatpush.bf16.msra.mxu0 %v2208
    %3771 = vmatpush.bf16.msra.mxu0 %v2200
    %3772 = vmatpush.bf16.msra.mxu0 %v2192
    %3773 = vmatpush.bf16.msra.mxu0 %v2184
    %3774 = vmatpush.bf16.msra.mxu0 %v2176
    %3775 = vmatmul.bf16.gmra.mxu0 %v555
    %v3776 = vpop.f32.mrf.mxu0
    %v3777 = vadd.f32 %v3764, %v3776
    %v3778 = vpop.f32.mrf.mxu0
    %3779 = vdwg.mxu0
    %3780 = vmatpush.bf16.msra.mxu0 %v2296
    %3781 = vmatpush.bf16.msra.mxu0 %v2288
    %3782 = vmatpush.bf16.msra.mxu0 %v2280
    %3783 = vmatpush.bf16.msra.mxu0 %v2272
    %3784 = vmatpush.bf16.msra.mxu0 %v2264
    %3785 = vmatpush.bf16.msra.mxu0 %v2256
    %3786 = vmatpush.bf16.msra.mxu0 %v2248
    %3787 = vmatpush.bf16.msra.mxu0 %v2240
    %3788 = vmatmul.bf16.gmra.mxu0 %v556
    %v3789 = vpop.f32.mrf.mxu0
    %v3790 = vadd.f32 %v3777, %v3789
    %v3791 = vpop.f32.mrf.mxu0
    %3792 = vdwg.mxu0
    %3793 = vmatpush.bf16.msra.mxu0 %v2360
    %3794 = vmatpush.bf16.msra.mxu0 %v2352
    %3795 = vmatpush.bf16.msra.mxu0 %v2344
    %3796 = vmatpush.bf16.msra.mxu0 %v2336
    %3797 = vmatpush.bf16.msra.mxu0 %v2328
    %3798 = vmatpush.bf16.msra.mxu0 %v2320
    %3799 = vmatpush.bf16.msra.mxu0 %v2312
    %3800 = vmatpush.bf16.msra.mxu0 %v2304
    %3801 = vmatmul.bf16.gmra.mxu0 %v557
    %v3802 = vpop.f32.mrf.mxu0
    %v3803 = vadd.f32 %v3790, %v3802
    %v3804 = vpop.f32.mrf.mxu0
    %3805 = vdwg.mxu0
    %3806 = vmatpush.bf16.msra.mxu0 %v2424
    %3807 = vmatpush.bf16.msra.mxu0 %v2416
    %3808 = vmatpush.bf16.msra.mxu0 %v2408
    %3809 = vmatpush.bf16.msra.mxu0 %v2400
    %3810 = vmatpush.bf16.msra.mxu0 %v2392
    %3811 = vmatpush.bf16.msra.mxu0 %v2384
    %3812 = vmatpush.bf16.msra.mxu0 %v2376
    %3813 = vmatpush.bf16.msra.mxu0 %v2368
    %3814 = vmatmul.bf16.gmra.mxu0 %v558
    %v3815 = vpop.f32.mrf.mxu0
    %v3816 = vadd.f32 %v3803, %v3815
    %v3817 = vpop.f32.mrf.mxu0
    %3818 = vdwg.mxu0
    %3819 = vmatpush.bf16.msra.mxu0 %v2488
    %3820 = vmatpush.bf16.msra.mxu0 %v2480
    %3821 = vmatpush.bf16.msra.mxu0 %v2472
    %3822 = vmatpush.bf16.msra.mxu0 %v2464
    %3823 = vmatpush.bf16.msra.mxu0 %v2456
    %3824 = vmatpush.bf16.msra.mxu0 %v2448
    %3825 = vmatpush.bf16.msra.mxu0 %v2440
    %3826 = vmatpush.bf16.msra.mxu0 %v2432
    %3827 = vmatmul.bf16.gmra.mxu0 %v559
    %v3828 = vpop.f32.mrf.mxu0
    %v3829 = vadd.f32 %v3816, %v3828
    %v3830 = vpop.f32.mrf.mxu0
    %3831 = vdwg.mxu0
    %3832 = vmatpush.bf16.msra.mxu0 %v2552
    %3833 = vmatpush.bf16.msra.mxu0 %v2544
    %3834 = vmatpush.bf16.msra.mxu0 %v2536
    %3835 = vmatpush.bf16.msra.mxu0 %v2528
    %3836 = vmatpush.bf16.msra.mxu0 %v2520
    %3837 = vmatpush.bf16.msra.mxu0 %v2512
    %3838 = vmatpush.bf16.msra.mxu0 %v2504
    %3839 = vmatpush.bf16.msra.mxu0 %v2496
    %3840 = vmatmul.bf16.gmra.mxu0 %v560
    %v3841 = vpop.f32.mrf.mxu0
    %v3842 = vadd.f32 %v3829, %v3841
    %v3843 = vpop.f32.mrf.mxu0
    %3844 = vdwg.mxu0
    %3845 = vmatpush.bf16.msra.mxu0 %v2616
    %3846 = vmatpush.bf16.msra.mxu0 %v2608
    %3847 = vmatpush.bf16.msra.mxu0 %v2600
    %3848 = vmatpush.bf16.msra.mxu0 %v2592
    %3849 = vmatpush.bf16.msra.mxu0 %v2584
    %3850 = vmatpush.bf16.msra.mxu0 %v2576
    %3851 = vmatpush.bf16.msra.mxu0 %v2568
    %3852 = vmatpush.bf16.msra.mxu0 %v2560
    %3853 = vmatmul.bf16.gmra.mxu0 %v561
    %v3854 = vpop.f32.mrf.mxu0
    %v3855 = vadd.f32 %v3842, %v3854
    %v3856 = vpop.f32.mrf.mxu0
    %3857 = vdwg.mxu0
    %3858 = vmatpush.bf16.msra.mxu0 %v2169
    %3859 = vmatpush.bf16.msra.mxu0 %v2161
    %3860 = vmatpush.bf16.msra.mxu0 %v2153
    %3861 = vmatpush.bf16.msra.mxu0 %v2145
    %3862 = vmatpush.bf16.msra.mxu0 %v2137
    %3863 = vmatpush.bf16.msra.mxu0 %v2129
    %3864 = vmatpush.bf16.msra.mxu0 %v2121
    %3865 = vmatpush.bf16.msra.mxu0 %v2113
    %3866 = vmatmul.bf16.gmra.mxu0 %v554
    %v3867 = vpop.f32.mrf.mxu0
    %v3868 = vadd.f32 %v543, %v3867
    %v3869 = vpop.f32.mrf.mxu0
    %3870 = vdwg.mxu0
    %3871 = vmatpush.bf16.msra.mxu0 %v2233
    %3872 = vmatpush.bf16.msra.mxu0 %v2225
    %3873 = vmatpush.bf16.msra.mxu0 %v2217
    %3874 = vmatpush.bf16.msra.mxu0 %v2209
    %3875 = vmatpush.bf16.msra.mxu0 %v2201
    %3876 = vmatpush.bf16.msra.mxu0 %v2193
    %3877 = vmatpush.bf16.msra.mxu0 %v2185
    %3878 = vmatpush.bf16.msra.mxu0 %v2177
    %3879 = vmatmul.bf16.gmra.mxu0 %v555
    %v3880 = vpop.f32.mrf.mxu0
    %v3881 = vadd.f32 %v3868, %v3880
    %v3882 = vpop.f32.mrf.mxu0
    %3883 = vdwg.mxu0
    %3884 = vmatpush.bf16.msra.mxu0 %v2297
    %3885 = vmatpush.bf16.msra.mxu0 %v2289
    %3886 = vmatpush.bf16.msra.mxu0 %v2281
    %3887 = vmatpush.bf16.msra.mxu0 %v2273
    %3888 = vmatpush.bf16.msra.mxu0 %v2265
    %3889 = vmatpush.bf16.msra.mxu0 %v2257
    %3890 = vmatpush.bf16.msra.mxu0 %v2249
    %3891 = vmatpush.bf16.msra.mxu0 %v2241
    %3892 = vmatmul.bf16.gmra.mxu0 %v556
    %v3893 = vpop.f32.mrf.mxu0
    %v3894 = vadd.f32 %v3881, %v3893
    %v3895 = vpop.f32.mrf.mxu0
    %3896 = vdwg.mxu0
    %3897 = vmatpush.bf16.msra.mxu0 %v2361
    %3898 = vmatpush.bf16.msra.mxu0 %v2353
    %3899 = vmatpush.bf16.msra.mxu0 %v2345
    %3900 = vmatpush.bf16.msra.mxu0 %v2337
    %3901 = vmatpush.bf16.msra.mxu0 %v2329
    %3902 = vmatpush.bf16.msra.mxu0 %v2321
    %3903 = vmatpush.bf16.msra.mxu0 %v2313
    %3904 = vmatpush.bf16.msra.mxu0 %v2305
    %3905 = vmatmul.bf16.gmra.mxu0 %v557
    %v3906 = vpop.f32.mrf.mxu0
    %v3907 = vadd.f32 %v3894, %v3906
    %v3908 = vpop.f32.mrf.mxu0
    %3909 = vdwg.mxu0
    %3910 = vmatpush.bf16.msra.mxu0 %v2425
    %3911 = vmatpush.bf16.msra.mxu0 %v2417
    %3912 = vmatpush.bf16.msra.mxu0 %v2409
    %3913 = vmatpush.bf16.msra.mxu0 %v2401
    %3914 = vmatpush.bf16.msra.mxu0 %v2393
    %3915 = vmatpush.bf16.msra.mxu0 %v2385
    %3916 = vmatpush.bf16.msra.mxu0 %v2377
    %3917 = vmatpush.bf16.msra.mxu0 %v2369
    %3918 = vmatmul.bf16.gmra.mxu0 %v558
    %v3919 = vpop.f32.mrf.mxu0
    %v3920 = vadd.f32 %v3907, %v3919
    %v3921 = vpop.f32.mrf.mxu0
    %3922 = vdwg.mxu0
    %3923 = vmatpush.bf16.msra.mxu0 %v2489
    %3924 = vmatpush.bf16.msra.mxu0 %v2481
    %3925 = vmatpush.bf16.msra.mxu0 %v2473
    %3926 = vmatpush.bf16.msra.mxu0 %v2465
    %3927 = vmatpush.bf16.msra.mxu0 %v2457
    %3928 = vmatpush.bf16.msra.mxu0 %v2449
    %3929 = vmatpush.bf16.msra.mxu0 %v2441
    %3930 = vmatpush.bf16.msra.mxu0 %v2433
    %3931 = vmatmul.bf16.gmra.mxu0 %v559
    %v3932 = vpop.f32.mrf.mxu0
    %v3933 = vadd.f32 %v3920, %v3932
    %v3934 = vpop.f32.mrf.mxu0
    %3935 = vdwg.mxu0
    %3936 = vmatpush.bf16.msra.mxu0 %v2553
    %3937 = vmatpush.bf16.msra.mxu0 %v2545
    %3938 = vmatpush.bf16.msra.mxu0 %v2537
    %3939 = vmatpush.bf16.msra.mxu0 %v2529
    %3940 = vmatpush.bf16.msra.mxu0 %v2521
    %3941 = vmatpush.bf16.msra.mxu0 %v2513
    %3942 = vmatpush.bf16.msra.mxu0 %v2505
    %3943 = vmatpush.bf16.msra.mxu0 %v2497
    %3944 = vmatmul.bf16.gmra.mxu0 %v560
    %v3945 = vpop.f32.mrf.mxu0
    %v3946 = vadd.f32 %v3933, %v3945
    %v3947 = vpop.f32.mrf.mxu0
    %3948 = vdwg.mxu0
    %3949 = vmatpush.bf16.msra.mxu0 %v2617
    %3950 = vmatpush.bf16.msra.mxu0 %v2609
    %3951 = vmatpush.bf16.msra.mxu0 %v2601
    %3952 = vmatpush.bf16.msra.mxu0 %v2593
    %3953 = vmatpush.bf16.msra.mxu0 %v2585
    %3954 = vmatpush.bf16.msra.mxu0 %v2577
    %3955 = vmatpush.bf16.msra.mxu0 %v2569
    %3956 = vmatpush.bf16.msra.mxu0 %v2561
    %3957 = vmatmul.bf16.gmra.mxu0 %v561
    %v3958 = vpop.f32.mrf.mxu0
    %v3959 = vadd.f32 %v3946, %v3958
    %v3960 = vpop.f32.mrf.mxu0
    %3961 = vdwg.mxu0
    %v3962 = vmax.f32 %v3231, 0.0
    %v3963 = vmax.f32 %v3335, 0.0
    %v3964 = vmax.f32 %v3439, 0.0
    %v3965 = vmax.f32 %v3543, 0.0
    %v3966 = vmax.f32 %v3647, 0.0
    %v3967 = vmax.f32 %v3751, 0.0
    %v3968 = vmax.f32 %v3855, 0.0
    %v3969 = vmax.f32 %v3959, 0.0
    %v3970 = vpack.c.bf16 %v3962, %v3962
    %v3971 = vpack.c.bf16 %v3963, %v3963
    %v3972 = vpack.c.bf16 %v3964, %v3964
    %v3973 = vpack.c.bf16 %v3965, %v3965
    %v3974 = vpack.c.bf16 %v3966, %v3966
    %v3975 = vpack.c.bf16 %v3967, %v3967
    %v3976 = vpack.c.bf16 %v3968, %v3968
    %v3977 = vpack.c.bf16 %v3969, %v3969
    %v3978 = vld [vmem:[%s3] sm:$0xf]
    %v3979 = vld [vmem:[%s3 + $0x4] sm:$0xf]
    %v3980 = vld [vmem:[%s3 + $0x8] sm:$0xf]
    %v3981 = vld [vmem:[%s3 + $0xc] sm:$0xf]
    %v3982 = vld [vmem:[%s3 + $0x10] sm:$0xf]
    %v3983 = vld [vmem:[%s3 + $0x14] sm:$0xf]
    %v3984 = vld [vmem:[%s3 + $0x18] sm:$0xf]
    %v3985 = vld [vmem:[%s3 + $0x1c] sm:$0xf]
    %v3986 = vld [vmem:[%s3 + $0x20] sm:$0xf]
    %v3987 = vld [vmem:[%s3 + $0x24] sm:$0xf]
    %v3988 = vld [vmem:[%s3 + $0x28] sm:$0xf]
    %v3989 = vld [vmem:[%s3 + $0x2c] sm:$0xf]
    %v3990 = vld [vmem:[%s3 + $0x30] sm:$0xf]
    %v3991 = vld [vmem:[%s3 + $0x34] sm:$0xf]
    %v3992 = vld [vmem:[%s3 + $0x38] sm:$0xf]
    %v3993 = vld [vmem:[%s3 + $0x3c] sm:$0xf]
    %v3994 = vld [vmem:[%s3 + $0x40] sm:$0xf]
    %v3995 = vld [vmem:[%s3 + $0x44] sm:$0xf]
    %v3996 = vld [vmem:[%s3 + $0x48] sm:$0xf]
    %v3997 = vld [vmem:[%s3 + $0x4c] sm:$0xf]
    %v3998 = vld [vmem:[%s3 + $0x50] sm:$0xf]
    %v3999 = vld [vmem:[%s3 + $0x54] sm:$0xf]
    %v4000 = vld [vmem:[%s3 + $0x58] sm:$0xf]
    %v4001 = vld [vmem:[%s3 + $0x5c] sm:$0xf]
    %v4002 = vld [vmem:[%s3 + $0x60] sm:$0xf]
    %v4003 = vld [vmem:[%s3 + $0x64] sm:$0xf]
    %v4004 = vld [vmem:[%s3 + $0x68] sm:$0xf]
    %v4005 = vld [vmem:[%s3 + $0x6c] sm:$0xf]
    %v4006 = vld [vmem:[%s3 + $0x70] sm:$0xf]
    %v4007 = vld [vmem:[%s3 + $0x74] sm:$0xf]
    %v4008 = vld [vmem:[%s3 + $0x78] sm:$0xf]
    %v4009 = vld [vmem:[%s3 + $0x7c] sm:$0xf]
    %v4010 = vld [vmem:[%s3 + $0x80] sm:$0xf]
    %v4011 = vld [vmem:[%s3 + $0x84] sm:$0xf]
    %v4012 = vld [vmem:[%s3 + $0x88] sm:$0xf]
    %v4013 = vld [vmem:[%s3 + $0x8c] sm:$0xf]
    %v4014 = vld [vmem:[%s3 + $0x90] sm:$0xf]
    %v4015 = vld [vmem:[%s3 + $0x94] sm:$0xf]
    %v4016 = vld [vmem:[%s3 + $0x98] sm:$0xf]
    %v4017 = vld [vmem:[%s3 + $0x9c] sm:$0xf]
    %v4018 = vld [vmem:[%s3 + $0xa0] sm:$0xf]
    %v4019 = vld [vmem:[%s3 + $0xa4] sm:$0xf]
    %v4020 = vld [vmem:[%s3 + $0xa8] sm:$0xf]
    %v4021 = vld [vmem:[%s3 + $0xac] sm:$0xf]
    %v4022 = vld [vmem:[%s3 + $0xb0] sm:$0xf]
    %v4023 = vld [vmem:[%s3 + $0xb4] sm:$0xf]
    %v4024 = vld [vmem:[%s3 + $0xb8] sm:$0xf]
    %v4025 = vld [vmem:[%s3 + $0xbc] sm:$0xf]
    %v4026 = vld [vmem:[%s3 + $0xc0] sm:$0xf]
    %v4027 = vld [vmem:[%s3 + $0xc4] sm:$0xf]
    %v4028 = vld [vmem:[%s3 + $0xc8] sm:$0xf]
    %v4029 = vld [vmem:[%s3 + $0xcc] sm:$0xf]
    %v4030 = vld [vmem:[%s3 + $0xd0] sm:$0xf]
    %v4031 = vld [vmem:[%s3 + $0xd4] sm:$0xf]
    %v4032 = vld [vmem:[%s3 + $0xd8] sm:$0xf]
    %v4033 = vld [vmem:[%s3 + $0xdc] sm:$0xf]
    %v4034 = vld [vmem:[%s3 + $0xe0] sm:$0xf]
    %v4035 = vld [vmem:[%s3 + $0xe4] sm:$0xf]
    %v4036 = vld [vmem:[%s3 + $0xe8] sm:$0xf]
    %v4037 = vld [vmem:[%s3 + $0xec] sm:$0xf]
    %v4038 = vld [vmem:[%s3 + $0xf0] sm:$0xf]
    %v4039 = vld [vmem:[%s3 + $0xf4] sm:$0xf]
    %v4040 = vld [vmem:[%s3 + $0xf8] sm:$0xf]
    %v4041 = vld [vmem:[%s3 + $0xfc] sm:$0xf]
    %v4042 = vld [vmem:[%s3 + $0x100] sm:$0xf]
    %v4043 = vld [vmem:[%s3 + $0x104] sm:$0xf]
    %v4044 = vld [vmem:[%s3 + $0x108] sm:$0xf]
    %v4045 = vld [vmem:[%s3 + $0x10c] sm:$0xf]
    %v4046 = vld [vmem:[%s3 + $0x110] sm:$0xf]
    %v4047 = vld [vmem:[%s3 + $0x114] sm:$0xf]
    %v4048 = vld [vmem:[%s3 + $0x118] sm:$0xf]
    %v4049 = vld [vmem:[%s3 + $0x11c] sm:$0xf]
    %v4050 = vld [vmem:[%s3 + $0x120] sm:$0xf]
    %v4051 = vld [vmem:[%s3 + $0x124] sm:$0xf]
    %v4052 = vld [vmem:[%s3 + $0x128] sm:$0xf]
    %v4053 = vld [vmem:[%s3 + $0x12c] sm:$0xf]
    %v4054 = vld [vmem:[%s3 + $0x130] sm:$0xf]
    %v4055 = vld [vmem:[%s3 + $0x134] sm:$0xf]
    %v4056 = vld [vmem:[%s3 + $0x138] sm:$0xf]
    %v4057 = vld [vmem:[%s3 + $0x13c] sm:$0xf]
    %v4058 = vld [vmem:[%s3 + $0x140] sm:$0xf]
    %v4059 = vld [vmem:[%s3 + $0x144] sm:$0xf]
    %v4060 = vld [vmem:[%s3 + $0x148] sm:$0xf]
    %v4061 = vld [vmem:[%s3 + $0x14c] sm:$0xf]
    %v4062 = vld [vmem:[%s3 + $0x150] sm:$0xf]
    %v4063 = vld [vmem:[%s3 + $0x154] sm:$0xf]
    %v4064 = vld [vmem:[%s3 + $0x158] sm:$0xf]
    %v4065 = vld [vmem:[%s3 + $0x15c] sm:$0xf]
    %v4066 = vld [vmem:[%s3 + $0x160] sm:$0xf]
    %v4067 = vld [vmem:[%s3 + $0x164] sm:$0xf]
    %v4068 = vld [vmem:[%s3 + $0x168] sm:$0xf]
    %v4069 = vld [vmem:[%s3 + $0x16c] sm:$0xf]
    %v4070 = vld [vmem:[%s3 + $0x170] sm:$0xf]
    %v4071 = vld [vmem:[%s3 + $0x174] sm:$0xf]
    %v4072 = vld [vmem:[%s3 + $0x178] sm:$0xf]
    %v4073 = vld [vmem:[%s3 + $0x17c] sm:$0xf]
    %v4074 = vld [vmem:[%s3 + $0x180] sm:$0xf]
    %v4075 = vld [vmem:[%s3 + $0x184] sm:$0xf]
    %v4076 = vld [vmem:[%s3 + $0x188] sm:$0xf]
    %v4077 = vld [vmem:[%s3 + $0x18c] sm:$0xf]
    %v4078 = vld [vmem:[%s3 + $0x190] sm:$0xf]
    %v4079 = vld [vmem:[%s3 + $0x194] sm:$0xf]
    %v4080 = vld [vmem:[%s3 + $0x198] sm:$0xf]
    %v4081 = vld [vmem:[%s3 + $0x19c] sm:$0xf]
    %v4082 = vld [vmem:[%s3 + $0x1a0] sm:$0xf]
    %v4083 = vld [vmem:[%s3 + $0x1a4] sm:$0xf]
    %v4084 = vld [vmem:[%s3 + $0x1a8] sm:$0xf]
    %v4085 = vld [vmem:[%s3 + $0x1ac] sm:$0xf]
    %v4086 = vld [vmem:[%s3 + $0x1b0] sm:$0xf]
    %v4087 = vld [vmem:[%s3 + $0x1b4] sm:$0xf]
    %v4088 = vld [vmem:[%s3 + $0x1b8] sm:$0xf]
    %v4089 = vld [vmem:[%s3 + $0x1bc] sm:$0xf]
    %v4090 = vld [vmem:[%s3 + $0x1c0] sm:$0xf]
    %v4091 = vld [vmem:[%s3 + $0x1c4] sm:$0xf]
    %v4092 = vld [vmem:[%s3 + $0x1c8] sm:$0xf]
    %v4093 = vld [vmem:[%s3 + $0x1cc] sm:$0xf]
    %v4094 = vld [vmem:[%s3 + $0x1d0] sm:$0xf]
    %v4095 = vld [vmem:[%s3 + $0x1d4] sm:$0xf]
    %v4096 = vld [vmem:[%s3 + $0x1d8] sm:$0xf]
    %v4097 = vld [vmem:[%s3 + $0x1dc] sm:$0xf]
    %v4098 = vld [vmem:[%s3 + $0x1e0] sm:$0xf]
    %v4099 = vld [vmem:[%s3 + $0x1e4] sm:$0xf]
    %v4100 = vld [vmem:[%s3 + $0x1e8] sm:$0xf]
    %v4101 = vld [vmem:[%s3 + $0x1ec] sm:$0xf]
    %v4102 = vld [vmem:[%s3 + $0x1f0] sm:$0xf]
    %v4103 = vld [vmem:[%s3 + $0x1f4] sm:$0xf]
    %v4104 = vld [vmem:[%s3 + $0x1f8] sm:$0xf]
    %v4105 = vld [vmem:[%s3 + $0x1fc] sm:$0xf]
    %v4106 = vld [vmem:[%s4] sm:$0x1]
    %v4108 = vperm.slane %v4106, 0
    %v4238 = vunpack.c.l.b16 %v3978
    %v4239 = vunpack.c.l.b16 %v3979
    %v4240 = vunpack.c.l.b16 %v3980
    %v4241 = vunpack.c.l.b16 %v3981
    %v4242 = vunpack.c.l.b16 %v3982
    %v4243 = vunpack.c.l.b16 %v3983
    %v4244 = vunpack.c.l.b16 %v3984
    %v4245 = vunpack.c.l.b16 %v3985
    %v4246 = vunpack.c.l.b16 %v3986
    %v4247 = vunpack.c.l.b16 %v3987
    %v4248 = vunpack.c.l.b16 %v3988
    %v4249 = vunpack.c.l.b16 %v3989
    %v4250 = vunpack.c.l.b16 %v3990
    %v4251 = vunpack.c.l.b16 %v3991
    %v4252 = vunpack.c.l.b16 %v3992
    %v4253 = vunpack.c.l.b16 %v3993
    %v4254 = vunpack.c.l.b16 %v3994
    %v4255 = vunpack.c.l.b16 %v3995
    %v4256 = vunpack.c.l.b16 %v3996
    %v4257 = vunpack.c.l.b16 %v3997
    %v4258 = vunpack.c.l.b16 %v3998
    %v4259 = vunpack.c.l.b16 %v3999
    %v4260 = vunpack.c.l.b16 %v4000
    %v4261 = vunpack.c.l.b16 %v4001
    %v4262 = vunpack.c.l.b16 %v4002
    %v4263 = vunpack.c.l.b16 %v4003
    %v4264 = vunpack.c.l.b16 %v4004
    %v4265 = vunpack.c.l.b16 %v4005
    %v4266 = vunpack.c.l.b16 %v4006
    %v4267 = vunpack.c.l.b16 %v4007
    %v4268 = vunpack.c.l.b16 %v4008
    %v4269 = vunpack.c.l.b16 %v4009
    %v4270 = vunpack.c.l.b16 %v4010
    %v4271 = vunpack.c.l.b16 %v4011
    %v4272 = vunpack.c.l.b16 %v4012
    %v4273 = vunpack.c.l.b16 %v4013
    %v4274 = vunpack.c.l.b16 %v4014
    %v4275 = vunpack.c.l.b16 %v4015
    %v4276 = vunpack.c.l.b16 %v4016
    %v4277 = vunpack.c.l.b16 %v4017
    %v4278 = vunpack.c.l.b16 %v4018
    %v4279 = vunpack.c.l.b16 %v4019
    %v4280 = vunpack.c.l.b16 %v4020
    %v4281 = vunpack.c.l.b16 %v4021
    %v4282 = vunpack.c.l.b16 %v4022
    %v4283 = vunpack.c.l.b16 %v4023
    %v4284 = vunpack.c.l.b16 %v4024
    %v4285 = vunpack.c.l.b16 %v4025
    %v4286 = vunpack.c.l.b16 %v4026
    %v4287 = vunpack.c.l.b16 %v4027
    %v4288 = vunpack.c.l.b16 %v4028
    %v4289 = vunpack.c.l.b16 %v4029
    %v4290 = vunpack.c.l.b16 %v4030
    %v4291 = vunpack.c.l.b16 %v4031
    %v4292 = vunpack.c.l.b16 %v4032
    %v4293 = vunpack.c.l.b16 %v4033
    %v4294 = vunpack.c.l.b16 %v4034
    %v4295 = vunpack.c.l.b16 %v4035
    %v4296 = vunpack.c.l.b16 %v4036
    %v4297 = vunpack.c.l.b16 %v4037
    %v4298 = vunpack.c.l.b16 %v4038
    %v4299 = vunpack.c.l.b16 %v4039
    %v4300 = vunpack.c.l.b16 %v4040
    %v4301 = vunpack.c.l.b16 %v4041
    %v4302 = vunpack.c.l.b16 %v4042
    %v4303 = vunpack.c.l.b16 %v4043
    %v4304 = vunpack.c.l.b16 %v4044
    %v4305 = vunpack.c.l.b16 %v4045
    %v4306 = vunpack.c.l.b16 %v4046
    %v4307 = vunpack.c.l.b16 %v4047
    %v4308 = vunpack.c.l.b16 %v4048
    %v4309 = vunpack.c.l.b16 %v4049
    %v4310 = vunpack.c.l.b16 %v4050
    %v4311 = vunpack.c.l.b16 %v4051
    %v4312 = vunpack.c.l.b16 %v4052
    %v4313 = vunpack.c.l.b16 %v4053
    %v4314 = vunpack.c.l.b16 %v4054
    %v4315 = vunpack.c.l.b16 %v4055
    %v4316 = vunpack.c.l.b16 %v4056
    %v4317 = vunpack.c.l.b16 %v4057
    %v4318 = vunpack.c.l.b16 %v4058
    %v4319 = vunpack.c.l.b16 %v4059
    %v4320 = vunpack.c.l.b16 %v4060
    %v4321 = vunpack.c.l.b16 %v4061
    %v4322 = vunpack.c.l.b16 %v4062
    %v4323 = vunpack.c.l.b16 %v4063
    %v4324 = vunpack.c.l.b16 %v4064
    %v4325 = vunpack.c.l.b16 %v4065
    %v4326 = vunpack.c.l.b16 %v4066
    %v4327 = vunpack.c.l.b16 %v4067
    %v4328 = vunpack.c.l.b16 %v4068
    %v4329 = vunpack.c.l.b16 %v4069
    %v4330 = vunpack.c.l.b16 %v4070
    %v4331 = vunpack.c.l.b16 %v4071
    %v4332 = vunpack.c.l.b16 %v4072
    %v4333 = vunpack.c.l.b16 %v4073
    %v4334 = vunpack.c.l.b16 %v4074
    %v4335 = vunpack.c.l.b16 %v4075
    %v4336 = vunpack.c.l.b16 %v4076
    %v4337 = vunpack.c.l.b16 %v4077
    %v4338 = vunpack.c.l.b16 %v4078
    %v4339 = vunpack.c.l.b16 %v4079
    %v4340 = vunpack.c.l.b16 %v4080
    %v4341 = vunpack.c.l.b16 %v4081
    %v4342 = vunpack.c.l.b16 %v4082
    %v4343 = vunpack.c.l.b16 %v4083
    %v4344 = vunpack.c.l.b16 %v4084
    %v4345 = vunpack.c.l.b16 %v4085
    %v4346 = vunpack.c.l.b16 %v4086
    %v4347 = vunpack.c.l.b16 %v4087
    %v4348 = vunpack.c.l.b16 %v4088
    %v4349 = vunpack.c.l.b16 %v4089
    %v4350 = vunpack.c.l.b16 %v4090
    %v4351 = vunpack.c.l.b16 %v4091
    %v4352 = vunpack.c.l.b16 %v4092
    %v4353 = vunpack.c.l.b16 %v4093
    %v4354 = vunpack.c.l.b16 %v4094
    %v4355 = vunpack.c.l.b16 %v4095
    %v4356 = vunpack.c.l.b16 %v4096
    %v4357 = vunpack.c.l.b16 %v4097
    %v4358 = vunpack.c.l.b16 %v4098
    %v4359 = vunpack.c.l.b16 %v4099
    %v4360 = vunpack.c.l.b16 %v4100
    %v4361 = vunpack.c.l.b16 %v4101
    %v4362 = vunpack.c.l.b16 %v4102
    %v4363 = vunpack.c.l.b16 %v4103
    %v4364 = vunpack.c.l.b16 %v4104
    %v4365 = vunpack.c.l.b16 %v4105
    %v4366 = vpack.c.b16 %v4239, %v4238
    %v4367 = vpack.c.b16 %v4241, %v4240
    %v4368 = vpack.c.b16 %v4243, %v4242
    %v4369 = vpack.c.b16 %v4245, %v4244
    %v4370 = vpack.c.b16 %v4247, %v4246
    %v4371 = vpack.c.b16 %v4249, %v4248
    %v4372 = vpack.c.b16 %v4251, %v4250
    %v4373 = vpack.c.b16 %v4253, %v4252
    %v4374 = vpack.c.b16 %v4255, %v4254
    %v4375 = vpack.c.b16 %v4257, %v4256
    %v4376 = vpack.c.b16 %v4259, %v4258
    %v4377 = vpack.c.b16 %v4261, %v4260
    %v4378 = vpack.c.b16 %v4263, %v4262
    %v4379 = vpack.c.b16 %v4265, %v4264
    %v4380 = vpack.c.b16 %v4267, %v4266
    %v4381 = vpack.c.b16 %v4269, %v4268
    %v4382 = vpack.c.b16 %v4271, %v4270
    %v4383 = vpack.c.b16 %v4273, %v4272
    %v4384 = vpack.c.b16 %v4275, %v4274
    %v4385 = vpack.c.b16 %v4277, %v4276
    %v4386 = vpack.c.b16 %v4279, %v4278
    %v4387 = vpack.c.b16 %v4281, %v4280
    %v4388 = vpack.c.b16 %v4283, %v4282
    %v4389 = vpack.c.b16 %v4285, %v4284
    %v4390 = vpack.c.b16 %v4287, %v4286
    %v4391 = vpack.c.b16 %v4289, %v4288
    %v4392 = vpack.c.b16 %v4291, %v4290
    %v4393 = vpack.c.b16 %v4293, %v4292
    %v4394 = vpack.c.b16 %v4295, %v4294
    %v4395 = vpack.c.b16 %v4297, %v4296
    %v4396 = vpack.c.b16 %v4299, %v4298
    %v4397 = vpack.c.b16 %v4301, %v4300
    %v4398 = vpack.c.b16 %v4303, %v4302
    %v4399 = vpack.c.b16 %v4305, %v4304
    %v4400 = vpack.c.b16 %v4307, %v4306
    %v4401 = vpack.c.b16 %v4309, %v4308
    %v4402 = vpack.c.b16 %v4311, %v4310
    %v4403 = vpack.c.b16 %v4313, %v4312
    %v4404 = vpack.c.b16 %v4315, %v4314
    %v4405 = vpack.c.b16 %v4317, %v4316
    %v4406 = vpack.c.b16 %v4319, %v4318
    %v4407 = vpack.c.b16 %v4321, %v4320
    %v4408 = vpack.c.b16 %v4323, %v4322
    %v4409 = vpack.c.b16 %v4325, %v4324
    %v4410 = vpack.c.b16 %v4327, %v4326
    %v4411 = vpack.c.b16 %v4329, %v4328
    %v4412 = vpack.c.b16 %v4331, %v4330
    %v4413 = vpack.c.b16 %v4333, %v4332
    %v4414 = vpack.c.b16 %v4335, %v4334
    %v4415 = vpack.c.b16 %v4337, %v4336
    %v4416 = vpack.c.b16 %v4339, %v4338
    %v4417 = vpack.c.b16 %v4341, %v4340
    %v4418 = vpack.c.b16 %v4343, %v4342
    %v4419 = vpack.c.b16 %v4345, %v4344
    %v4420 = vpack.c.b16 %v4347, %v4346
    %v4421 = vpack.c.b16 %v4349, %v4348
    %v4422 = vpack.c.b16 %v4351, %v4350
    %v4423 = vpack.c.b16 %v4353, %v4352
    %v4424 = vpack.c.b16 %v4355, %v4354
    %v4425 = vpack.c.b16 %v4357, %v4356
    %v4426 = vpack.c.b16 %v4359, %v4358
    %v4427 = vpack.c.b16 %v4361, %v4360
    %v4428 = vpack.c.b16 %v4363, %v4362
    %v4429 = vpack.c.b16 %v4365, %v4364
    %4494 = vmatpush.bf16.msra.mxu0 %v4373
    %4495 = vmatpush.bf16.msra.mxu0 %v4372
    %4496 = vmatpush.bf16.msra.mxu0 %v4371
    %4497 = vmatpush.bf16.msra.mxu0 %v4370
    %4498 = vmatpush.bf16.msra.mxu0 %v4369
    %4499 = vmatpush.bf16.msra.mxu0 %v4368
    %4500 = vmatpush.bf16.msra.mxu0 %v4367
    %4501 = vmatpush.bf16.msra.mxu0 %v4366
    %4502 = vmatmul.bf16.gmra.mxu0 %v3970
    %v4503 = vpop.f32.mrf.mxu0
    %v4504 = vadd.f32 %v4108, %v4503
    %v4505 = vpop.f32.mrf.mxu0
    %4506 = vdwg.mxu0
    %4507 = vmatpush.bf16.msra.mxu0 %v4381
    %4508 = vmatpush.bf16.msra.mxu0 %v4380
    %4509 = vmatpush.bf16.msra.mxu0 %v4379
    %4510 = vmatpush.bf16.msra.mxu0 %v4378
    %4511 = vmatpush.bf16.msra.mxu0 %v4377
    %4512 = vmatpush.bf16.msra.mxu0 %v4376
    %4513 = vmatpush.bf16.msra.mxu0 %v4375
    %4514 = vmatpush.bf16.msra.mxu0 %v4374
    %4515 = vmatmul.bf16.gmra.mxu0 %v3971
    %v4516 = vpop.f32.mrf.mxu0
    %v4517 = vadd.f32 %v4504, %v4516
    %v4518 = vpop.f32.mrf.mxu0
    %4519 = vdwg.mxu0
    %4520 = vmatpush.bf16.msra.mxu0 %v4389
    %4521 = vmatpush.bf16.msra.mxu0 %v4388
    %4522 = vmatpush.bf16.msra.mxu0 %v4387
    %4523 = vmatpush.bf16.msra.mxu0 %v4386
    %4524 = vmatpush.bf16.msra.mxu0 %v4385
    %4525 = vmatpush.bf16.msra.mxu0 %v4384
    %4526 = vmatpush.bf16.msra.mxu0 %v4383
    %4527 = vmatpush.bf16.msra.mxu0 %v4382
    %4528 = vmatmul.bf16.gmra.mxu0 %v3972
    %v4529 = vpop.f32.mrf.mxu0
    %v4530 = vadd.f32 %v4517, %v4529
    %v4531 = vpop.f32.mrf.mxu0
    %4532 = vdwg.mxu0
    %4533 = vmatpush.bf16.msra.mxu0 %v4397
    %4534 = vmatpush.bf16.msra.mxu0 %v4396
    %4535 = vmatpush.bf16.msra.mxu0 %v4395
    %4536 = vmatpush.bf16.msra.mxu0 %v4394
    %4537 = vmatpush.bf16.msra.mxu0 %v4393
    %4538 = vmatpush.bf16.msra.mxu0 %v4392
    %4539 = vmatpush.bf16.msra.mxu0 %v4391
    %4540 = vmatpush.bf16.msra.mxu0 %v4390
    %4541 = vmatmul.bf16.gmra.mxu0 %v3973
    %v4542 = vpop.f32.mrf.mxu0
    %v4543 = vadd.f32 %v4530, %v4542
    %v4544 = vpop.f32.mrf.mxu0
    %4545 = vdwg.mxu0
    %4546 = vmatpush.bf16.msra.mxu0 %v4405
    %4547 = vmatpush.bf16.msra.mxu0 %v4404
    %4548 = vmatpush.bf16.msra.mxu0 %v4403
    %4549 = vmatpush.bf16.msra.mxu0 %v4402
    %4550 = vmatpush.bf16.msra.mxu0 %v4401
    %4551 = vmatpush.bf16.msra.mxu0 %v4400
    %4552 = vmatpush.bf16.msra.mxu0 %v4399
    %4553 = vmatpush.bf16.msra.mxu0 %v4398
    %4554 = vmatmul.bf16.gmra.mxu0 %v3974
    %v4555 = vpop.f32.mrf.mxu0
    %v4556 = vadd.f32 %v4543, %v4555
    %v4557 = vpop.f32.mrf.mxu0
    %4558 = vdwg.mxu0
    %4559 = vmatpush.bf16.msra.mxu0 %v4413
    %4560 = vmatpush.bf16.msra.mxu0 %v4412
    %4561 = vmatpush.bf16.msra.mxu0 %v4411
    %4562 = vmatpush.bf16.msra.mxu0 %v4410
    %4563 = vmatpush.bf16.msra.mxu0 %v4409
    %4564 = vmatpush.bf16.msra.mxu0 %v4408
    %4565 = vmatpush.bf16.msra.mxu0 %v4407
    %4566 = vmatpush.bf16.msra.mxu0 %v4406
    %4567 = vmatmul.bf16.gmra.mxu0 %v3975
    %v4568 = vpop.f32.mrf.mxu0
    %v4569 = vadd.f32 %v4556, %v4568
    %v4570 = vpop.f32.mrf.mxu0
    %4571 = vdwg.mxu0
    %4572 = vmatpush.bf16.msra.mxu0 %v4421
    %4573 = vmatpush.bf16.msra.mxu0 %v4420
    %4574 = vmatpush.bf16.msra.mxu0 %v4419
    %4575 = vmatpush.bf16.msra.mxu0 %v4418
    %4576 = vmatpush.bf16.msra.mxu0 %v4417
    %4577 = vmatpush.bf16.msra.mxu0 %v4416
    %4578 = vmatpush.bf16.msra.mxu0 %v4415
    %4579 = vmatpush.bf16.msra.mxu0 %v4414
    %4580 = vmatmul.bf16.gmra.mxu0 %v3976
    %v4581 = vpop.f32.mrf.mxu0
    %v4582 = vadd.f32 %v4569, %v4581
    %v4583 = vpop.f32.mrf.mxu0
    %4584 = vdwg.mxu0
    %4585 = vmatpush.bf16.msra.mxu0 %v4429
    %4586 = vmatpush.bf16.msra.mxu0 %v4428
    %4587 = vmatpush.bf16.msra.mxu0 %v4427
    %4588 = vmatpush.bf16.msra.mxu0 %v4426
    %4589 = vmatpush.bf16.msra.mxu0 %v4425
    %4590 = vmatpush.bf16.msra.mxu0 %v4424
    %4591 = vmatpush.bf16.msra.mxu0 %v4423
    %4592 = vmatpush.bf16.msra.mxu0 %v4422
    %4593 = vmatmul.bf16.gmra.mxu0 %v3977
    %v4594 = vpop.f32.mrf.mxu0
    %v4595 = vadd.f32 %v4582, %v4594
    %v4596 = vpop.f32.mrf.mxu0
    %4597 = vdwg.mxu0
    %4598 = vst [vmem:[#allocation2] sm:$0x3] %v4595
    // Predicated region
    $region22: #{net_forward.5} parent=1 // pred_check
      _
    $region23: #{net_forward.5} parent=1 // pred_check_branch
      %4600 = sbr.rel (0) target = $region25
    $region24: #{net_forward.5} parent=1 // pred_region
      %4602 = vsyncadd [#allocation3], 0
      %s4604 = sshll.u32 [#allocation2], 4
      %s4605 = int_to_ptr.vmem [resolvable:$true] %s4604
      %s4606 = sshll.u32 %s5, 4
      %s4607 = int_to_ptr.hbm [resolvable:$true] %s4606
      %4609 = dma.vmem_to_hbm [thread:$0]  %s4605, 32, %s4607, [#allocation3]
    $region25: #{net_forward.5} parent=1 // pred_fallthru
      _
    // Predicated region
    $region26: #{net_forward.5} parent=1 // pred_check
      _
    $region27: #{net_forward.5} parent=1 // pred_check_branch
      %4611 = sbr.rel (0) target = $region29
    $region28: #{net_forward.5} parent=1 // pred_region
      %4613 = dma.done [#allocation3], 32
    $region29: #{net_forward.5} parent=1 // pred_fallthru
      _
    %4614 = vsyncpa [#allocation3], 1

</llo_original>
